<compile_context>
chip_gen: v6e
topology: v6e:2x2x1
jax: 0.10.0
libtpu: 0.0.40
codegen_flags: <defaults>
</compile_context>

<pallas_src>
import math
import functools

import jax
import jax.numpy as jnp
from jax import lax
from jax.experimental import pallas as pl
from jax.experimental.pallas import tpu as pltpu

EPS = 1e-5  # PyTorch LayerNorm default eps


# ----------------------------- kernel helpers -----------------------------

def _layernorm(x, w, b):
    # single-pass variance: E[x^2] - mean^2 (f32 math)
    mu = jnp.mean(x, axis=-1, keepdims=True)
    ms = jnp.mean(x * x, axis=-1, keepdims=True)
    var = ms - mu * mu
    return (x - mu) * lax.rsqrt(var + EPS) * w + b


def _mha(q2d, k2d, v2d, *, nhead, bt, tq, tk):
    """q2d: (bt*tq, E) f32; k2d/v2d: (bt*tk, E) f32.  1/sqrt(dh) folded into q."""
    E = q2d.shape[-1]
    dh = E // nhead
    outs = []
    for b in range(bt):  # static batch-tile loop; attention is per batch element
        qb = q2d[b * tq:(b + 1) * tq, :]
        kb = k2d[b * tk:(b + 1) * tk, :]
        vb = v2d[b * tk:(b + 1) * tk, :]
        qh = jnp.stack([qb[:, h * dh:(h + 1) * dh] for h in range(nhead)],
                       axis=0).astype(jnp.bfloat16)          # (H, tq, dh)
        kh = jnp.stack([kb[:, h * dh:(h + 1) * dh] for h in range(nhead)],
                       axis=0).astype(jnp.bfloat16)          # (H, tk, dh)
        vh = jnp.stack([vb[:, h * dh:(h + 1) * dh] for h in range(nhead)],
                       axis=0).astype(jnp.bfloat16)          # (H, tk, dh)
        s = jnp.einsum('hqd,hkd->hqk', qh, kh,
                       preferred_element_type=jnp.float32)   # f32 scores
        s = s - jnp.max(s, axis=-1, keepdims=True)
        p = jnp.exp(s)
        p = p * pl.reciprocal(jnp.sum(p, axis=-1, keepdims=True), approx=True)
        oh = jnp.einsum('hqk,hkd->hqd', p.astype(jnp.bfloat16), vh,
                        preferred_element_type=jnp.float32)  # (H, tq, dh) f32
        outs.append(jnp.concatenate([oh[h] for h in range(nhead)], axis=-1))
    return jnp.concatenate(outs, axis=0)                     # (bt*tq, E) f32


# ----------------------------- fused decoder kernel -------------------------

def decoder_layers_kernel(x_in_ref, mem_ref,
                          sa_w_ref, ca_w_ref, ff_w1_ref, ff_w2_ref,
                          bias_ref, ffb1_ref, norm_ref,
                          out_ref,
                          x_vmem,
                          *, nhead, bt, tgt_len, src_len, embed):
    """Grid = (batch_tile, layer).  One decoder layer per step; x lives in VMEM."""
    E, T, S = embed, tgt_len, src_len
    l = pl.program_id(1)
    L = pl.num_programs(1)

    @pl.when(l == 0)
    def _():  # load embedded + positionally-encoded input for this batch tile
        x_vmem[...] = x_in_ref[...].reshape(bt * T, E)

    x = x_vmem[...]                                            # (bt*T, E) f32
    mem_bf = mem_ref[...].reshape(bt * S, E).astype(jnp.bfloat16)

    # ---- packed per-layer biases / norms: pure sublane-row indexing ----
    bias = bias_ref[...]                                       # (9, E) f32
    sa_bq, sa_bk, sa_bv, sa_bo = bias[0:1], bias[1:2], bias[2:3], bias[3:4]
    ca_bq, ca_bk, ca_bv, ca_bo = bias[4:5], bias[5:6], bias[6:7], bias[7:8]
    ff_b2 = bias[8:9]
    ff_b1 = ffb1_ref[...]                                      # (1, F) f32

    norms = norm_ref[...]                                      # (6, E) f32
    n1w, n1b = norms[0:1], norms[1:2]
    n2w, n2b = norms[2:3], norms[3:4]
    n3w, n3b = norms[4:5], norms[5:6]

    # ---- self-attention block (post-norm; scale folded into Wq/bq) ----
    x_bf = x.astype(jnp.bfloat16)
    q = jnp.dot(x_bf, sa_w_ref[0], preferred_element_type=jnp.float32) + sa_bq
    k = jnp.dot(x_bf, sa_w_ref[1], preferred_element_type=jnp.float32) + sa_bk
    v = jnp.dot(x_bf, sa_w_ref[2], preferred_element_type=jnp.float32) + sa_bv
    sa = _mha(q, k, v, nhead=nhead, bt=bt, tq=T, tk=T)
    sa = jnp.dot(sa.astype(jnp.bfloat16), sa_w_ref[3],
                 preferred_element_type=jnp.float32) + sa_bo
    x = _layernorm(x + sa, n1w, n1b)

    # ---- cross-attention block (queries = x, keys/values = memory) ----
    x_bf = x.astype(jnp.bfloat16)
    q = jnp.dot(x_bf, ca_w_ref[0], preferred_element_type=jnp.float32) + ca_bq
    k = jnp.dot(mem_bf, ca_w_ref[1], preferred_element_type=jnp.float32) + ca_bk
    v = jnp.dot(mem_bf, ca_w_ref[2], preferred_element_type=jnp.float32) + ca_bv
    ca = _mha(q, k, v, nhead=nhead, bt=bt, tq=T, tk=S)
    ca = jnp.dot(ca.astype(jnp.bfloat16), ca_w_ref[3],
                 preferred_element_type=jnp.float32) + ca_bo
    x = _layernorm(x + ca, n2w, n2b)

    # ---- feed-forward block (ReLU) ----
    x_bf = x.astype(jnp.bfloat16)
    h = jnp.maximum(
        jnp.dot(x_bf, ff_w1_ref[...], preferred_element_type=jnp.float32) + ff_b1,
        0.0)
    ff = jnp.dot(h.astype(jnp.bfloat16), ff_w2_ref[...],
                 preferred_element_type=jnp.float32) + ff_b2
    x = _layernorm(x + ff, n3w, n3b)

    x_vmem[...] = x

    @pl.when(l == L - 1)
    def _():
        out_ref[...] = x.reshape(bt, T, E)


# ----------------------------- fc_out kernel (vocab-tiled) ------------------

def fc_out_kernel(x_ref, w_ref, b_ref, o_ref):
    x_bf = x_ref[...].astype(jnp.bfloat16)
    o_ref[...] = (jnp.dot(x_bf, w_ref[...], preferred_element_type=jnp.float32)
                  + b_ref[...])


# ----------------------------- wrapper --------------------------------------

def transformer_decoder_forward(tgt_tokens, memory, params, nhead):
    """tgt_tokens: (B, T) int32; memory: (B, S, E) f32 -> logits (B, T, vocab)."""
    B, T = tgt_tokens.shape
    S = memory.shape[1]
    E = params["embedding"].shape[1]
    L = params["sa_w"].shape[0]
    F = params["ff_w1"].shape[2]
    Vp = params["fc_w"].shape[1]      # padded (lane-dense) vocab
    V = params["vocab_size"]

    # batch tile: keep >= 2 grid blocks on the parallel axis (v7x megacore)
    # while streaming each layer's weights only nbt times (instead of B times).
    bt = max(1, B // 2)
    assert B % bt == 0, "demo wrapper assumes batch divisible by batch tile"
    nbt = B // bt

    # glue: embedding gather + positional encoding (dropout = identity in eval)
    x = jnp.take(params["embedding"], tgt_tokens, axis=0) + params["pe"][None, :T, :]

    x_final = pl.pallas_call(
        functools.partial(decoder_layers_kernel, nhead=nhead, bt=bt,
                          tgt_len=T, src_len=S, embed=E),
        out_shape=jax.ShapeDtypeStruct((B, T, E), jnp.float32),
        grid=(nbt, L),
        in_specs=[
            pl.BlockSpec((bt, T, E), lambda b, l: (b, 0, 0)),          # embedded x
            pl.BlockSpec((bt, S, E), lambda b, l: (b, 0, 0)),          # memory
            pl.BlockSpec((None, 4, E, E), lambda b, l: (l, 0, 0, 0)),  # self-attn W
            pl.BlockSpec((None, 4, E, E), lambda b, l: (l, 0, 0, 0)),  # cross-attn W
            pl.BlockSpec((None, E, F), lambda b, l: (l, 0, 0)),        # ff_w1
            pl.BlockSpec((None, F, E), lambda b, l: (l, 0, 0)),        # ff_w2
            pl.BlockSpec((None, 9, E), lambda b, l: (l, 0, 0)),        # E-wide biases
            pl.BlockSpec((None, 1, F), lambda b, l: (l, 0, 0)),        # ff_b1
            pl.BlockSpec((None, 6, E), lambda b, l: (l, 0, 0)),        # norm params
        ],
        out_specs=pl.BlockSpec((bt, T, E), lambda b, l: (b, 0, 0)),
        scratch_shapes=[pltpu.VMEM((bt * T, E), jnp.float32)],
        compiler_params=pltpu.CompilerParams(
            dimension_semantics=("parallel", "arbitrary"),
            vmem_limit_bytes=48 * 1024 * 1024),
    )(x, memory,
      params["sa_w"], params["ca_w"], params["ff_w1"], params["ff_w2"],
      params["bias_e"], params["ff_b1"], params["norm"])

    # final vocab projection, tiled over the padded (lane-dense) vocab axis
    x2 = x_final.reshape(B * T, E)
    tv = 512 if Vp % 512 == 0 else 128
    logits2 = pl.pallas_call(
        fc_out_kernel,
        out_shape=jax.ShapeDtypeStruct((B * T, Vp), jnp.float32),
        grid=(Vp // tv,),
        in_specs=[
            pl.BlockSpec((B * T, E), lambda j: (0, 0)),
            pl.BlockSpec((E, tv), lambda j: (0, j)),
            pl.BlockSpec((1, tv), lambda j: (0, j)),
        ],
        out_specs=pl.BlockSpec((B * T, tv), lambda j: (0, j)),
        compiler_params=pltpu.CompilerParams(
            dimension_semantics=("parallel",),
            vmem_limit_bytes=48 * 1024 * 1024),
    )(x2, params["fc_w"], params["fc_b"])

    return logits2.reshape(B, T, Vp)[:, :, :V]


# ----------------------------- parameter init ------------------------------

def positional_encoding_table(max_len, d_model):
    position = jnp.arange(max_len, dtype=jnp.float32)[:, None]
    div_term = jnp.exp(jnp.arange(0, d_model, 2, dtype=jnp.float32)
                       * (-math.log(10000.0) / d_model))
    pe = jnp.zeros((max_len, d_model), jnp.float32)
    pe = pe.at[:, 0::2].set(jnp.sin(position * div_term))
    pe = pe.at[:, 1::2].set(jnp.cos(position * div_term))
    return pe


def init_params(key, vocab_size, embed_size, decoder_dim, num_layers, nhead, max_len):
    E, F, V, L = embed_size, decoder_dim, vocab_size, num_layers
    dh = E // nhead
    scale = 1.0 / math.sqrt(dh)
    std = 0.02

    def nxt():
        nonlocal key
        key, sub = jax.random.split(key)
        return sub

    def dense(din, dout):
        # weights stored pre-transposed to (in, out); biases as 1-D (out,)
        w = std * jax.random.normal(nxt(), (din, dout), jnp.float32)
        b = std * jax.random.normal(nxt(), (dout,), jnp.float32)
        return w, b

    sa_w, ca_w, ff_w1, ff_w2, bias_e, ff_b1, norm = [], [], [], [], [], [], []
    for _ in range(L):
        # self-attention: Q/K/V/O packed on a leading axis; 1/sqrt(dh) folded into Q
        wq, bq = dense(E, E)
        wk, bk = dense(E, E)
        wv, bv = dense(E, E)
        wo, bo = dense(E, E)
        wq, bq = wq * scale, bq * scale
        sa_w.append(jnp.stack([wq, wk, wv, wo], axis=0))          # (4, E, E)

        # cross-attention
        cwq, cbq = dense(E, E)
        cwk, cbk = dense(E, E)
        cwv, cbv = dense(E, E)
        cwo, cbo = dense(E, E)
        cwq, cbq = cwq * scale, cbq * scale
        ca_w.append(jnp.stack([cwq, cwk, cwv, cwo], axis=0))      # (4, E, E)

        # feed-forward
        w1, b1 = dense(E, F)
        w2, b2 = dense(F, E)
        ff_w1.append(w1)
        ff_w2.append(w2)

        # E-wide biases, one per sublane row:
        # [sa_bq, sa_bk, sa_bv, sa_bo, ca_bq, ca_bk, ca_bv, ca_bo, ff_b2]
        bias_e.append(jnp.stack([bq, bk, bv, bo, cbq, cbk, cbv, cbo, b2], axis=0))
        ff_b1.append(b1[None, :])                                 # (1, F)

        # packed LayerNorm params (default init: weight=1, bias=0) -> (6, E)
        norm.append(jnp.stack([
            jnp.ones((E,), jnp.float32), jnp.zeros((E,), jnp.float32),
            jnp.ones((E,), jnp.float32), jnp.zeros((E,), jnp.float32),
            jnp.ones((E,), jnp.float32), jnp.zeros((E,), jnp.float32)], axis=0))

    # final vocab projection, padded to 128 lanes for lane-dense output stores
    fc_w, fc_b = dense(E, V)
    Vp = max(128, ((V + 127) // 128) * 128)
    fc_w_p = jnp.zeros((E, Vp), jnp.float32).at[:, :V].set(fc_w)
    fc_b_p = jnp.zeros((1, Vp), jnp.float32).at[0, :V].set(fc_b)

    return {
        "embedding": std * jax.random.normal(nxt(), (V, E), jnp.float32),
        "pe": positional_encoding_table(max_len, E),
        "sa_w": jnp.stack(sa_w).astype(jnp.bfloat16),    # (L, 4, E, E) bf16
        "ca_w": jnp.stack(ca_w).astype(jnp.bfloat16),    # (L, 4, E, E) bf16
        "ff_w1": jnp.stack(ff_w1).astype(jnp.bfloat16),  # (L, E, F)    bf16
        "ff_w2": jnp.stack(ff_w2).astype(jnp.bfloat16),  # (L, F, E)    bf16
        "bias_e": jnp.stack(bias_e),                     # (L, 9, E)    f32
        "ff_b1": jnp.stack(ff_b1),                       # (L, 1, F)    f32
        "norm": jnp.stack(norm),                         # (L, 6, E)    f32
        "fc_w": fc_w_p.astype(jnp.bfloat16),             # (E, Vp)      bf16
        "fc_b": fc_b_p,                                  # (1, Vp)      f32
        "vocab_size": V,
    }


# ----------------------------- main ----------------------------------------

if __name__ == "__main__":
    # small shapes consistent with the module
    vocab_size, embed_size, decoder_dim = 16, 32, 64
    num_layers, nhead, max_len = 2, 8, 50
    B, tgt_len, src_len = 2, 8, 4

    key = jax.random.PRNGKey(0)
    k_tok, k_mem, k_par = jax.random.split(key, 3)

    tgt = jax.random.randint(k_tok, (B, tgt_len), 0, vocab_size, dtype=jnp.int32)
    memory = jax.random.normal(k_mem, (B, src_len, embed_size), jnp.float32)
    params = init_params(k_par, vocab_size, embed_size, decoder_dim,
                         num_layers, nhead, max_len)

    logits = transformer_decoder_forward(tgt, memory, params, nhead)
    logits = jax.block_until_ready(logits)

    assert logits.shape == (B, tgt_len, vocab_size), logits.shape
    assert bool(jnp.all(jnp.isfinite(logits)))
    print("KERNEL_OK")
</pallas_src>

<mosaic_0001>
module attributes {stable_mosaic.version = 11 : i64} {
  func.func @decoder_layers_kernel(%arg0: i32, %arg1: i32, %arg2: memref<1x8x32xf32, #tpu.memory_space<vmem>>, %arg3: memref<1x4x32xf32, #tpu.memory_space<vmem>>, %arg4: memref<1x4x32x32xbf16, #tpu.memory_space<vmem>>, %arg5: memref<1x4x32x32xbf16, #tpu.memory_space<vmem>>, %arg6: memref<1x32x64xbf16, #tpu.memory_space<vmem>>, %arg7: memref<1x64x32xbf16, #tpu.memory_space<vmem>>, %arg8: memref<1x9x32xf32, #tpu.memory_space<vmem>>, %arg9: memref<1x1x64xf32, #tpu.memory_space<vmem>>, %arg10: memref<1x6x32xf32, #tpu.memory_space<vmem>>, %arg11: memref<1x8x32xf32, #tpu.memory_space<vmem>>, %arg12: memref<8x32xf32, #tpu.memory_space<vmem>>) attributes {dimension_semantics = [#tpu.dimension_semantics<parallel>, #tpu.dimension_semantics<arbitrary>], iteration_bounds = array<i64: 2, 2>, scalar_prefetch = 0 : i64, scratch_operands = 1 : i64, tpu.core_type = #tpu.core_type<tc>, window_params = [{transform_indices = @transform_0, window_bounds = array<i64: 1, 8, 32>}, {transform_indices = @transform_1, window_bounds = array<i64: 1, 4, 32>}, {transform_indices = @transform_2, window_bounds = array<i64: 1, 4, 32, 32>}, {transform_indices = @transform_3, window_bounds = array<i64: 1, 4, 32, 32>}, {transform_indices = @transform_4, window_bounds = array<i64: 1, 32, 64>}, {transform_indices = @transform_5, window_bounds = array<i64: 1, 64, 32>}, {transform_indices = @transform_6, window_bounds = array<i64: 1, 9, 32>}, {transform_indices = @transform_7, window_bounds = array<i64: 1, 1, 64>}, {transform_indices = @transform_8, window_bounds = array<i64: 1, 6, 32>}, {transform_indices = @transform_9, window_bounds = array<i64: 1, 8, 32>}]} {
    %c0_i32 = arith.constant 0 : i32
    %0 = arith.cmpi eq, %arg1, %c0_i32 : i32
    %1 = arith.extui %0 : i1 to i32
    %c0_i32_0 = arith.constant 0 : i32
    %2 = arith.cmpi ne, %1, %c0_i32_0 : i32
    scf.if %2 {
      %c0_85 = arith.constant 0 : index
      %c0_86 = arith.constant 0 : index
      %c0_87 = arith.constant 0 : index
      %327 = vector.load %arg2[%c0_85, %c0_86, %c0_87] : memref<1x8x32xf32, #tpu.memory_space<vmem>>, vector<1x8x32xf32>
      %328 = vector.shape_cast %327 : vector<1x8x32xf32> to vector<8x32xf32>
      %c0_88 = arith.constant 0 : index
      %c0_89 = arith.constant 0 : index
      %329 = vector.load %arg12[%c0_88, %c0_89] : memref<8x32xf32, #tpu.memory_space<vmem>>, vector<8x32xf32>
      tpu.vector_store %arg12[%c0_88, %c0_89], %328 {strides = array<i32>} : memref<8x32xf32, #tpu.memory_space<vmem>>, vector<8x32xf32>,
    } else {
    }
    %c0 = arith.constant 0 : index
    %c0_1 = arith.constant 0 : index
    %3 = vector.load %arg12[%c0, %c0_1] : memref<8x32xf32, #tpu.memory_space<vmem>>, vector<8x32xf32>
    %c0_2 = arith.constant 0 : index
    %c0_3 = arith.constant 0 : index
    %c0_4 = arith.constant 0 : index
    %4 = vector.load %arg3[%c0_2, %c0_3, %c0_4] : memref<1x4x32xf32, #tpu.memory_space<vmem>>, vector<1x4x32xf32>
    %5 = vector.shape_cast %4 : vector<1x4x32xf32> to vector<4x32xf32>
    %6 = arith.truncf %5 : vector<4x32xf32> to vector<4x32xbf16>
    %c0_5 = arith.constant 0 : index
    %c0_6 = arith.constant 0 : index
    %c0_7 = arith.constant 0 : index
    %7 = vector.load %arg8[%c0_5, %c0_6, %c0_7] : memref<1x9x32xf32, #tpu.memory_space<vmem>>, vector<1x9x32xf32>
    %8 = vector.shape_cast %7 : vector<1x9x32xf32> to vector<9x32xf32>
    %9 = vector.extract_strided_slice %8 {offsets = [0, 0], sizes = [1, 32], strides = [1, 1]} : vector<9x32xf32> to vector<1x32xf32>
    %10 = vector.extract_strided_slice %8 {offsets = [1, 0], sizes = [1, 32], strides = [1, 1]} : vector<9x32xf32> to vector<1x32xf32>
    %11 = vector.extract_strided_slice %8 {offsets = [2, 0], sizes = [1, 32], strides = [1, 1]} : vector<9x32xf32> to vector<1x32xf32>
    %12 = vector.extract_strided_slice %8 {offsets = [3, 0], sizes = [1, 32], strides = [1, 1]} : vector<9x32xf32> to vector<1x32xf32>
    %13 = vector.extract_strided_slice %8 {offsets = [4, 0], sizes = [1, 32], strides = [1, 1]} : vector<9x32xf32> to vector<1x32xf32>
    %14 = vector.extract_strided_slice %8 {offsets = [5, 0], sizes = [1, 32], strides = [1, 1]} : vector<9x32xf32> to vector<1x32xf32>
    %15 = vector.extract_strided_slice %8 {offsets = [6, 0], sizes = [1, 32], strides = [1, 1]} : vector<9x32xf32> to vector<1x32xf32>
    %16 = vector.extract_strided_slice %8 {offsets = [7, 0], sizes = [1, 32], strides = [1, 1]} : vector<9x32xf32> to vector<1x32xf32>
    %17 = vector.extract_strided_slice %8 {offsets = [8, 0], sizes = [1, 32], strides = [1, 1]} : vector<9x32xf32> to vector<1x32xf32>
    %c0_8 = arith.constant 0 : index
    %c0_9 = arith.constant 0 : index
    %c0_10 = arith.constant 0 : index
    %18 = vector.load %arg9[%c0_8, %c0_9, %c0_10] : memref<1x1x64xf32, #tpu.memory_space<vmem>>, vector<1x1x64xf32>
    %19 = vector.shape_cast %18 : vector<1x1x64xf32> to vector<1x64xf32>
    %c0_11 = arith.constant 0 : index
    %c0_12 = arith.constant 0 : index
    %c0_13 = arith.constant 0 : index
    %20 = vector.load %arg10[%c0_11, %c0_12, %c0_13] : memref<1x6x32xf32, #tpu.memory_space<vmem>>, vector<1x6x32xf32>
    %21 = vector.shape_cast %20 : vector<1x6x32xf32> to vector<6x32xf32>
    %22 = vector.extract_strided_slice %21 {offsets = [0, 0], sizes = [1, 32], strides = [1, 1]} : vector<6x32xf32> to vector<1x32xf32>
    %23 = vector.extract_strided_slice %21 {offsets = [1, 0], sizes = [1, 32], strides = [1, 1]} : vector<6x32xf32> to vector<1x32xf32>
    %24 = vector.extract_strided_slice %21 {offsets = [2, 0], sizes = [1, 32], strides = [1, 1]} : vector<6x32xf32> to vector<1x32xf32>
    %25 = vector.extract_strided_slice %21 {offsets = [3, 0], sizes = [1, 32], strides = [1, 1]} : vector<6x32xf32> to vector<1x32xf32>
    %26 = vector.extract_strided_slice %21 {offsets = [4, 0], sizes = [1, 32], strides = [1, 1]} : vector<6x32xf32> to vector<1x32xf32>
    %27 = vector.extract_strided_slice %21 {offsets = [5, 0], sizes = [1, 32], strides = [1, 1]} : vector<6x32xf32> to vector<1x32xf32>
    %28 = arith.truncf %3 : vector<8x32xf32> to vector<8x32xbf16>
    %c0_14 = arith.constant 0 : index
    %c0_15 = arith.constant 0 : index
    %c0_16 = arith.constant 0 : index
    %c0_17 = arith.constant 0 : index
    %29 = vector.load %arg4[%c0_14, %c0_15, %c0_16, %c0_17] : memref<1x4x32x32xbf16, #tpu.memory_space<vmem>>, vector<1x1x32x32xbf16>
    %30 = vector.shape_cast %29 : vector<1x1x32x32xbf16> to vector<32x32xbf16>
    %cst = arith.constant dense<0.000000e+00> : vector<8x32xf32>
    %31 = tpu.matmul %28, %30, %cst {dimension_numbers = #tpu.dot_dimension_numbers<[1], [0], [0], [1], [0, 0, 1, 1], [], []>} : vector<8x32xbf16>, vector<32x32xbf16>, vector<8x32xf32> -> vector<8x32xf32>
    %32 = vector.broadcast %9 : vector<1x32xf32> to vector<8x32xf32>
    %33 = arith.addf %31, %32 : vector<8x32xf32>
    %c0_18 = arith.constant 0 : index
    %c1 = arith.constant 1 : index
    %c0_19 = arith.constant 0 : index
    %c0_20 = arith.constant 0 : index
    %34 = vector.load %arg4[%c0_18, %c1, %c0_19, %c0_20] : memref<1x4x32x32xbf16, #tpu.memory_space<vmem>>, vector<1x1x32x32xbf16>
    %35 = vector.shape_cast %34 : vector<1x1x32x32xbf16> to vector<32x32xbf16>
    %cst_21 = arith.constant dense<0.000000e+00> : vector<8x32xf32>
    %36 = tpu.matmul %28, %35, %cst_21 {dimension_numbers = #tpu.dot_dimension_numbers<[1], [0], [0], [1], [0, 0, 1, 1], [], []>} : vector<8x32xbf16>, vector<32x32xbf16>, vector<8x32xf32> -> vector<8x32xf32>
    %37 = vector.broadcast %10 : vector<1x32xf32> to vector<8x32xf32>
    %38 = arith.addf %36, %37 : vector<8x32xf32>
    %c0_22 = arith.constant 0 : index
    %c2 = arith.constant 2 : index
    %c0_23 = arith.constant 0 : index
    %c0_24 = arith.constant 0 : index
    %39 = vector.load %arg4[%c0_22, %c2, %c0_23, %c0_24] : memref<1x4x32x32xbf16, #tpu.memory_space<vmem>>, vector<1x1x32x32xbf16>
    %40 = vector.shape_cast %39 : vector<1x1x32x32xbf16> to vector<32x32xbf16>
    %cst_25 = arith.constant dense<0.000000e+00> : vector<8x32xf32>
    %41 = tpu.matmul %28, %40, %cst_25 {dimension_numbers = #tpu.dot_dimension_numbers<[1], [0], [0], [1], [0, 0, 1, 1], [], []>} : vector<8x32xbf16>, vector<32x32xbf16>, vector<8x32xf32> -> vector<8x32xf32>
    %42 = vector.broadcast %11 : vector<1x32xf32> to vector<8x32xf32>
    %43 = arith.addf %41, %42 : vector<8x32xf32>
    %44 = vector.extract_strided_slice %33 {offsets = [0, 0], sizes = [8, 4], strides = [1, 1]} : vector<8x32xf32> to vector<8x4xf32>
    %45 = vector.extract_strided_slice %33 {offsets = [0, 4], sizes = [8, 4], strides = [1, 1]} : vector<8x32xf32> to vector<8x4xf32>
    %46 = vector.extract_strided_slice %33 {offsets = [0, 8], sizes = [8, 4], strides = [1, 1]} : vector<8x32xf32> to vector<8x4xf32>
    %47 = vector.extract_strided_slice %33 {offsets = [0, 12], sizes = [8, 4], strides = [1, 1]} : vector<8x32xf32> to vector<8x4xf32>
    %48 = vector.extract_strided_slice %33 {offsets = [0, 16], sizes = [8, 4], strides = [1, 1]} : vector<8x32xf32> to vector<8x4xf32>
    %49 = vector.extract_strided_slice %33 {offsets = [0, 20], sizes = [8, 4], strides = [1, 1]} : vector<8x32xf32> to vector<8x4xf32>
    %50 = vector.extract_strided_slice %33 {offsets = [0, 24], sizes = [8, 4], strides = [1, 1]} : vector<8x32xf32> to vector<8x4xf32>
    %51 = vector.extract_strided_slice %33 {offsets = [0, 28], sizes = [8, 4], strides = [1, 1]} : vector<8x32xf32> to vector<8x4xf32>
    %52 = vector.shape_cast %44 : vector<8x4xf32> to vector<1x8x4xf32>
    %53 = vector.shape_cast %45 : vector<8x4xf32> to vector<1x8x4xf32>
    %54 = vector.shape_cast %46 : vector<8x4xf32> to vector<1x8x4xf32>
    %55 = vector.shape_cast %47 : vector<8x4xf32> to vector<1x8x4xf32>
    %56 = vector.shape_cast %48 : vector<8x4xf32> to vector<1x8x4xf32>
    %57 = vector.shape_cast %49 : vector<8x4xf32> to vector<1x8x4xf32>
    %58 = vector.shape_cast %50 : vector<8x4xf32> to vector<1x8x4xf32>
    %59 = vector.shape_cast %51 : vector<8x4xf32> to vector<1x8x4xf32>
    %60 = tpu.concatenate %52, %53, %54, %55, %56, %57, %58, %59 in 0 : vector<1x8x4xf32>, vector<1x8x4xf32>, vector<1x8x4xf32>, vector<1x8x4xf32>, vector<1x8x4xf32>, vector<1x8x4xf32>, vector<1x8x4xf32>, vector<1x8x4xf32> -> vector<8x8x4xf32>
    %61 = arith.truncf %60 : vector<8x8x4xf32> to vector<8x8x4xbf16>
    %62 = vector.extract_strided_slice %38 {offsets = [0, 0], sizes = [8, 4], strides = [1, 1]} : vector<8x32xf32> to vector<8x4xf32>
    %63 = vector.extract_strided_slice %38 {offsets = [0, 4], sizes = [8, 4], strides = [1, 1]} : vector<8x32xf32> to vector<8x4xf32>
    %64 = vector.extract_strided_slice %38 {offsets = [0, 8], sizes = [8, 4], strides = [1, 1]} : vector<8x32xf32> to vector<8x4xf32>
    %65 = vector.extract_strided_slice %38 {offsets = [0, 12], sizes = [8, 4], strides = [1, 1]} : vector<8x32xf32> to vector<8x4xf32>
    %66 = vector.extract_strided_slice %38 {offsets = [0, 16], sizes = [8, 4], strides = [1, 1]} : vector<8x32xf32> to vector<8x4xf32>
    %67 = vector.extract_strided_slice %38 {offsets = [0, 20], sizes = [8, 4], strides = [1, 1]} : vector<8x32xf32> to vector<8x4xf32>
    %68 = vector.extract_strided_slice %38 {offsets = [0, 24], sizes = [8, 4], strides = [1, 1]} : vector<8x32xf32> to vector<8x4xf32>
    %69 = vector.extract_strided_slice %38 {offsets = [0, 28], sizes = [8, 4], strides = [1, 1]} : vector<8x32xf32> to vector<8x4xf32>
    %70 = vector.shape_cast %62 : vector<8x4xf32> to vector<1x8x4xf32>
    %71 = vector.shape_cast %63 : vector<8x4xf32> to vector<1x8x4xf32>
    %72 = vector.shape_cast %64 : vector<8x4xf32> to vector<1x8x4xf32>
    %73 = vector.shape_cast %65 : vector<8x4xf32> to vector<1x8x4xf32>
    %74 = vector.shape_cast %66 : vector<8x4xf32> to vector<1x8x4xf32>
    %75 = vector.shape_cast %67 : vector<8x4xf32> to vector<1x8x4xf32>
    %76 = vector.shape_cast %68 : vector<8x4xf32> to vector<1x8x4xf32>
    %77 = vector.shape_cast %69 : vector<8x4xf32> to vector<1x8x4xf32>
    %78 = tpu.concatenate %70, %71, %72, %73, %74, %75, %76, %77 in 0 : vector<1x8x4xf32>, vector<1x8x4xf32>, vector<1x8x4xf32>, vector<1x8x4xf32>, vector<1x8x4xf32>, vector<1x8x4xf32>, vector<1x8x4xf32>, vector<1x8x4xf32> -> vector<8x8x4xf32>
    %79 = arith.truncf %78 : vector<8x8x4xf32> to vector<8x8x4xbf16>
    %80 = vector.extract_strided_slice %43 {offsets = [0, 0], sizes = [8, 4], strides = [1, 1]} : vector<8x32xf32> to vector<8x4xf32>
    %81 = vector.extract_strided_slice %43 {offsets = [0, 4], sizes = [8, 4], strides = [1, 1]} : vector<8x32xf32> to vector<8x4xf32>
    %82 = vector.extract_strided_slice %43 {offsets = [0, 8], sizes = [8, 4], strides = [1, 1]} : vector<8x32xf32> to vector<8x4xf32>
    %83 = vector.extract_strided_slice %43 {offsets = [0, 12], sizes = [8, 4], strides = [1, 1]} : vector<8x32xf32> to vector<8x4xf32>
    %84 = vector.extract_strided_slice %43 {offsets = [0, 16], sizes = [8, 4], strides = [1, 1]} : vector<8x32xf32> to vector<8x4xf32>
    %85 = vector.extract_strided_slice %43 {offsets = [0, 20], sizes = [8, 4], strides = [1, 1]} : vector<8x32xf32> to vector<8x4xf32>
    %86 = vector.extract_strided_slice %43 {offsets = [0, 24], sizes = [8, 4], strides = [1, 1]} : vector<8x32xf32> to vector<8x4xf32>
    %87 = vector.extract_strided_slice %43 {offsets = [0, 28], sizes = [8, 4], strides = [1, 1]} : vector<8x32xf32> to vector<8x4xf32>
    %88 = vector.shape_cast %80 : vector<8x4xf32> to vector<1x8x4xf32>
    %89 = vector.shape_cast %81 : vector<8x4xf32> to vector<1x8x4xf32>
    %90 = vector.shape_cast %82 : vector<8x4xf32> to vector<1x8x4xf32>
    %91 = vector.shape_cast %83 : vector<8x4xf32> to vector<1x8x4xf32>
    %92 = vector.shape_cast %84 : vector<8x4xf32> to vector<1x8x4xf32>
    %93 = vector.shape_cast %85 : vector<8x4xf32> to vector<1x8x4xf32>
    %94 = vector.shape_cast %86 : vector<8x4xf32> to vector<1x8x4xf32>
    %95 = vector.shape_cast %87 : vector<8x4xf32> to vector<1x8x4xf32>
    %96 = tpu.concatenate %88, %89, %90, %91, %92, %93, %94, %95 in 0 : vector<1x8x4xf32>, vector<1x8x4xf32>, vector<1x8x4xf32>, vector<1x8x4xf32>, vector<1x8x4xf32>, vector<1x8x4xf32>, vector<1x8x4xf32>, vector<1x8x4xf32> -> vector<8x8x4xf32>
    %97 = arith.truncf %96 : vector<8x8x4xf32> to vector<8x8x4xbf16>
    "tpu.trace_start"() <{level = 10 : i32, message = "hqd,hkd->hqk"}> : () -> ()
    %cst_26 = arith.constant dense<0.000000e+00> : vector<8x8x8xf32>
    %98 = tpu.matmul %61, %79, %cst_26 {dimension_numbers = #tpu.dot_dimension_numbers<[2], [2], [1], [1], [0, 0, 0, 1, 1, 1], [0], [0]>} : vector<8x8x4xbf16>, vector<8x8x4xbf16>, vector<8x8x8xf32> -> vector<8x8x8xf32>
    "tpu.trace_stop"() : () -> ()
    %cst_27 = arith.constant dense<0xFF800000> : vector<8x8xf32>
    %99 = vector.multi_reduction <maximumf>, %98, %cst_27 [2] : vector<8x8x8xf32> to vector<8x8xf32>
    %100 = vector.shape_cast %99 : vector<8x8xf32> to vector<8x8x1xf32>
    %101 = vector.broadcast %100 : vector<8x8x1xf32> to vector<8x8x8xf32>
    %102 = arith.subf %98, %101 : vector<8x8x8xf32>
    %103 = math.exp %102 : vector<8x8x8xf32>
    %cst_28 = arith.constant dense<0.000000e+00> : vector<8x8xf32>
    %104 = vector.multi_reduction <add>, %103, %cst_28 [2] : vector<8x8x8xf32> to vector<8x8xf32>
    %105 = vector.shape_cast %104 : vector<8x8xf32> to vector<8x8x1xf32>
    %106 = tpu.reciprocal %105 {approx = true} : vector<8x8x1xf32> -> vector<8x8x1xf32>
    %107 = vector.broadcast %106 : vector<8x8x1xf32> to vector<8x8x8xf32>
    %108 = arith.mulf %103, %107 : vector<8x8x8xf32>
    %109 = arith.truncf %108 : vector<8x8x8xf32> to vector<8x8x8xbf16>
    "tpu.trace_start"() <{level = 10 : i32, message = "hqk,hkd->hqd"}> : () -> ()
    %cst_29 = arith.constant dense<0.000000e+00> : vector<8x8x4xf32>
    %110 = tpu.matmul %109, %97, %cst_29 {dimension_numbers = #tpu.dot_dimension_numbers<[2], [1], [1], [2], [0, 0, 0, 1, 1, 2], [0], [0]>} : vector<8x8x8xbf16>, vector<8x8x4xbf16>, vector<8x8x4xf32> -> vector<8x8x4xf32>
    "tpu.trace_stop"() : () -> ()
    %111 = vector.extract_strided_slice %110 {offsets = [0, 0, 0], sizes = [1, 8, 4], strides = [1, 1, 1]} : vector<8x8x4xf32> to vector<1x8x4xf32>
    %112 = vector.shape_cast %111 : vector<1x8x4xf32> to vector<8x4xf32>
    %113 = vector.extract_strided_slice %110 {offsets = [1, 0, 0], sizes = [1, 8, 4], strides = [1, 1, 1]} : vector<8x8x4xf32> to vector<1x8x4xf32>
    %114 = vector.shape_cast %113 : vector<1x8x4xf32> to vector<8x4xf32>
    %115 = vector.extract_strided_slice %110 {offsets = [2, 0, 0], sizes = [1, 8, 4], strides = [1, 1, 1]} : vector<8x8x4xf32> to vector<1x8x4xf32>
    %116 = vector.shape_cast %115 : vector<1x8x4xf32> to vector<8x4xf32>
    %117 = vector.extract_strided_slice %110 {offsets = [3, 0, 0], sizes = [1, 8, 4], strides = [1, 1, 1]} : vector<8x8x4xf32> to vector<1x8x4xf32>
    %118 = vector.shape_cast %117 : vector<1x8x4xf32> to vector<8x4xf32>
    %119 = vector.extract_strided_slice %110 {offsets = [4, 0, 0], sizes = [1, 8, 4], strides = [1, 1, 1]} : vector<8x8x4xf32> to vector<1x8x4xf32>
    %120 = vector.shape_cast %119 : vector<1x8x4xf32> to vector<8x4xf32>
    %121 = vector.extract_strided_slice %110 {offsets = [5, 0, 0], sizes = [1, 8, 4], strides = [1, 1, 1]} : vector<8x8x4xf32> to vector<1x8x4xf32>
    %122 = vector.shape_cast %121 : vector<1x8x4xf32> to vector<8x4xf32>
    %123 = vector.extract_strided_slice %110 {offsets = [6, 0, 0], sizes = [1, 8, 4], strides = [1, 1, 1]} : vector<8x8x4xf32> to vector<1x8x4xf32>
    %124 = vector.shape_cast %123 : vector<1x8x4xf32> to vector<8x4xf32>
    %125 = vector.extract_strided_slice %110 {offsets = [7, 0, 0], sizes = [1, 8, 4], strides = [1, 1, 1]} : vector<8x8x4xf32> to vector<1x8x4xf32>
    %126 = vector.shape_cast %125 : vector<1x8x4xf32> to vector<8x4xf32>
    %127 = tpu.concatenate %112, %114, %116, %118, %120, %122, %124, %126 in 1 : vector<8x4xf32>, vector<8x4xf32>, vector<8x4xf32>, vector<8x4xf32>, vector<8x4xf32>, vector<8x4xf32>, vector<8x4xf32>, vector<8x4xf32> -> vector<8x32xf32>
    %128 = arith.truncf %127 : vector<8x32xf32> to vector<8x32xbf16>
    %c0_30 = arith.constant 0 : index
    %c3 = arith.constant 3 : index
    %c0_31 = arith.constant 0 : index
    %c0_32 = arith.constant 0 : index
    %129 = vector.load %arg4[%c0_30, %c3, %c0_31, %c0_32] : memref<1x4x32x32xbf16, #tpu.memory_space<vmem>>, vector<1x1x32x32xbf16>
    %130 = vector.shape_cast %129 : vector<1x1x32x32xbf16> to vector<32x32xbf16>
    %cst_33 = arith.constant dense<0.000000e+00> : vector<8x32xf32>
    %131 = tpu.matmul %128, %130, %cst_33 {dimension_numbers = #tpu.dot_dimension_numbers<[1], [0], [0], [1], [0, 0, 1, 1], [], []>} : vector<8x32xbf16>, vector<32x32xbf16>, vector<8x32xf32> -> vector<8x32xf32>
    %132 = vector.broadcast %12 : vector<1x32xf32> to vector<8x32xf32>
    %133 = arith.addf %131, %132 : vector<8x32xf32>
    %134 = arith.addf %3, %133 : vector<8x32xf32>
    %cst_34 = arith.constant dense<0.000000e+00> : vector<8xf32>
    %135 = vector.multi_reduction <add>, %134, %cst_34 [1] : vector<8x32xf32> to vector<8xf32>
    %136 = vector.shape_cast %135 : vector<8xf32> to vector<8x1xf32>
    %cst_35 = arith.constant 3.200000e+01 : f32
    %137 = vector.broadcast %cst_35 : f32 to vector<8x1xf32>
    %138 = arith.divf %136, %137 : vector<8x1xf32>
    %139 = arith.mulf %134, %134 : vector<8x32xf32>
    %cst_36 = arith.constant dense<0.000000e+00> : vector<8xf32>
    %140 = vector.multi_reduction <add>, %139, %cst_36 [1] : vector<8x32xf32> to vector<8xf32>
    %141 = vector.shape_cast %140 : vector<8xf32> to vector<8x1xf32>
    %cst_37 = arith.constant 3.200000e+01 : f32
    %142 = vector.broadcast %cst_37 : f32 to vector<8x1xf32>
    %143 = arith.divf %141, %142 : vector<8x1xf32>
    %144 = arith.mulf %138, %138 : vector<8x1xf32>
    %145 = arith.subf %143, %144 : vector<8x1xf32>
    %146 = vector.broadcast %138 : vector<8x1xf32> to vector<8x32xf32>
    %147 = arith.subf %134, %146 : vector<8x32xf32>
    %cst_38 = arith.constant 9.99999974E-6 : f32
    %148 = vector.broadcast %cst_38 : f32 to vector<8x1xf32>
    %149 = arith.addf %145, %148 : vector<8x1xf32>
    %150 = math.rsqrt %149 : vector<8x1xf32>
    %151 = vector.broadcast %150 : vector<8x1xf32> to vector<8x32xf32>
    %152 = arith.mulf %147, %151 : vector<8x32xf32>
    %153 = vector.broadcast %22 : vector<1x32xf32> to vector<8x32xf32>
    %154 = arith.mulf %152, %153 : vector<8x32xf32>
    %155 = vector.broadcast %23 : vector<1x32xf32> to vector<8x32xf32>
    %156 = arith.addf %154, %155 : vector<8x32xf32>
    %157 = arith.truncf %156 : vector<8x32xf32> to vector<8x32xbf16>
    %c0_39 = arith.constant 0 : index
    %c0_40 = arith.constant 0 : index
    %c0_41 = arith.constant 0 : index
    %c0_42 = arith.constant 0 : index
    %158 = vector.load %arg5[%c0_39, %c0_40, %c0_41, %c0_42] : memref<1x4x32x32xbf16, #tpu.memory_space<vmem>>, vector<1x1x32x32xbf16>
    %159 = vector.shape_cast %158 : vector<1x1x32x32xbf16> to vector<32x32xbf16>
    %cst_43 = arith.constant dense<0.000000e+00> : vector<8x32xf32>
    %160 = tpu.matmul %157, %159, %cst_43 {dimension_numbers = #tpu.dot_dimension_numbers<[1], [0], [0], [1], [0, 0, 1, 1], [], []>} : vector<8x32xbf16>, vector<32x32xbf16>, vector<8x32xf32> -> vector<8x32xf32>
    %161 = vector.broadcast %13 : vector<1x32xf32> to vector<8x32xf32>
    %162 = arith.addf %160, %161 : vector<8x32xf32>
    %c0_44 = arith.constant 0 : index
    %c1_45 = arith.constant 1 : index
    %c0_46 = arith.constant 0 : index
    %c0_47 = arith.constant 0 : index
    %163 = vector.load %arg5[%c0_44, %c1_45, %c0_46, %c0_47] : memref<1x4x32x32xbf16, #tpu.memory_space<vmem>>, vector<1x1x32x32xbf16>
    %164 = vector.shape_cast %163 : vector<1x1x32x32xbf16> to vector<32x32xbf16>
    %cst_48 = arith.constant dense<0.000000e+00> : vector<4x32xf32>
    %165 = tpu.matmul %6, %164, %cst_48 {dimension_numbers = #tpu.dot_dimension_numbers<[1], [0], [0], [1], [0, 0, 1, 1], [], []>} : vector<4x32xbf16>, vector<32x32xbf16>, vector<4x32xf32> -> vector<4x32xf32>
    %166 = vector.broadcast %14 : vector<1x32xf32> to vector<4x32xf32>
    %167 = arith.addf %165, %166 : vector<4x32xf32>
    %c0_49 = arith.constant 0 : index
    %c2_50 = arith.constant 2 : index
    %c0_51 = arith.constant 0 : index
    %c0_52 = arith.constant 0 : index
    %168 = vector.load %arg5[%c0_49, %c2_50, %c0_51, %c0_52] : memref<1x4x32x32xbf16, #tpu.memory_space<vmem>>, vector<1x1x32x32xbf16>
    %169 = vector.shape_cast %168 : vector<1x1x32x32xbf16> to vector<32x32xbf16>
    %cst_53 = arith.constant dense<0.000000e+00> : vector<4x32xf32>
    %170 = tpu.matmul %6, %169, %cst_53 {dimension_numbers = #tpu.dot_dimension_numbers<[1], [0], [0], [1], [0, 0, 1, 1], [], []>} : vector<4x32xbf16>, vector<32x32xbf16>, vector<4x32xf32> -> vector<4x32xf32>
    %171 = vector.broadcast %15 : vector<1x32xf32> to vector<4x32xf32>
    %172 = arith.addf %170, %171 : vector<4x32xf32>
    %173 = vector.extract_strided_slice %162 {offsets = [0, 0], sizes = [8, 4], strides = [1, 1]} : vector<8x32xf32> to vector<8x4xf32>
    %174 = vector.extract_strided_slice %162 {offsets = [0, 4], sizes = [8, 4], strides = [1, 1]} : vector<8x32xf32> to vector<8x4xf32>
    %175 = vector.extract_strided_slice %162 {offsets = [0, 8], sizes = [8, 4], strides = [1, 1]} : vector<8x32xf32> to vector<8x4xf32>
    %176 = vector.extract_strided_slice %162 {offsets = [0, 12], sizes = [8, 4], strides = [1, 1]} : vector<8x32xf32> to vector<8x4xf32>
    %177 = vector.extract_strided_slice %162 {offsets = [0, 16], sizes = [8, 4], strides = [1, 1]} : vector<8x32xf32> to vector<8x4xf32>
    %178 = vector.extract_strided_slice %162 {offsets = [0, 20], sizes = [8, 4], strides = [1, 1]} : vector<8x32xf32> to vector<8x4xf32>
    %179 = vector.extract_strided_slice %162 {offsets = [0, 24], sizes = [8, 4], strides = [1, 1]} : vector<8x32xf32> to vector<8x4xf32>
    %180 = vector.extract_strided_slice %162 {offsets = [0, 28], sizes = [8, 4], strides = [1, 1]} : vector<8x32xf32> to vector<8x4xf32>
    %181 = vector.shape_cast %173 : vector<8x4xf32> to vector<1x8x4xf32>
    %182 = vector.shape_cast %174 : vector<8x4xf32> to vector<1x8x4xf32>
    %183 = vector.shape_cast %175 : vector<8x4xf32> to vector<1x8x4xf32>
    %184 = vector.shape_cast %176 : vector<8x4xf32> to vector<1x8x4xf32>
    %185 = vector.shape_cast %177 : vector<8x4xf32> to vector<1x8x4xf32>
    %186 = vector.shape_cast %178 : vector<8x4xf32> to vector<1x8x4xf32>
    %187 = vector.shape_cast %179 : vector<8x4xf32> to vector<1x8x4xf32>
    %188 = vector.shape_cast %180 : vector<8x4xf32> to vector<1x8x4xf32>
    %189 = tpu.concatenate %181, %182, %183, %184, %185, %186, %187, %188 in 0 : vector<1x8x4xf32>, vector<1x8x4xf32>, vector<1x8x4xf32>, vector<1x8x4xf32>, vector<1x8x4xf32>, vector<1x8x4xf32>, vector<1x8x4xf32>, vector<1x8x4xf32> -> vector<8x8x4xf32>
    %190 = arith.truncf %189 : vector<8x8x4xf32> to vector<8x8x4xbf16>
    %191 = vector.extract_strided_slice %167 {offsets = [0, 0], sizes = [4, 4], strides = [1, 1]} : vector<4x32xf32> to vector<4x4xf32>
    %192 = vector.extract_strided_slice %167 {offsets = [0, 4], sizes = [4, 4], strides = [1, 1]} : vector<4x32xf32> to vector<4x4xf32>
    %193 = vector.extract_strided_slice %167 {offsets = [0, 8], sizes = [4, 4], strides = [1, 1]} : vector<4x32xf32> to vector<4x4xf32>
    %194 = vector.extract_strided_slice %167 {offsets = [0, 12], sizes = [4, 4], strides = [1, 1]} : vector<4x32xf32> to vector<4x4xf32>
    %195 = vector.extract_strided_slice %167 {offsets = [0, 16], sizes = [4, 4], strides = [1, 1]} : vector<4x32xf32> to vector<4x4xf32>
    %196 = vector.extract_strided_slice %167 {offsets = [0, 20], sizes = [4, 4], strides = [1, 1]} : vector<4x32xf32> to vector<4x4xf32>
    %197 = vector.extract_strided_slice %167 {offsets = [0, 24], sizes = [4, 4], strides = [1, 1]} : vector<4x32xf32> to vector<4x4xf32>
    %198 = vector.extract_strided_slice %167 {offsets = [0, 28], sizes = [4, 4], strides = [1, 1]} : vector<4x32xf32> to vector<4x4xf32>
    %199 = vector.shape_cast %191 : vector<4x4xf32> to vector<1x4x4xf32>
    %200 = vector.shape_cast %192 : vector<4x4xf32> to vector<1x4x4xf32>
    %201 = vector.shape_cast %193 : vector<4x4xf32> to vector<1x4x4xf32>
    %202 = vector.shape_cast %194 : vector<4x4xf32> to vector<1x4x4xf32>
    %203 = vector.shape_cast %195 : vector<4x4xf32> to vector<1x4x4xf32>
    %204 = vector.shape_cast %196 : vector<4x4xf32> to vector<1x4x4xf32>
    %205 = vector.shape_cast %197 : vector<4x4xf32> to vector<1x4x4xf32>
    %206 = vector.shape_cast %198 : vector<4x4xf32> to vector<1x4x4xf32>
    %207 = tpu.concatenate %199, %200, %201, %202, %203, %204, %205, %206 in 0 : vector<1x4x4xf32>, vector<1x4x4xf32>, vector<1x4x4xf32>, vector<1x4x4xf32>, vector<1x4x4xf32>, vector<1x4x4xf32>, vector<1x4x4xf32>, vector<1x4x4xf32> -> vector<8x4x4xf32>
    %208 = arith.truncf %207 : vector<8x4x4xf32> to vector<8x4x4xbf16>
    %209 = vector.extract_strided_slice %172 {offsets = [0, 0], sizes = [4, 4], strides = [1, 1]} : vector<4x32xf32> to vector<4x4xf32>
    %210 = vector.extract_strided_slice %172 {offsets = [0, 4], sizes = [4, 4], strides = [1, 1]} : vector<4x32xf32> to vector<4x4xf32>
    %211 = vector.extract_strided_slice %172 {offsets = [0, 8], sizes = [4, 4], strides = [1, 1]} : vector<4x32xf32> to vector<4x4xf32>
    %212 = vector.extract_strided_slice %172 {offsets = [0, 12], sizes = [4, 4], strides = [1, 1]} : vector<4x32xf32> to vector<4x4xf32>
    %213 = vector.extract_strided_slice %172 {offsets = [0, 16], sizes = [4, 4], strides = [1, 1]} : vector<4x32xf32> to vector<4x4xf32>
    %214 = vector.extract_strided_slice %172 {offsets = [0, 20], sizes = [4, 4], strides = [1, 1]} : vector<4x32xf32> to vector<4x4xf32>
    %215 = vector.extract_strided_slice %172 {offsets = [0, 24], sizes = [4, 4], strides = [1, 1]} : vector<4x32xf32> to vector<4x4xf32>
    %216 = vector.extract_strided_slice %172 {offsets = [0, 28], sizes = [4, 4], strides = [1, 1]} : vector<4x32xf32> to vector<4x4xf32>
    %217 = vector.shape_cast %209 : vector<4x4xf32> to vector<1x4x4xf32>
    %218 = vector.shape_cast %210 : vector<4x4xf32> to vector<1x4x4xf32>
    %219 = vector.shape_cast %211 : vector<4x4xf32> to vector<1x4x4xf32>
    %220 = vector.shape_cast %212 : vector<4x4xf32> to vector<1x4x4xf32>
    %221 = vector.shape_cast %213 : vector<4x4xf32> to vector<1x4x4xf32>
    %222 = vector.shape_cast %214 : vector<4x4xf32> to vector<1x4x4xf32>
    %223 = vector.shape_cast %215 : vector<4x4xf32> to vector<1x4x4xf32>
    %224 = vector.shape_cast %216 : vector<4x4xf32> to vector<1x4x4xf32>
    %225 = tpu.concatenate %217, %218, %219, %220, %221, %222, %223, %224 in 0 : vector<1x4x4xf32>, vector<1x4x4xf32>, vector<1x4x4xf32>, vector<1x4x4xf32>, vector<1x4x4xf32>, vector<1x4x4xf32>, vector<1x4x4xf32>, vector<1x4x4xf32> -> vector<8x4x4xf32>
    %226 = arith.truncf %225 : vector<8x4x4xf32> to vector<8x4x4xbf16>
    "tpu.trace_start"() <{level = 10 : i32, message = "hqd,hkd->hqk"}> : () -> ()
    %cst_54 = arith.constant dense<0.000000e+00> : vector<8x8x4xf32>
    %227 = tpu.matmul %190, %208, %cst_54 {dimension_numbers = #tpu.dot_dimension_numbers<[2], [2], [1], [1], [0, 0, 0, 1, 1, 1], [0], [0]>} : vector<8x8x4xbf16>, vector<8x4x4xbf16>, vector<8x8x4xf32> -> vector<8x8x4xf32>
    "tpu.trace_stop"() : () -> ()
    %cst_55 = arith.constant dense<0xFF800000> : vector<8x8xf32>
    %228 = vector.multi_reduction <maximumf>, %227, %cst_55 [2] : vector<8x8x4xf32> to vector<8x8xf32>
    %229 = vector.shape_cast %228 : vector<8x8xf32> to vector<8x8x1xf32>
    %230 = vector.broadcast %229 : vector<8x8x1xf32> to vector<8x8x4xf32>
    %231 = arith.subf %227, %230 : vector<8x8x4xf32>
    %232 = math.exp %231 : vector<8x8x4xf32>
    %cst_56 = arith.constant dense<0.000000e+00> : vector<8x8xf32>
    %233 = vector.multi_reduction <add>, %232, %cst_56 [2] : vector<8x8x4xf32> to vector<8x8xf32>
    %234 = vector.shape_cast %233 : vector<8x8xf32> to vector<8x8x1xf32>
    %235 = tpu.reciprocal %234 {approx = true} : vector<8x8x1xf32> -> vector<8x8x1xf32>
    %236 = vector.broadcast %235 : vector<8x8x1xf32> to vector<8x8x4xf32>
    %237 = arith.mulf %232, %236 : vector<8x8x4xf32>
    %238 = arith.truncf %237 : vector<8x8x4xf32> to vector<8x8x4xbf16>
    "tpu.trace_start"() <{level = 10 : i32, message = "hqk,hkd->hqd"}> : () -> ()
    %cst_57 = arith.constant dense<0.000000e+00> : vector<8x8x4xf32>
    %239 = tpu.matmul %238, %226, %cst_57 {dimension_numbers = #tpu.dot_dimension_numbers<[2], [1], [1], [2], [0, 0, 0, 1, 1, 2], [0], [0]>} : vector<8x8x4xbf16>, vector<8x4x4xbf16>, vector<8x8x4xf32> -> vector<8x8x4xf32>
    "tpu.trace_stop"() : () -> ()
    %240 = vector.extract_strided_slice %239 {offsets = [0, 0, 0], sizes = [1, 8, 4], strides = [1, 1, 1]} : vector<8x8x4xf32> to vector<1x8x4xf32>
    %241 = vector.shape_cast %240 : vector<1x8x4xf32> to vector<8x4xf32>
    %242 = vector.extract_strided_slice %239 {offsets = [1, 0, 0], sizes = [1, 8, 4], strides = [1, 1, 1]} : vector<8x8x4xf32> to vector<1x8x4xf32>
    %243 = vector.shape_cast %242 : vector<1x8x4xf32> to vector<8x4xf32>
    %244 = vector.extract_strided_slice %239 {offsets = [2, 0, 0], sizes = [1, 8, 4], strides = [1, 1, 1]} : vector<8x8x4xf32> to vector<1x8x4xf32>
    %245 = vector.shape_cast %244 : vector<1x8x4xf32> to vector<8x4xf32>
    %246 = vector.extract_strided_slice %239 {offsets = [3, 0, 0], sizes = [1, 8, 4], strides = [1, 1, 1]} : vector<8x8x4xf32> to vector<1x8x4xf32>
    %247 = vector.shape_cast %246 : vector<1x8x4xf32> to vector<8x4xf32>
    %248 = vector.extract_strided_slice %239 {offsets = [4, 0, 0], sizes = [1, 8, 4], strides = [1, 1, 1]} : vector<8x8x4xf32> to vector<1x8x4xf32>
    %249 = vector.shape_cast %248 : vector<1x8x4xf32> to vector<8x4xf32>
    %250 = vector.extract_strided_slice %239 {offsets = [5, 0, 0], sizes = [1, 8, 4], strides = [1, 1, 1]} : vector<8x8x4xf32> to vector<1x8x4xf32>
    %251 = vector.shape_cast %250 : vector<1x8x4xf32> to vector<8x4xf32>
    %252 = vector.extract_strided_slice %239 {offsets = [6, 0, 0], sizes = [1, 8, 4], strides = [1, 1, 1]} : vector<8x8x4xf32> to vector<1x8x4xf32>
    %253 = vector.shape_cast %252 : vector<1x8x4xf32> to vector<8x4xf32>
    %254 = vector.extract_strided_slice %239 {offsets = [7, 0, 0], sizes = [1, 8, 4], strides = [1, 1, 1]} : vector<8x8x4xf32> to vector<1x8x4xf32>
    %255 = vector.shape_cast %254 : vector<1x8x4xf32> to vector<8x4xf32>
    %256 = tpu.concatenate %241, %243, %245, %247, %249, %251, %253, %255 in 1 : vector<8x4xf32>, vector<8x4xf32>, vector<8x4xf32>, vector<8x4xf32>, vector<8x4xf32>, vector<8x4xf32>, vector<8x4xf32>, vector<8x4xf32> -> vector<8x32xf32>
    %257 = arith.truncf %256 : vector<8x32xf32> to vector<8x32xbf16>
    %c0_58 = arith.constant 0 : index
    %c3_59 = arith.constant 3 : index
    %c0_60 = arith.constant 0 : index
    %c0_61 = arith.constant 0 : index
    %258 = vector.load %arg5[%c0_58, %c3_59, %c0_60, %c0_61] : memref<1x4x32x32xbf16, #tpu.memory_space<vmem>>, vector<1x1x32x32xbf16>
    %259 = vector.shape_cast %258 : vector<1x1x32x32xbf16> to vector<32x32xbf16>
    %cst_62 = arith.constant dense<0.000000e+00> : vector<8x32xf32>
    %260 = tpu.matmul %257, %259, %cst_62 {dimension_numbers = #tpu.dot_dimension_numbers<[1], [0], [0], [1], [0, 0, 1, 1], [], []>} : vector<8x32xbf16>, vector<32x32xbf16>, vector<8x32xf32> -> vector<8x32xf32>
    %261 = vector.broadcast %16 : vector<1x32xf32> to vector<8x32xf32>
    %262 = arith.addf %260, %261 : vector<8x32xf32>
    %263 = arith.addf %156, %262 : vector<8x32xf32>
    %cst_63 = arith.constant dense<0.000000e+00> : vector<8xf32>
    %264 = vector.multi_reduction <add>, %263, %cst_63 [1] : vector<8x32xf32> to vector<8xf32>
    %265 = vector.shape_cast %264 : vector<8xf32> to vector<8x1xf32>
    %cst_64 = arith.constant 3.200000e+01 : f32
    %266 = vector.broadcast %cst_64 : f32 to vector<8x1xf32>
    %267 = arith.divf %265, %266 : vector<8x1xf32>
    %268 = arith.mulf %263, %263 : vector<8x32xf32>
    %cst_65 = arith.constant dense<0.000000e+00> : vector<8xf32>
    %269 = vector.multi_reduction <add>, %268, %cst_65 [1] : vector<8x32xf32> to vector<8xf32>
    %270 = vector.shape_cast %269 : vector<8xf32> to vector<8x1xf32>
    %cst_66 = arith.constant 3.200000e+01 : f32
    %271 = vector.broadcast %cst_66 : f32 to vector<8x1xf32>
    %272 = arith.divf %270, %271 : vector<8x1xf32>
    %273 = arith.mulf %267, %267 : vector<8x1xf32>
    %274 = arith.subf %272, %273 : vector<8x1xf32>
    %275 = vector.broadcast %267 : vector<8x1xf32> to vector<8x32xf32>
    %276 = arith.subf %263, %275 : vector<8x32xf32>
    %cst_67 = arith.constant 9.99999974E-6 : f32
    %277 = vector.broadcast %cst_67 : f32 to vector<8x1xf32>
    %278 = arith.addf %274, %277 : vector<8x1xf32>
    %279 = math.rsqrt %278 : vector<8x1xf32>
    %280 = vector.broadcast %279 : vector<8x1xf32> to vector<8x32xf32>
    %281 = arith.mulf %276, %280 : vector<8x32xf32>
    %282 = vector.broadcast %24 : vector<1x32xf32> to vector<8x32xf32>
    %283 = arith.mulf %281, %282 : vector<8x32xf32>
    %284 = vector.broadcast %25 : vector<1x32xf32> to vector<8x32xf32>
    %285 = arith.addf %283, %284 : vector<8x32xf32>
    %286 = arith.truncf %285 : vector<8x32xf32> to vector<8x32xbf16>
    %c0_68 = arith.constant 0 : index
    %c0_69 = arith.constant 0 : index
    %c0_70 = arith.constant 0 : index
    %287 = vector.load %arg6[%c0_68, %c0_69, %c0_70] : memref<1x32x64xbf16, #tpu.memory_space<vmem>>, vector<1x32x64xbf16>
    %288 = vector.shape_cast %287 : vector<1x32x64xbf16> to vector<32x64xbf16>
    %cst_71 = arith.constant dense<0.000000e+00> : vector<8x64xf32>
    %289 = tpu.matmul %286, %288, %cst_71 {dimension_numbers = #tpu.dot_dimension_numbers<[1], [0], [0], [1], [0, 0, 1, 1], [], []>} : vector<8x32xbf16>, vector<32x64xbf16>, vector<8x64xf32> -> vector<8x64xf32>
    %290 = vector.broadcast %19 : vector<1x64xf32> to vector<8x64xf32>
    %291 = arith.addf %289, %290 : vector<8x64xf32>
    %cst_72 = arith.constant 0.000000e+00 : f32
    %292 = vector.broadcast %cst_72 : f32 to vector<8x64xf32>
    %293 = arith.maximumf %291, %292 : vector<8x64xf32>
    %294 = arith.truncf %293 : vector<8x64xf32> to vector<8x64xbf16>
    %c0_73 = arith.constant 0 : index
    %c0_74 = arith.constant 0 : index
    %c0_75 = arith.constant 0 : index
    %295 = vector.load %arg7[%c0_73, %c0_74, %c0_75] : memref<1x64x32xbf16, #tpu.memory_space<vmem>>, vector<1x64x32xbf16>
    %296 = vector.shape_cast %295 : vector<1x64x32xbf16> to vector<64x32xbf16>
    %cst_76 = arith.constant dense<0.000000e+00> : vector<8x32xf32>
    %297 = tpu.matmul %294, %296, %cst_76 {dimension_numbers = #tpu.dot_dimension_numbers<[1], [0], [0], [1], [0, 0, 1, 1], [], []>} : vector<8x64xbf16>, vector<64x32xbf16>, vector<8x32xf32> -> vector<8x32xf32>
    %298 = vector.broadcast %17 : vector<1x32xf32> to vector<8x32xf32>
    %299 = arith.addf %297, %298 : vector<8x32xf32>
    %300 = arith.addf %285, %299 : vector<8x32xf32>
    %cst_77 = arith.constant dense<0.000000e+00> : vector<8xf32>
    %301 = vector.multi_reduction <add>, %300, %cst_77 [1] : vector<8x32xf32> to vector<8xf32>
    %302 = vector.shape_cast %301 : vector<8xf32> to vector<8x1xf32>
    %cst_78 = arith.constant 3.200000e+01 : f32
    %303 = vector.broadcast %cst_78 : f32 to vector<8x1xf32>
    %304 = arith.divf %302, %303 : vector<8x1xf32>
    %305 = arith.mulf %300, %300 : vector<8x32xf32>
    %cst_79 = arith.constant dense<0.000000e+00> : vector<8xf32>
    %306 = vector.multi_reduction <add>, %305, %cst_79 [1] : vector<8x32xf32> to vector<8xf32>
    %307 = vector.shape_cast %306 : vector<8xf32> to vector<8x1xf32>
    %cst_80 = arith.constant 3.200000e+01 : f32
    %308 = vector.broadcast %cst_80 : f32 to vector<8x1xf32>
    %309 = arith.divf %307, %308 : vector<8x1xf32>
    %310 = arith.mulf %304, %304 : vector<8x1xf32>
    %311 = arith.subf %309, %310 : vector<8x1xf32>
    %312 = vector.broadcast %304 : vector<8x1xf32> to vector<8x32xf32>
    %313 = arith.subf %300, %312 : vector<8x32xf32>
    %cst_81 = arith.constant 9.99999974E-6 : f32
    %314 = vector.broadcast %cst_81 : f32 to vector<8x1xf32>
    %315 = arith.addf %311, %314 : vector<8x1xf32>
    %316 = math.rsqrt %315 : vector<8x1xf32>
    %317 = vector.broadcast %316 : vector<8x1xf32> to vector<8x32xf32>
    %318 = arith.mulf %313, %317 : vector<8x32xf32>
    %319 = vector.broadcast %26 : vector<1x32xf32> to vector<8x32xf32>
    %320 = arith.mulf %318, %319 : vector<8x32xf32>
    %321 = vector.broadcast %27 : vector<1x32xf32> to vector<8x32xf32>
    %322 = arith.addf %320, %321 : vector<8x32xf32>
    %c0_82 = arith.constant 0 : index
    %c0_83 = arith.constant 0 : index
    %323 = vector.load %arg12[%c0_82, %c0_83] : memref<8x32xf32, #tpu.memory_space<vmem>>, vector<8x32xf32>
    tpu.vector_store %arg12[%c0_82, %c0_83], %322 {strides = array<i32>} : memref<8x32xf32, #tpu.memory_space<vmem>>, vector<8x32xf32>,
    %c1_i32 = arith.constant 1 : i32
    %324 = arith.cmpi eq, %arg1, %c1_i32 : i32
    %325 = arith.extui %324 : i1 to i32
    %c0_i32_84 = arith.constant 0 : i32
    %326 = arith.cmpi ne, %325, %c0_i32_84 : i32
    scf.if %326 {
      %327 = vector.shape_cast %322 : vector<8x32xf32> to vector<1x8x32xf32>
      %c0_85 = arith.constant 0 : index
      %c0_86 = arith.constant 0 : index
      %c0_87 = arith.constant 0 : index
      %328 = vector.load %arg11[%c0_85, %c0_86, %c0_87] : memref<1x8x32xf32, #tpu.memory_space<vmem>>, vector<1x8x32xf32>
      tpu.vector_store %arg11[%c0_85, %c0_86, %c0_87], %327 {strides = array<i32>} : memref<1x8x32xf32, #tpu.memory_space<vmem>>, vector<1x8x32xf32>,
    } else {
    }
    return
  }
  func.func @transform_0(%arg0: i32, %arg1: i32) -> (i32, i32, i32) {
    %c0_i32 = arith.constant 0 : i32
    %c0_i32_0 = arith.constant 0 : i32
    %c0_i32_1 = arith.constant 0 : i32
    return %arg0, %c0_i32, %c0_i32_0 : i32, i32, i32
  }
  func.func @transform_1(%arg0: i32, %arg1: i32) -> (i32, i32, i32) {
    %c0_i32 = arith.constant 0 : i32
    %c0_i32_0 = arith.constant 0 : i32
    %c0_i32_1 = arith.constant 0 : i32
    return %arg0, %c0_i32, %c0_i32_0 : i32, i32, i32
  }
  func.func @transform_2(%arg0: i32, %arg1: i32) -> (i32, i32, i32, i32) {
    %c0_i32 = arith.constant 0 : i32
    %c0_i32_0 = arith.constant 0 : i32
    %c0_i32_1 = arith.constant 0 : i32
    %c0_i32_2 = arith.constant 0 : i32
    return %arg1, %c0_i32, %c0_i32_0, %c0_i32_1 : i32, i32, i32, i32
  }
  func.func @transform_3(%arg0: i32, %arg1: i32) -> (i32, i32, i32, i32) {
    %c0_i32 = arith.constant 0 : i32
    %c0_i32_0 = arith.constant 0 : i32
    %c0_i32_1 = arith.constant 0 : i32
    %c0_i32_2 = arith.constant 0 : i32
    return %arg1, %c0_i32, %c0_i32_0, %c0_i32_1 : i32, i32, i32, i32
  }
  func.func @transform_4(%arg0: i32, %arg1: i32) -> (i32, i32, i32) {
    %c0_i32 = arith.constant 0 : i32
    %c0_i32_0 = arith.constant 0 : i32
    %c0_i32_1 = arith.constant 0 : i32
    return %arg1, %c0_i32, %c0_i32_0 : i32, i32, i32
  }
  func.func @transform_5(%arg0: i32, %arg1: i32) -> (i32, i32, i32) {
    %c0_i32 = arith.constant 0 : i32
    %c0_i32_0 = arith.constant 0 : i32
    %c0_i32_1 = arith.constant 0 : i32
    return %arg1, %c0_i32, %c0_i32_0 : i32, i32, i32
  }
  func.func @transform_6(%arg0: i32, %arg1: i32) -> (i32, i32, i32) {
    %c0_i32 = arith.constant 0 : i32
    %c0_i32_0 = arith.constant 0 : i32
    %c0_i32_1 = arith.constant 0 : i32
    return %arg1, %c0_i32, %c0_i32_0 : i32, i32, i32
  }
  func.func @transform_7(%arg0: i32, %arg1: i32) -> (i32, i32, i32) {
    %c0_i32 = arith.constant 0 : i32
    %c0_i32_0 = arith.constant 0 : i32
    %c0_i32_1 = arith.constant 0 : i32
    return %arg1, %c0_i32, %c0_i32_0 : i32, i32, i32
  }
  func.func @transform_8(%arg0: i32, %arg1: i32) -> (i32, i32, i32) {
    %c0_i32 = arith.constant 0 : i32
    %c0_i32_0 = arith.constant 0 : i32
    %c0_i32_1 = arith.constant 0 : i32
    return %arg1, %c0_i32, %c0_i32_0 : i32, i32, i32
  }
  func.func @transform_9(%arg0: i32, %arg1: i32) -> (i32, i32, i32) {
    %c0_i32 = arith.constant 0 : i32
    %c0_i32_0 = arith.constant 0 : i32
    %c0_i32_1 = arith.constant 0 : i32
    return %arg0, %c0_i32, %c0_i32_0 : i32, i32, i32
  }
}

</mosaic_0001>

<llo_original>
// kernel: tpu_custom_call.1
$region0: #{tpu_custom_call.1}
  #allocation0 [shape = 'u32[]', space=smem, size = 0x4, offset = 0x4, fixed_abs, tag = 'smem constant byte address 0x4 - core index']
  #allocation1 [shape = 'u32[144,128]{1,0:T(1,128)}', space=vmem, size = 0x12000, scoped, tag = 'internal scratch']
  #allocation2 [shape = 'f32[8,32]{1,0:T(8,128)}', space=vmem, size = 0x1000, scoped, tag = 'scratch operand']
  %s0 = inlined_call_operand.hbm [shape: f32[2,8,32], index: 0, kind: input, shape index: {}]
  %s1 = inlined_call_operand.hbm [shape: f32[2,4,32], index: 1, kind: input, shape index: {}]
  %s2 = inlined_call_operand.vmem [shape: bf16[2,4,32,32], index: 2, kind: input, shape index: {}]
  %s3 = inlined_call_operand.hbm [shape: bf16[2,4,32,32], index: 3, kind: input, shape index: {}]
  %s4 = inlined_call_operand.hbm [shape: bf16[2,32,64], index: 4, kind: input, shape index: {}]
  %s5 = inlined_call_operand.vmem [shape: bf16[2,64,32], index: 5, kind: input, shape index: {}]
  %s6 = inlined_call_operand.vmem [shape: f32[2,9,32], index: 6, kind: input, shape index: {}]
  %s7 = inlined_call_operand.vmem [shape: f32[2,1,64], index: 7, kind: input, shape index: {}]
  %s8 = inlined_call_operand.vmem [shape: f32[2,6,32], index: 8, kind: input, shape index: {}]
  %s9 = inlined_call_operand.hbm [shape: f32[2,8,32], index: 9, kind: output, shape index: {}]
  %s10 = sld [smem:[#allocation0]]
  $region93: #{tpu_custom_call.1} parent=0
    _
  %s12 = ssub.s32 1, %s10
  %s13 = scalar_select 0, %s12, %s10
  $region1: #{tpu_custom_call.1} parent=0
    #allocation3 [shape = 'u8[8192]{0}', space=vmem, size = 0x2000, scoped, tag = 'input window, operand 0']
    #allocation4 [shape = 's32[2]{0}', space=sflag, size = 0x8, scoped, tag = 'scoped memory for tpu_custom_call.1']
    #allocation5 [shape = 's32[2]{0}', space=sflag, size = 0x8, scoped, tag = 'scoped memory for tpu_custom_call.1']
    #allocation6 [shape = 'u8[4096]{0}', space=vmem, size = 0x1000, scoped, tag = 'input window, operand 1']
    #allocation7 [shape = 's32[2]{0}', space=sflag, size = 0x8, scoped, tag = 'scoped memory for tpu_custom_call.1']
    #allocation8 [shape = 'u8[65536]{0}', space=vmem, size = 0x10000, scoped, tag = 'input window, operand 3']
    #allocation9 [shape = 'u8[16384]{0}', space=vmem, size = 0x4000, scoped, tag = 'input window, operand 4']
    #allocation10 [shape = 's32[2]{0}', space=sflag, size = 0x8, scoped, tag = 'scoped memory for tpu_custom_call.1']
    #allocation11 [shape = 'u8[8192]{0}', space=vmem, size = 0x2000, scoped, tag = 'output window, operand 0']
    %14 = vsyncpa [#allocation4], 0
    %s15 = scalar_lea.sflag [#allocation4], 1
    %16 = vsyncpa %s15, 0
    %17 = vsyncpa [#allocation7], 0
    %s18 = scalar_lea.sflag [#allocation7], 1
    %19 = vsyncpa %s18, 0
    %20 = vsyncpa [#allocation10], 0
    %s21 = scalar_lea.sflag [#allocation10], 1
    %22 = vsyncpa %s21, 0
    %23 = vsyncpa [#allocation5], 0
    %s24 = scalar_lea.sflag [#allocation5], 1
    %25 = vsyncpa %s24, 0
    loop: start=0, step=1, limit=6
    $region2: #{tpu_custom_call.1} parent=1 // loop_pre_header
      _
    $region3: #{tpu_custom_call.1} parent=1 // loop_header
      %s27 = sphi 0, %s31
      %p28 = scmp.ge.s32.totalorder %s27, 6
      %s34 = sphi 0, %s46
      %s35 = sphi 0, %s42
      %s36 = sphi 0, %s34
      %s37 = sphi 0, %s35
      %s38 = sphi 0, %s36
      %s39 = sphi 0, %s37
      %s49 = sphi 0, %s51
      %s52 = sphi 0, %s49
      %s53 = sphi 0, %s52
      %s69 = sphi 0, %s53
      %s75 = sphi 0, %s77
      %s78 = sphi 0, %s75
      %s79 = sphi 0, %s78
      %s95 = sphi 0, %s79
      %s101 = sphi 0, %s103
      %s104 = sphi 0, %s101
      %s105 = sphi 0, %s104
      %s121 = sphi 0, %s105
      %s127 = sphi 0, %s129
      %s130 = sphi 0, %s127
      %s131 = sphi 0, %s130
      %s147 = sphi 0, %s131
      %s153 = sphi 0, %s155
      %s156 = sphi 0, %s153
      %s157 = sphi 0, %s156
      %s173 = sphi 0, %s157
      %s179 = sphi 0, %s181
      %s182 = sphi 0, %s179
      %s183 = sphi 0, %s182
      %s199 = sphi 0, %s183
      %s205 = sphi 0, %s207
      %s208 = sphi 0, %s205
      %s209 = sphi 0, %s208
      %s225 = sphi 0, %s209
      %s231 = sphi 0, %s233
      %s234 = sphi 0, %s231
      %s235 = sphi 0, %s234
      %s251 = sphi 0, %s235
      %s257 = sphi 0, %s259
      %s260 = sphi 0, %s257
      %s261 = sphi 0, %s260
      %s277 = sphi 0, %s261
      %s283 = sphi 0, %s285
      %s286 = sphi 0, %s283
      %s287 = sphi 0, %s286
      %s303 = sphi 0, %s287
    $region4: #{tpu_custom_call.1} parent=1 // loop_header_branch
      %30 = sbr.rel (%p28) target = $region8
    $region5: #{tpu_custom_call.1} parent=1 // loop_body
      %s32 = ssub.s32 %s27, 1
      %s33 = ssub.s32 %s27, 2
      %s40 = sadd.s32 1, %s35
      %p41 = scmp.ge.s32.totalorder %s40, 2
      %s42 = scalar_select %p41, 0, %s40
      %s43 = sadd.s32 1, %s34
      %s44 = scalar_select %p41, %s43, %s34
      %p45 = scmp.ge.s32.totalorder %s44, 2
      %s46 = scalar_select %p45, 0, %s44
      %s47 = ssub.s32 %s34, %s46
      %p48 = scmp.eq.s32.totalorder %s47, 0
      %s50 = sadd.s32 %s49, 1
      %s51 = scalar_select %p48, %s49, %s50
      %p54 = pneg %p48
      %p55 = scmp.eq.s32.totalorder %s27, 3
      %p56 = por %p54, %p55
      %p57 = scmp.ne.s32.totalorder %s49, %s52
      %p58 = scmp.eq.s32.totalorder %s27, 0
      %p59 = por %p57, %p58
      %p60 = scmp.ne.s32.totalorder %s49, %s52
      %p61 = scmp.eq.s32.totalorder %s32, 3
      %p62 = por %p60, %p61
      %p63 = scmp.ne.s32.totalorder %s52, %s53
      %p64 = scmp.eq.s32.totalorder %s32, 0
      %p65 = por %p63, %p64
      %p66 = scmp.ne.s32.totalorder %s52, %s53
      %p67 = scmp.eq.s32.totalorder %s33, 3
      %p68 = por %p66, %p67
      %p70 = scmp.ne.s32.totalorder %s53, %s69
      %p71 = scmp.eq.s32.totalorder %s33, 0
      %p72 = por %p70, %p71
      %s73 = ssub.s32 %s34, %s46
      %p74 = scmp.eq.s32.totalorder %s73, 0
      %s76 = sadd.s32 %s75, 1
      %s77 = scalar_select %p74, %s75, %s76
      %p80 = pneg %p74
      %p81 = scmp.eq.s32.totalorder %s27, 3
      %p82 = por %p80, %p81
      %p83 = scmp.ne.s32.totalorder %s75, %s78
      %p84 = scmp.eq.s32.totalorder %s27, 0
      %p85 = por %p83, %p84
      %p86 = scmp.ne.s32.totalorder %s75, %s78
      %p87 = scmp.eq.s32.totalorder %s32, 3
      %p88 = por %p86, %p87
      %p89 = scmp.ne.s32.totalorder %s78, %s79
      %p90 = scmp.eq.s32.totalorder %s32, 0
      %p91 = por %p89, %p90
      %p92 = scmp.ne.s32.totalorder %s78, %s79
      %p93 = scmp.eq.s32.totalorder %s33, 3
      %p94 = por %p92, %p93
      %p96 = scmp.ne.s32.totalorder %s79, %s95
      %p97 = scmp.eq.s32.totalorder %s33, 0
      %p98 = por %p96, %p97
      %s99 = ssub.s32 %s35, %s42
      %p100 = scmp.eq.s32.totalorder %s99, 0
      %s102 = sadd.s32 %s101, 1
      %s103 = scalar_select %p100, %s101, %s102
      %p106 = pneg %p100
      %p107 = scmp.eq.s32.totalorder %s27, 3
      %p108 = por %p106, %p107
      %p109 = scmp.ne.s32.totalorder %s101, %s104
      %p110 = scmp.eq.s32.totalorder %s27, 0
      %p111 = por %p109, %p110
      %p112 = scmp.ne.s32.totalorder %s101, %s104
      %p113 = scmp.eq.s32.totalorder %s32, 3
      %p114 = por %p112, %p113
      %p115 = scmp.ne.s32.totalorder %s104, %s105
      %p116 = scmp.eq.s32.totalorder %s32, 0
      %p117 = por %p115, %p116
      %p118 = scmp.ne.s32.totalorder %s104, %s105
      %p119 = scmp.eq.s32.totalorder %s33, 3
      %p120 = por %p118, %p119
      %p122 = scmp.ne.s32.totalorder %s105, %s121
      %p123 = scmp.eq.s32.totalorder %s33, 0
      %p124 = por %p122, %p123
      %s125 = ssub.s32 %s35, %s42
      %p126 = scmp.eq.s32.totalorder %s125, 0
      %s128 = sadd.s32 %s127, 1
      %s129 = scalar_select %p126, %s127, %s128
      %p132 = pneg %p126
      %p133 = scmp.eq.s32.totalorder %s27, 3
      %p134 = por %p132, %p133
      %p135 = scmp.ne.s32.totalorder %s127, %s130
      %p136 = scmp.eq.s32.totalorder %s27, 0
      %p137 = por %p135, %p136
      %p138 = scmp.ne.s32.totalorder %s127, %s130
      %p139 = scmp.eq.s32.totalorder %s32, 3
      %p140 = por %p138, %p139
      %p141 = scmp.ne.s32.totalorder %s130, %s131
      %p142 = scmp.eq.s32.totalorder %s32, 0
      %p143 = por %p141, %p142
      %p144 = scmp.ne.s32.totalorder %s130, %s131
      %p145 = scmp.eq.s32.totalorder %s33, 3
      %p146 = por %p144, %p145
      %p148 = scmp.ne.s32.totalorder %s131, %s147
      %p149 = scmp.eq.s32.totalorder %s33, 0
      %p150 = por %p148, %p149
      %s151 = ssub.s32 %s35, %s42
      %p152 = scmp.eq.s32.totalorder %s151, 0
      %s154 = sadd.s32 %s153, 1
      %s155 = scalar_select %p152, %s153, %s154
      %p158 = pneg %p152
      %p159 = scmp.eq.s32.totalorder %s27, 3
      %p160 = por %p158, %p159
      %p161 = scmp.ne.s32.totalorder %s153, %s156
      %p162 = scmp.eq.s32.totalorder %s27, 0
      %p163 = por %p161, %p162
      %p164 = scmp.ne.s32.totalorder %s153, %s156
      %p165 = scmp.eq.s32.totalorder %s32, 3
      %p166 = por %p164, %p165
      %p167 = scmp.ne.s32.totalorder %s156, %s157
      %p168 = scmp.eq.s32.totalorder %s32, 0
      %p169 = por %p167, %p168
      %p170 = scmp.ne.s32.totalorder %s156, %s157
      %p171 = scmp.eq.s32.totalorder %s33, 3
      %p172 = por %p170, %p171
      %p174 = scmp.ne.s32.totalorder %s157, %s173
      %p175 = scmp.eq.s32.totalorder %s33, 0
      %p176 = por %p174, %p175
      %s177 = ssub.s32 %s35, %s42
      %p178 = scmp.eq.s32.totalorder %s177, 0
      %s180 = sadd.s32 %s179, 1
      %s181 = scalar_select %p178, %s179, %s180
      %p184 = pneg %p178
      %p185 = scmp.eq.s32.totalorder %s27, 3
      %p186 = por %p184, %p185
      %p187 = scmp.ne.s32.totalorder %s179, %s182
      %p188 = scmp.eq.s32.totalorder %s27, 0
      %p189 = por %p187, %p188
      %p190 = scmp.ne.s32.totalorder %s179, %s182
      %p191 = scmp.eq.s32.totalorder %s32, 3
      %p192 = por %p190, %p191
      %p193 = scmp.ne.s32.totalorder %s182, %s183
      %p194 = scmp.eq.s32.totalorder %s32, 0
      %p195 = por %p193, %p194
      %p196 = scmp.ne.s32.totalorder %s182, %s183
      %p197 = scmp.eq.s32.totalorder %s33, 3
      %p198 = por %p196, %p197
      %p200 = scmp.ne.s32.totalorder %s183, %s199
      %p201 = scmp.eq.s32.totalorder %s33, 0
      %p202 = por %p200, %p201
      %s203 = ssub.s32 %s35, %s42
      %p204 = scmp.eq.s32.totalorder %s203, 0
      %s206 = sadd.s32 %s205, 1
      %s207 = scalar_select %p204, %s205, %s206
      %p210 = pneg %p204
      %p211 = scmp.eq.s32.totalorder %s27, 3
      %p212 = por %p210, %p211
      %p213 = scmp.ne.s32.totalorder %s205, %s208
      %p214 = scmp.eq.s32.totalorder %s27, 0
      %p215 = por %p213, %p214
      %p216 = scmp.ne.s32.totalorder %s205, %s208
      %p217 = scmp.eq.s32.totalorder %s32, 3
      %p218 = por %p216, %p217
      %p219 = scmp.ne.s32.totalorder %s208, %s209
      %p220 = scmp.eq.s32.totalorder %s32, 0
      %p221 = por %p219, %p220
      %p222 = scmp.ne.s32.totalorder %s208, %s209
      %p223 = scmp.eq.s32.totalorder %s33, 3
      %p224 = por %p222, %p223
      %p226 = scmp.ne.s32.totalorder %s209, %s225
      %p227 = scmp.eq.s32.totalorder %s33, 0
      %p228 = por %p226, %p227
      %s229 = ssub.s32 %s35, %s42
      %p230 = scmp.eq.s32.totalorder %s229, 0
      %s232 = sadd.s32 %s231, 1
      %s233 = scalar_select %p230, %s231, %s232
      %p236 = pneg %p230
      %p237 = scmp.eq.s32.totalorder %s27, 3
      %p238 = por %p236, %p237
      %p239 = scmp.ne.s32.totalorder %s231, %s234
      %p240 = scmp.eq.s32.totalorder %s27, 0
      %p241 = por %p239, %p240
      %p242 = scmp.ne.s32.totalorder %s231, %s234
      %p243 = scmp.eq.s32.totalorder %s32, 3
      %p244 = por %p242, %p243
      %p245 = scmp.ne.s32.totalorder %s234, %s235
      %p246 = scmp.eq.s32.totalorder %s32, 0
      %p247 = por %p245, %p246
      %p248 = scmp.ne.s32.totalorder %s234, %s235
      %p249 = scmp.eq.s32.totalorder %s33, 3
      %p250 = por %p248, %p249
      %p252 = scmp.ne.s32.totalorder %s235, %s251
      %p253 = scmp.eq.s32.totalorder %s33, 0
      %p254 = por %p252, %p253
      %s255 = ssub.s32 %s35, %s42
      %p256 = scmp.eq.s32.totalorder %s255, 0
      %s258 = sadd.s32 %s257, 1
      %s259 = scalar_select %p256, %s257, %s258
      %p262 = pneg %p256
      %p263 = scmp.eq.s32.totalorder %s27, 3
      %p264 = por %p262, %p263
      %p265 = scmp.ne.s32.totalorder %s257, %s260
      %p266 = scmp.eq.s32.totalorder %s27, 0
      %p267 = por %p265, %p266
      %p268 = scmp.ne.s32.totalorder %s257, %s260
      %p269 = scmp.eq.s32.totalorder %s32, 3
      %p270 = por %p268, %p269
      %p271 = scmp.ne.s32.totalorder %s260, %s261
      %p272 = scmp.eq.s32.totalorder %s32, 0
      %p273 = por %p271, %p272
      %p274 = scmp.ne.s32.totalorder %s260, %s261
      %p275 = scmp.eq.s32.totalorder %s33, 3
      %p276 = por %p274, %p275
      %p278 = scmp.ne.s32.totalorder %s261, %s277
      %p279 = scmp.eq.s32.totalorder %s33, 0
      %p280 = por %p278, %p279
      %s281 = ssub.s32 %s34, %s46
      %p282 = scmp.eq.s32.totalorder %s281, 0
      %s284 = sadd.s32 %s283, 1
      %s285 = scalar_select %p282, %s283, %s284
      %p288 = pneg %p282
      %p289 = scmp.eq.s32.totalorder %s27, 3
      %p290 = por %p288, %p289
      %p291 = scmp.ne.s32.totalorder %s283, %s286
      %p292 = scmp.eq.s32.totalorder %s27, 0
      %p293 = por %p291, %p292
      %p294 = scmp.ne.s32.totalorder %s283, %s286
      %p295 = scmp.eq.s32.totalorder %s32, 3
      %p296 = por %p294, %p295
      %p297 = scmp.ne.s32.totalorder %s286, %s287
      %p298 = scmp.eq.s32.totalorder %s32, 0
      %p299 = por %p297, %p298
      %p300 = scmp.ne.s32.totalorder %s286, %s287
      %p301 = scmp.eq.s32.totalorder %s33, 3
      %p302 = por %p300, %p301
      %p304 = scmp.ne.s32.totalorder %s287, %s303
      %p305 = scmp.eq.s32.totalorder %s33, 0
      %p306 = por %p304, %p305
      %p307 = scmp.le.s32.totalorder 1, %s27
      %p308 = scmp.lt.s32.totalorder %s27, 5
      %p309 = pnand %p307, %p308
      %p310 = pneg %p309
      // Predicated region
      $region9: #{tpu_custom_call.1} parent=5 // pred_check
        _
      $region10: #{tpu_custom_call.1} parent=5 // pred_check_branch
        %312 = sbr.rel (%p309) target = $region12
      $region11: #{tpu_custom_call.1} parent=5 // pred_region
        %s313 = ssub.s32 %s27, 1
      $region12: #{tpu_custom_call.1} parent=5 // pred_fallthru
        _
      %p314 = scmp.lt.s32.totalorder %s27, 4
      // Predicated region
      $region13: #{tpu_custom_call.1} parent=5 // pred_check
        %p315 = pneg %p314
      $region14: #{tpu_custom_call.1} parent=5 // pred_check_branch
        %317 = sbr.rel (%p315) target = $region16
      $region15: #{tpu_custom_call.1} parent=5 // pred_region
        // Predicated region
        $region17: #{tpu_custom_call.1} parent=15 // pred_check
          %p318 = pneg %p59
        $region18: #{tpu_custom_call.1} parent=15 // pred_check_branch
          %320 = sbr.rel (%p318) target = $region20
        $region19: #{tpu_custom_call.1} parent=15 // pred_region
          %s321 = sand.u32 %s49, 1
          %s322 = scalar_lea.sflag [#allocation4], %s321
          %s323 = sand.u32 %s49, 1
          %s324 = smul.addr %s323, 8
          %s325 = scalar_lea.vmem [#allocation3], %s324
          %s327 = ssub.s32 128, 128
          %328 = vsyncadd %s322, %s327
          %s329 = smul.addr %s34, 128
          %s330 = scalar_lea.hbm %s0, %s329
          %s332 = sshll.u32 %s325, 4
          %s333 = int_to_ptr.vmem [resolvable:$true] %s332
          %335 = dma.hbm_to_vmem [thread:$0]  %s330, 128, %s333, %s322
        $region20: #{tpu_custom_call.1} parent=15 // pred_fallthru
          _
        // Predicated region
        $region21: #{tpu_custom_call.1} parent=15 // pred_check
          %p336 = pneg %p85
        $region22: #{tpu_custom_call.1} parent=15 // pred_check_branch
          %338 = sbr.rel (%p336) target = $region24
        $region23: #{tpu_custom_call.1} parent=15 // pred_region
          %s339 = sand.u32 %s27, 1
          %s340 = scalar_lea.sflag [#allocation7], %s339
          %s341 = sand.u32 %s75, 1
          %s342 = smul.addr %s341, 4
          %s343 = scalar_lea.vmem [#allocation6], %s342
          %s345 = ssub.s32 64, 64
          %346 = vsyncadd %s340, %s345
          %s347 = smul.addr %s34, 64
          %s348 = scalar_lea.hbm %s1, %s347
          %s350 = sshll.u32 %s343, 4
          %s351 = int_to_ptr.vmem [resolvable:$true] %s350
          %353 = dma.hbm_to_vmem [thread:$0]  %s348, 64, %s351, %s340
        $region24: #{tpu_custom_call.1} parent=15 // pred_fallthru
          _
        // Predicated region
        $region25: #{tpu_custom_call.1} parent=15 // pred_check
          %p354 = pneg %p111
        $region26: #{tpu_custom_call.1} parent=15 // pred_check_branch
          %356 = sbr.rel (%p354) target = $region28
        $region27: #{tpu_custom_call.1} parent=15 // pred_region
          %p357 = scmp.lt.s32.totalorder %s35, 1
          %s358 = scalar_select %p357, %s35, 1
          %s359 = smul.addr %s358, 16
          %s360 = smul.addr %s359, 4
          %s361 = scalar_lea.vmem %s2, %s360
        $region28: #{tpu_custom_call.1} parent=15 // pred_fallthru
          _
        // Predicated region
        $region29: #{tpu_custom_call.1} parent=15 // pred_check
          %p362 = pneg %p137
        $region30: #{tpu_custom_call.1} parent=15 // pred_check_branch
          %364 = sbr.rel (%p362) target = $region32
        $region31: #{tpu_custom_call.1} parent=15 // pred_region
          %s365 = sand.u32 %s27, 1
          %s366 = scalar_lea.sflag [#allocation7], %s365
          %s367 = sand.u32 %s127, 1
          %s368 = smul.addr %s367, 64
          %s369 = scalar_lea.vmem [#allocation8], %s368
          %s371 = ssub.s32 1024, 1024
          %372 = vsyncadd %s366, %s371
          %s373 = smul.addr %s35, 16
          %s374 = smul.addr %s373, 64
          %s375 = scalar_lea.hbm %s3, %s374
          %s376 = sshll.u32 %s369, 4
          %s377 = int_to_ptr.vmem [resolvable:$true] %s376
          %382 = dma.hbm_to_vmem [thread:$0]  %s375, 1024, %s377, %s366, 64, 64, 4
        $region32: #{tpu_custom_call.1} parent=15 // pred_fallthru
          _
        // Predicated region
        $region33: #{tpu_custom_call.1} parent=15 // pred_check
          %p383 = pneg %p163
        $region34: #{tpu_custom_call.1} parent=15 // pred_check_branch
          %385 = sbr.rel (%p383) target = $region36
        $region35: #{tpu_custom_call.1} parent=15 // pred_region
          %s386 = sand.u32 %s153, 1
          %s387 = scalar_lea.sflag [#allocation10], %s386
          %s388 = sand.u32 %s153, 1
          %s389 = smul.addr %s388, 16
          %s390 = scalar_lea.vmem [#allocation9], %s389
          %s392 = ssub.s32 256, 256
          %393 = vsyncadd %s387, %s392
          %s394 = smul.addr %s35, 4
          %s395 = smul.addr %s394, 64
          %s396 = scalar_lea.hbm %s4, %s395
          %s397 = sshll.u32 %s390, 4
          %s398 = int_to_ptr.vmem [resolvable:$true] %s397
          %403 = dma.hbm_to_vmem [thread:$0]  %s396, 256, %s398, %s387, 64, 64, 4
        $region36: #{tpu_custom_call.1} parent=15 // pred_fallthru
          _
        // Predicated region
        $region37: #{tpu_custom_call.1} parent=15 // pred_check
          %p404 = pneg %p189
        $region38: #{tpu_custom_call.1} parent=15 // pred_check_branch
          %406 = sbr.rel (%p404) target = $region40
        $region39: #{tpu_custom_call.1} parent=15 // pred_region
          %p407 = scmp.lt.s32.totalorder %s35, 1
          %s408 = scalar_select %p407, %s35, 1
          %s409 = smul.addr %s408, 8
          %s410 = smul.addr %s409, 4
          %s411 = scalar_lea.vmem %s5, %s410
        $region40: #{tpu_custom_call.1} parent=15 // pred_fallthru
          _
        // Predicated region
        $region41: #{tpu_custom_call.1} parent=15 // pred_check
          %p412 = pneg %p215
        $region42: #{tpu_custom_call.1} parent=15 // pred_check_branch
          %414 = sbr.rel (%p412) target = $region44
        $region43: #{tpu_custom_call.1} parent=15 // pred_region
          %p415 = scmp.lt.s32.totalorder %s35, 1
          %s416 = scalar_select %p415, %s35, 1
          %s417 = smul.addr %s416, 2
          %s418 = smul.addr %s417, 8
          %s419 = scalar_lea.vmem %s6, %s418
        $region44: #{tpu_custom_call.1} parent=15 // pred_fallthru
          _
        // Predicated region
        $region45: #{tpu_custom_call.1} parent=15 // pred_check
          %p420 = pneg %p241
        $region46: #{tpu_custom_call.1} parent=15 // pred_check_branch
          %422 = sbr.rel (%p420) target = $region48
        $region47: #{tpu_custom_call.1} parent=15 // pred_region
          %p423 = scmp.lt.s32.totalorder %s35, 1
          %s424 = scalar_select %p423, %s35, 1
          %s425 = scalar_lea.vmem %s7, %s424
        $region48: #{tpu_custom_call.1} parent=15 // pred_fallthru
          _
        // Predicated region
        $region49: #{tpu_custom_call.1} parent=15 // pred_check
          %p426 = pneg %p267
        $region50: #{tpu_custom_call.1} parent=15 // pred_check_branch
          %428 = sbr.rel (%p426) target = $region52
        $region51: #{tpu_custom_call.1} parent=15 // pred_region
          %p429 = scmp.lt.s32.totalorder %s35, 1
          %s430 = scalar_select %p429, %s35, 1
          %s431 = smul.addr %s430, 8
          %s432 = scalar_lea.vmem %s8, %s431
        $region52: #{tpu_custom_call.1} parent=15 // pred_fallthru
          _
      $region16: #{tpu_custom_call.1} parent=5 // pred_fallthru
        _
      %p433 = scmp.le.s32.totalorder 1, %s27
      %p434 = scmp.lt.s32.totalorder %s27, 5
      %p435 = pnand %p433, %p434
      %p436 = pneg %p435
      // Predicated region
      $region53: #{tpu_custom_call.1} parent=5 // pred_check
        _
      $region54: #{tpu_custom_call.1} parent=5 // pred_check_branch
        %438 = sbr.rel (%p435) target = $region56
      $region55: #{tpu_custom_call.1} parent=5 // pred_region
        %s439 = ssub.s32 %s27, 1
        %s440 = sand.u32 %s52, 1
        %s441 = scalar_lea.sflag [#allocation4], %s440
        %s442 = sand.u32 %s52, 1
        %s443 = smul.addr %s442, 8
        %s444 = scalar_lea.vmem [#allocation3], %s443
        // Predicated region
        $region57: #{tpu_custom_call.1} parent=55 // pred_check
          %p445 = pneg %p65
        $region58: #{tpu_custom_call.1} parent=55 // pred_check_branch
          %447 = sbr.rel (%p445) target = $region60
        $region59: #{tpu_custom_call.1} parent=55 // pred_region
          %448 = dma.done %s441, 128
        $region60: #{tpu_custom_call.1} parent=55 // pred_fallthru
          _
        %s449 = sand.u32 %s32, 1
        %s450 = scalar_lea.sflag [#allocation7], %s449
        %s451 = sand.u32 %s78, 1
        %s452 = smul.addr %s451, 4
        %s453 = scalar_lea.vmem [#allocation6], %s452
        // Predicated region
        $region61: #{tpu_custom_call.1} parent=55 // pred_check
          %p454 = pneg %p91
        $region62: #{tpu_custom_call.1} parent=55 // pred_check_branch
          %456 = sbr.rel (%p454) target = $region64
        $region63: #{tpu_custom_call.1} parent=55 // pred_region
          %457 = dma.done %s450, 64
        $region64: #{tpu_custom_call.1} parent=55 // pred_fallthru
          _
        %s458 = sand.u32 %s32, 1
        %s459 = scalar_lea.sflag [#allocation7], %s458
        %s460 = sand.u32 %s130, 1
        %s461 = smul.addr %s460, 64
        %s462 = scalar_lea.vmem [#allocation8], %s461
        // Predicated region
        $region65: #{tpu_custom_call.1} parent=55 // pred_check
          %p463 = pneg %p143
        $region66: #{tpu_custom_call.1} parent=55 // pred_check_branch
          %465 = sbr.rel (%p463) target = $region68
        $region67: #{tpu_custom_call.1} parent=55 // pred_region
          %466 = dma.done %s459, 1024
        $region68: #{tpu_custom_call.1} parent=55 // pred_fallthru
          _
        %s467 = sand.u32 %s156, 1
        %s468 = scalar_lea.sflag [#allocation10], %s467
        %s469 = sand.u32 %s156, 1
        %s470 = smul.addr %s469, 16
        %s471 = scalar_lea.vmem [#allocation9], %s470
        // Predicated region
        $region69: #{tpu_custom_call.1} parent=55 // pred_check
          %p472 = pneg %p169
        $region70: #{tpu_custom_call.1} parent=55 // pred_check_branch
          %474 = sbr.rel (%p472) target = $region72
        $region71: #{tpu_custom_call.1} parent=55 // pred_region
          %475 = dma.done %s468, 256
        $region72: #{tpu_custom_call.1} parent=55 // pred_fallthru
          _
        %s476 = sand.u32 %s52, 1
        %s477 = scalar_lea.sflag [#allocation4], %s476
        %s478 = sand.u32 %s52, 1
        %s479 = smul.addr %s478, 8
        %s480 = scalar_lea.vmem [#allocation3], %s479
        %p481 = pneg %p65
        %p482 = pneg %p62
        %s483 = sand.u32 %s32, 1
        %s484 = scalar_lea.sflag [#allocation7], %s483
        %s485 = sand.u32 %s78, 1
        %s486 = smul.addr %s485, 4
        %s487 = scalar_lea.vmem [#allocation6], %s486
        %p488 = pneg %p91
        %p489 = pneg %p88
        %p490 = scmp.lt.s32.totalorder %s37, 1
        %s491 = scalar_select %p490, %s37, 1
        %s492 = smul.addr %s491, 16
        %s493 = smul.addr %s492, 4
        %s494 = scalar_lea.vmem %s2, %s493
        %p495 = pneg %p117
        %p496 = pneg %p114
        %s497 = sand.u32 %s32, 1
        %s498 = scalar_lea.sflag [#allocation7], %s497
        %s499 = sand.u32 %s130, 1
        %s500 = smul.addr %s499, 64
        %s501 = scalar_lea.vmem [#allocation8], %s500
        %p502 = pneg %p143
        %p503 = pneg %p140
        %s504 = sand.u32 %s156, 1
        %s505 = scalar_lea.sflag [#allocation10], %s504
        %s506 = sand.u32 %s156, 1
        %s507 = smul.addr %s506, 16
        %s508 = scalar_lea.vmem [#allocation9], %s507
        %p509 = pneg %p169
        %p510 = pneg %p166
        %p511 = scmp.lt.s32.totalorder %s37, 1
        %s512 = scalar_select %p511, %s37, 1
        %s513 = smul.addr %s512, 8
        %s514 = smul.addr %s513, 4
        %s515 = scalar_lea.vmem %s5, %s514
        %p516 = pneg %p195
        %p517 = pneg %p192
        %p518 = scmp.lt.s32.totalorder %s37, 1
        %s519 = scalar_select %p518, %s37, 1
        %s520 = smul.addr %s519, 2
        %s521 = smul.addr %s520, 8
        %s522 = scalar_lea.vmem %s6, %s521
        %p523 = pneg %p221
        %p524 = pneg %p218
        %p525 = scmp.lt.s32.totalorder %s37, 1
        %s526 = scalar_select %p525, %s37, 1
        %s527 = scalar_lea.vmem %s7, %s526
        %p528 = pneg %p247
        %p529 = pneg %p244
        %p530 = scmp.lt.s32.totalorder %s37, 1
        %s531 = scalar_select %p530, %s37, 1
        %s532 = smul.addr %s531, 8
        %s533 = scalar_lea.vmem %s8, %s532
        %p534 = pneg %p273
        %p535 = pneg %p270
        %p536 = pneg %p299
        %p537 = pneg %p296
        %s538 = sand.u32 %s286, 1
        %s539 = scalar_lea.sflag [#allocation5], %s538
        %s540 = sand.u32 %s286, 1
        %s541 = smul.addr %s540, 8
        %s542 = scalar_lea.vmem [#allocation11], %s541
        %p543 = scmp.lt.s32.totalorder %s37, 1
        %s544 = scalar_select %p543, %s37, 1
        %s545 = smul.addr %s544, 16
        %s546 = smul.addr %s545, 4
        %s547 = scalar_lea.vmem %s2, %s546
        %p548 = scmp.lt.s32.totalorder %s37, 1
        %s549 = scalar_select %p548, %s37, 1
        %s550 = smul.addr %s549, 8
        %s551 = smul.addr %s550, 4
        %s552 = scalar_lea.vmem %s5, %s551
        %p553 = scmp.lt.s32.totalorder %s37, 1
        %s554 = scalar_select %p553, %s37, 1
        %s555 = smul.addr %s554, 2
        %s556 = smul.addr %s555, 8
        %s557 = scalar_lea.vmem %s6, %s556
        %p558 = scmp.lt.s32.totalorder %s37, 1
        %s559 = scalar_select %p558, %s37, 1
        %s560 = scalar_lea.vmem %s7, %s559
        %p561 = scmp.lt.s32.totalorder %s37, 1
        %s562 = scalar_select %p561, %s37, 1
        %s563 = smul.addr %s562, 8
        %s564 = scalar_lea.vmem %s8, %s563
        %p566 = scmp.eq.s32.totalorder %s37, 0
        // Predicated region
        $region73: #{tpu_custom_call.1} parent=55 // pred_check
          %p567 = pneg %p566
        $region74: #{tpu_custom_call.1} parent=55 // pred_check_branch
          %569 = sbr.rel (%p567) target = $region76
        $region75: #{tpu_custom_call.1} parent=55 // pred_region
          %v570 = vld [vmem:[%s444] sm:$0xff]
          %vm571 = vcmask 261120
          %572 = vst.msk [vmem:[#allocation2] sm:$0xff] %vm571, %v570
        $region76: #{tpu_custom_call.1} parent=55 // pred_fallthru
          _
        %v573 = vld [vmem:[#allocation2] sm:$0xff]
        %v574 = vld [vmem:[%s453] sm:$0xf]
        %v575 = vpack.c.bf16 %v574, %v574
        %v576 = vld [vmem:[%s557] sm:$0xff]
        %v577 = vld [vmem:[%s557 + $0x8] sm:$0x1]
        %v578 = vld [vmem:[%s560] sm:$0x1]
        %v579 = vld [vmem:[%s564] sm:$0x3f]
        %v580 = vpack.c.bf16 %v573, %v573
        %v581 = vld [vmem:[%s547] sm:$0xf]
        %v582 = vld [vmem:[%s547 + $0x4] sm:$0xf]
        %v583 = vld [vmem:[%s547 + $0x8] sm:$0xf]
        %v584 = vld [vmem:[%s547 + $0xc] sm:$0xf]
        %v585 = vlaneseq
        %v586 = vshrl.u32 %v585, 7
        %v587 = vsub.s32 0, %v586
        %v588 = vrot.slane %v576, %v587
        %v593 = vunpack.c.l.b16 %v581
        %v594 = vunpack.c.l.b16 %v582
        %v595 = vunpack.c.l.b16 %v583
        %v596 = vunpack.c.l.b16 %v584
        %v597 = vpack.c.b16 %v594, %v593
        %v598 = vpack.c.b16 %v596, %v595
        %vm601 = vcmask 261120
        %v603 = vsel %vm601, %v580, 0
        %605 = vmatprep.subr.bf16.mxu0 0
        %606 = vmatpush1.bf16.msra.mxu0 0
        %607 = vmatprep.subr.bf16.mxu0 0
        %608 = vmatpush1.bf16.msra.mxu0 0
        %609 = vmatprep.subr.bf16.mxu0 0
        %610 = vmatpush1.bf16.msra.mxu0 0
        %611 = vmatprep.subr.bf16.mxu0 0
        %612 = vmatpush1.bf16.msra.mxu0 0
        %613 = vmatprep.subr.bf16.mxu0 0
        %614 = vmatpush1.bf16.msra.mxu0 0
        %615 = vmatprep.subr.bf16.mxu0 0
        %616 = vmatpush1.bf16.msra.mxu0 0
        %617 = vmatprep.subr.bf16.mxu0 0
        %618 = vmatpush1.bf16.msra.mxu0 %v598
        %619 = vmatprep.subr.bf16.mxu0 0
        %620 = vmatpush1.bf16.msra.mxu0 %v597
        %621 = vmatprep.subr.bf16.mxu0 0
        %622 = vmatpush2.bf16.msra.mxu0 0
        %623 = vmatprep.subr.bf16.mxu0 0
        %624 = vmatpush2.bf16.msra.mxu0 0
        %625 = vmatprep.subr.bf16.mxu0 0
        %626 = vmatpush2.bf16.msra.mxu0 0
        %627 = vmatprep.subr.bf16.mxu0 0
        %628 = vmatpush2.bf16.msra.mxu0 0
        %629 = vmatprep.subr.bf16.mxu0 0
        %630 = vmatpush2.bf16.msra.mxu0 0
        %631 = vmatprep.subr.bf16.mxu0 0
        %632 = vmatpush2.bf16.msra.mxu0 0
        %633 = vmatprep.subr.bf16.mxu0 0
        %634 = vmatpush2.bf16.msra.mxu0 0
        %635 = vmatprep.subr.bf16.mxu0 0
        %636 = vmatpush2.bf16.msra.mxu0 0
        %637 = vmatprep.mubr.bf16.mxu0 0
        %638 = vmatmul.mubr.bf16.gmra.mxu0 %v603
        %v639 = vpop.f32.mrf.mxu0
        %v640 = vadd.f32 %v588, %v639
        %v641 = vpop.f32.mrf.mxu0
        %v642 = vpop.f32.mrf.mxu0
        %v643 = vpop.f32.mrf.mxu0
        %644 = vdwg.mxu0
        %s645 = scalar_lea.vmem %s547, 16
        %v646 = vld [vmem:[%s645] sm:$0xf]
        %v647 = vld [vmem:[%s645 + $0x4] sm:$0xf]
        %v648 = vld [vmem:[%s645 + $0x8] sm:$0xf]
        %v649 = vld [vmem:[%s645 + $0xc] sm:$0xf]
        %v650 = vlaneseq
        %v651 = vshrl.u32 %v650, 7
        %v652 = vsub.s32 1, %v651
        %v653 = vrot.slane %v576, %v652
        %v658 = vunpack.c.l.b16 %v646
        %v659 = vunpack.c.l.b16 %v647
        %v660 = vunpack.c.l.b16 %v648
        %v661 = vunpack.c.l.b16 %v649
        %v662 = vpack.c.b16 %v659, %v658
        %v663 = vpack.c.b16 %v661, %v660
        %666 = vmatprep.subr.bf16.mxu0 0
        %667 = vmatpush1.bf16.msra.mxu0 0
        %668 = vmatprep.subr.bf16.mxu0 0
        %669 = vmatpush1.bf16.msra.mxu0 0
        %670 = vmatprep.subr.bf16.mxu0 0
        %671 = vmatpush1.bf16.msra.mxu0 0
        %672 = vmatprep.subr.bf16.mxu0 0
        %673 = vmatpush1.bf16.msra.mxu0 0
        %674 = vmatprep.subr.bf16.mxu0 0
        %675 = vmatpush1.bf16.msra.mxu0 0
        %676 = vmatprep.subr.bf16.mxu0 0
        %677 = vmatpush1.bf16.msra.mxu0 0
        %678 = vmatprep.subr.bf16.mxu0 0
        %679 = vmatpush1.bf16.msra.mxu0 %v663
        %680 = vmatprep.subr.bf16.mxu0 0
        %681 = vmatpush1.bf16.msra.mxu0 %v662
        %682 = vmatprep.subr.bf16.mxu0 0
        %683 = vmatpush2.bf16.msra.mxu0 0
        %684 = vmatprep.subr.bf16.mxu0 0
        %685 = vmatpush2.bf16.msra.mxu0 0
        %686 = vmatprep.subr.bf16.mxu0 0
        %687 = vmatpush2.bf16.msra.mxu0 0
        %688 = vmatprep.subr.bf16.mxu0 0
        %689 = vmatpush2.bf16.msra.mxu0 0
        %690 = vmatprep.subr.bf16.mxu0 0
        %691 = vmatpush2.bf16.msra.mxu0 0
        %692 = vmatprep.subr.bf16.mxu0 0
        %693 = vmatpush2.bf16.msra.mxu0 0
        %694 = vmatprep.subr.bf16.mxu0 0
        %695 = vmatpush2.bf16.msra.mxu0 0
        %696 = vmatprep.subr.bf16.mxu0 0
        %697 = vmatpush2.bf16.msra.mxu0 0
        %698 = vmatprep.mubr.bf16.mxu0 0
        %699 = vmatmul.mubr.bf16.gmra.mxu0 %v603
        %v700 = vpop.f32.mrf.mxu0
        %v701 = vadd.f32 %v653, %v700
        %v702 = vpop.f32.mrf.mxu0
        %v703 = vpop.f32.mrf.mxu0
        %v704 = vpop.f32.mrf.mxu0
        %705 = vdwg.mxu0
        %s706 = scalar_lea.vmem %s547, 32
        %v707 = vld [vmem:[%s706] sm:$0xf]
        %v708 = vld [vmem:[%s706 + $0x4] sm:$0xf]
        %v709 = vld [vmem:[%s706 + $0x8] sm:$0xf]
        %v710 = vld [vmem:[%s706 + $0xc] sm:$0xf]
        %v711 = vlaneseq
        %v712 = vshrl.u32 %v711, 7
        %v713 = vsub.s32 2, %v712
        %v714 = vrot.slane %v576, %v713
        %v719 = vunpack.c.l.b16 %v707
        %v720 = vunpack.c.l.b16 %v708
        %v721 = vunpack.c.l.b16 %v709
        %v722 = vunpack.c.l.b16 %v710
        %v723 = vpack.c.b16 %v720, %v719
        %v724 = vpack.c.b16 %v722, %v721
        %727 = vmatprep.subr.bf16.mxu0 0
        %728 = vmatpush1.bf16.msra.mxu0 0
        %729 = vmatprep.subr.bf16.mxu0 0
        %730 = vmatpush1.bf16.msra.mxu0 0
        %731 = vmatprep.subr.bf16.mxu0 0
        %732 = vmatpush1.bf16.msra.mxu0 0
        %733 = vmatprep.subr.bf16.mxu0 0
        %734 = vmatpush1.bf16.msra.mxu0 0
        %735 = vmatprep.subr.bf16.mxu0 0
        %736 = vmatpush1.bf16.msra.mxu0 0
        %737 = vmatprep.subr.bf16.mxu0 0
        %738 = vmatpush1.bf16.msra.mxu0 0
        %739 = vmatprep.subr.bf16.mxu0 0
        %740 = vmatpush1.bf16.msra.mxu0 %v724
        %741 = vmatprep.subr.bf16.mxu0 0
        %742 = vmatpush1.bf16.msra.mxu0 %v723
        %743 = vmatprep.subr.bf16.mxu0 0
        %744 = vmatpush2.bf16.msra.mxu0 0
        %745 = vmatprep.subr.bf16.mxu0 0
        %746 = vmatpush2.bf16.msra.mxu0 0
        %747 = vmatprep.subr.bf16.mxu0 0
        %748 = vmatpush2.bf16.msra.mxu0 0
        %749 = vmatprep.subr.bf16.mxu0 0
        %750 = vmatpush2.bf16.msra.mxu0 0
        %751 = vmatprep.subr.bf16.mxu0 0
        %752 = vmatpush2.bf16.msra.mxu0 0
        %753 = vmatprep.subr.bf16.mxu0 0
        %754 = vmatpush2.bf16.msra.mxu0 0
        %755 = vmatprep.subr.bf16.mxu0 0
        %756 = vmatpush2.bf16.msra.mxu0 0
        %757 = vmatprep.subr.bf16.mxu0 0
        %758 = vmatpush2.bf16.msra.mxu0 0
        %759 = vmatprep.mubr.bf16.mxu0 0
        %760 = vmatmul.mubr.bf16.gmra.mxu0 %v603
        %v761 = vpop.f32.mrf.mxu0
        %v762 = vadd.f32 %v714, %v761
        %v763 = vpop.f32.mrf.mxu0
        %v764 = vpop.f32.mrf.mxu0
        %v765 = vpop.f32.mrf.mxu0
        %766 = vdwg.mxu0
        %768 = vrot.lane.b32.xlu0 %v640, 124
        %v769 = vpop.permute.xlu0 %768
        %771 = vrot.lane.b32.xlu0 %v640, 120
        %v772 = vpop.permute.xlu0 %771
        %774 = vrot.lane.b32.xlu0 %v640, 116
        %v775 = vpop.permute.xlu0 %774
        %777 = vrot.lane.b32.xlu0 %v640, 112
        %v778 = vpop.permute.xlu0 %777
        %780 = vrot.lane.b32.xlu0 %v640, 108
        %v781 = vpop.permute.xlu0 %780
        %783 = vrot.lane.b32.xlu0 %v640, 104
        %v784 = vpop.permute.xlu0 %783
        %786 = vrot.lane.b32.xlu0 %v640, 100
        %v787 = vpop.permute.xlu0 %786
        %v789 = vpack.c.bf16 %v640, %v640
        %v790 = vpack.c.bf16 %v769, %v769
        %v791 = vpack.c.bf16 %v772, %v772
        %v792 = vpack.c.bf16 %v775, %v775
        %v793 = vpack.c.bf16 %v778, %v778
        %v794 = vpack.c.bf16 %v781, %v781
        %v795 = vpack.c.bf16 %v784, %v784
        %v796 = vpack.c.bf16 %v787, %v787
        %798 = vrot.lane.b32.xlu0 %v701, 124
        %v799 = vpop.permute.xlu0 %798
        %801 = vrot.lane.b32.xlu0 %v701, 120
        %v802 = vpop.permute.xlu0 %801
        %804 = vrot.lane.b32.xlu0 %v701, 116
        %v805 = vpop.permute.xlu0 %804
        %807 = vrot.lane.b32.xlu0 %v701, 112
        %v808 = vpop.permute.xlu0 %807
        %810 = vrot.lane.b32.xlu0 %v701, 108
        %v811 = vpop.permute.xlu0 %810
        %813 = vrot.lane.b32.xlu0 %v701, 104
        %v814 = vpop.permute.xlu0 %813
        %816 = vrot.lane.b32.xlu0 %v701, 100
        %v817 = vpop.permute.xlu0 %816
        %v819 = vpack.c.bf16 %v701, %v701
        %v820 = vpack.c.bf16 %v799, %v799
        %v821 = vpack.c.bf16 %v802, %v802
        %v822 = vpack.c.bf16 %v805, %v805
        %v823 = vpack.c.bf16 %v808, %v808
        %v824 = vpack.c.bf16 %v811, %v811
        %v825 = vpack.c.bf16 %v814, %v814
        %v826 = vpack.c.bf16 %v817, %v817
        %828 = vrot.lane.b32.xlu0 %v762, 124
        %v829 = vpop.permute.xlu0 %828
        %831 = vrot.lane.b32.xlu0 %v762, 120
        %v832 = vpop.permute.xlu0 %831
        %834 = vrot.lane.b32.xlu0 %v762, 116
        %v835 = vpop.permute.xlu0 %834
        %837 = vrot.lane.b32.xlu0 %v762, 112
        %v838 = vpop.permute.xlu0 %837
        %840 = vrot.lane.b32.xlu0 %v762, 108
        %v841 = vpop.permute.xlu0 %840
        %843 = vrot.lane.b32.xlu0 %v762, 104
        %v844 = vpop.permute.xlu0 %843
        %846 = vrot.lane.b32.xlu0 %v762, 100
        %v847 = vpop.permute.xlu0 %846
        %v849 = vpack.c.bf16 %v762, %v762
        %v850 = vpack.c.bf16 %v829, %v829
        %v851 = vpack.c.bf16 %v832, %v832
        %v852 = vpack.c.bf16 %v835, %v835
        %v853 = vpack.c.bf16 %v838, %v838
        %v854 = vpack.c.bf16 %v841, %v841
        %v855 = vpack.c.bf16 %v844, %v844
        %v856 = vpack.c.bf16 %v847, %v847
        %vm857 = vcmask 31744
        %v859 = vsel %vm857, %v789, 0
        %v862 = vsel %vm857, %v819, 0
        %864 = vmatprep.subr.bf16.mxu0 0
        %865 = vmatpush1.bf16.xpose.msra.mxu0 0
        %866 = vmatprep.subr.bf16.mxu0 0
        %867 = vmatpush1.bf16.xpose.msra.mxu0 0
        %868 = vmatprep.subr.bf16.mxu0 0
        %869 = vmatpush1.bf16.xpose.msra.mxu0 0
        %870 = vmatprep.subr.bf16.mxu0 0
        %871 = vmatpush1.bf16.xpose.msra.mxu0 0
        %872 = vmatprep.subr.bf16.mxu0 0
        %873 = vmatpush1.bf16.xpose.msra.mxu0 0
        %874 = vmatprep.subr.bf16.mxu0 0
        %875 = vmatpush1.bf16.xpose.msra.mxu0 0
        %876 = vmatprep.subr.bf16.mxu0 0
        %877 = vmatpush1.bf16.xpose.msra.mxu0 0
        %878 = vmatprep.subr.bf16.mxu0 0
        %879 = vmatpush1.bf16.xpose.msra.mxu0 %v862
        %880 = vmatprep.subr.bf16.mxu0 0
        %881 = vmatpush2.bf16.xpose.msra.mxu0 0
        %882 = vmatprep.subr.bf16.mxu0 0
        %883 = vmatpush2.bf16.xpose.msra.mxu0 0
        %884 = vmatprep.subr.bf16.mxu0 0
        %885 = vmatpush2.bf16.xpose.msra.mxu0 0
        %886 = vmatprep.subr.bf16.mxu0 0
        %887 = vmatpush2.bf16.xpose.msra.mxu0 0
        %888 = vmatprep.subr.bf16.mxu0 0
        %889 = vmatpush2.bf16.xpose.msra.mxu0 0
        %890 = vmatprep.subr.bf16.mxu0 0
        %891 = vmatpush2.bf16.xpose.msra.mxu0 0
        %892 = vmatprep.subr.bf16.mxu0 0
        %893 = vmatpush2.bf16.xpose.msra.mxu0 0
        %894 = vmatprep.subr.bf16.mxu0 0
        %895 = vmatpush2.bf16.xpose.msra.mxu0 0
        %896 = vmatprep.mubr.bf16.mxu0 0
        %897 = vmatmul.mubr.bf16.gmra.mxu0 %v859
        %v898 = vpop.f32.mrf.mxu0
        %v899 = vadd.f32 0.0, %v898
        %v900 = vpop.f32.mrf.mxu0
        %v901 = vpop.f32.mrf.mxu0
        %v902 = vpop.f32.mrf.mxu0
        %903 = vdwg.mxu0
        %v905 = vsel %vm857, %v790, 0
        %v908 = vsel %vm857, %v820, 0
        %910 = vmatprep.subr.bf16.mxu0 0
        %911 = vmatpush1.bf16.xpose.msra.mxu0 0
        %912 = vmatprep.subr.bf16.mxu0 0
        %913 = vmatpush1.bf16.xpose.msra.mxu0 0
        %914 = vmatprep.subr.bf16.mxu0 0
        %915 = vmatpush1.bf16.xpose.msra.mxu0 0
        %916 = vmatprep.subr.bf16.mxu0 0
        %917 = vmatpush1.bf16.xpose.msra.mxu0 0
        %918 = vmatprep.subr.bf16.mxu0 0
        %919 = vmatpush1.bf16.xpose.msra.mxu0 0
        %920 = vmatprep.subr.bf16.mxu0 0
        %921 = vmatpush1.bf16.xpose.msra.mxu0 0
        %922 = vmatprep.subr.bf16.mxu0 0
        %923 = vmatpush1.bf16.xpose.msra.mxu0 0
        %924 = vmatprep.subr.bf16.mxu0 0
        %925 = vmatpush1.bf16.xpose.msra.mxu0 %v908
        %926 = vmatprep.subr.bf16.mxu0 0
        %927 = vmatpush2.bf16.xpose.msra.mxu0 0
        %928 = vmatprep.subr.bf16.mxu0 0
        %929 = vmatpush2.bf16.xpose.msra.mxu0 0
        %930 = vmatprep.subr.bf16.mxu0 0
        %931 = vmatpush2.bf16.xpose.msra.mxu0 0
        %932 = vmatprep.subr.bf16.mxu0 0
        %933 = vmatpush2.bf16.xpose.msra.mxu0 0
        %934 = vmatprep.subr.bf16.mxu0 0
        %935 = vmatpush2.bf16.xpose.msra.mxu0 0
        %936 = vmatprep.subr.bf16.mxu0 0
        %937 = vmatpush2.bf16.xpose.msra.mxu0 0
        %938 = vmatprep.subr.bf16.mxu0 0
        %939 = vmatpush2.bf16.xpose.msra.mxu0 0
        %940 = vmatprep.subr.bf16.mxu0 0
        %941 = vmatpush2.bf16.xpose.msra.mxu0 0
        %942 = vmatprep.mubr.bf16.mxu0 0
        %943 = vmatmul.mubr.bf16.gmra.mxu0 %v905
        %v944 = vpop.f32.mrf.mxu0
        %v945 = vadd.f32 0.0, %v944
        %v946 = vpop.f32.mrf.mxu0
        %v947 = vpop.f32.mrf.mxu0
        %v948 = vpop.f32.mrf.mxu0
        %949 = vdwg.mxu0
        %v951 = vsel %vm857, %v791, 0
        %v954 = vsel %vm857, %v821, 0
        %956 = vmatprep.subr.bf16.mxu0 0
        %957 = vmatpush1.bf16.xpose.msra.mxu0 0
        %958 = vmatprep.subr.bf16.mxu0 0
        %959 = vmatpush1.bf16.xpose.msra.mxu0 0
        %960 = vmatprep.subr.bf16.mxu0 0
        %961 = vmatpush1.bf16.xpose.msra.mxu0 0
        %962 = vmatprep.subr.bf16.mxu0 0
        %963 = vmatpush1.bf16.xpose.msra.mxu0 0
        %964 = vmatprep.subr.bf16.mxu0 0
        %965 = vmatpush1.bf16.xpose.msra.mxu0 0
        %966 = vmatprep.subr.bf16.mxu0 0
        %967 = vmatpush1.bf16.xpose.msra.mxu0 0
        %968 = vmatprep.subr.bf16.mxu0 0
        %969 = vmatpush1.bf16.xpose.msra.mxu0 0
        %970 = vmatprep.subr.bf16.mxu0 0
        %971 = vmatpush1.bf16.xpose.msra.mxu0 %v954
        %972 = vmatprep.subr.bf16.mxu0 0
        %973 = vmatpush2.bf16.xpose.msra.mxu0 0
        %974 = vmatprep.subr.bf16.mxu0 0
        %975 = vmatpush2.bf16.xpose.msra.mxu0 0
        %976 = vmatprep.subr.bf16.mxu0 0
        %977 = vmatpush2.bf16.xpose.msra.mxu0 0
        %978 = vmatprep.subr.bf16.mxu0 0
        %979 = vmatpush2.bf16.xpose.msra.mxu0 0
        %980 = vmatprep.subr.bf16.mxu0 0
        %981 = vmatpush2.bf16.xpose.msra.mxu0 0
        %982 = vmatprep.subr.bf16.mxu0 0
        %983 = vmatpush2.bf16.xpose.msra.mxu0 0
        %984 = vmatprep.subr.bf16.mxu0 0
        %985 = vmatpush2.bf16.xpose.msra.mxu0 0
        %986 = vmatprep.subr.bf16.mxu0 0
        %987 = vmatpush2.bf16.xpose.msra.mxu0 0
        %988 = vmatprep.mubr.bf16.mxu0 0
        %989 = vmatmul.mubr.bf16.gmra.mxu0 %v951
        %v990 = vpop.f32.mrf.mxu0
        %v991 = vadd.f32 0.0, %v990
        %v992 = vpop.f32.mrf.mxu0
        %v993 = vpop.f32.mrf.mxu0
        %v994 = vpop.f32.mrf.mxu0
        %995 = vdwg.mxu0
        %v997 = vsel %vm857, %v792, 0
        %v1000 = vsel %vm857, %v822, 0
        %1002 = vmatprep.subr.bf16.mxu0 0
        %1003 = vmatpush1.bf16.xpose.msra.mxu0 0
        %1004 = vmatprep.subr.bf16.mxu0 0
        %1005 = vmatpush1.bf16.xpose.msra.mxu0 0
        %1006 = vmatprep.subr.bf16.mxu0 0
        %1007 = vmatpush1.bf16.xpose.msra.mxu0 0
        %1008 = vmatprep.subr.bf16.mxu0 0
        %1009 = vmatpush1.bf16.xpose.msra.mxu0 0
        %1010 = vmatprep.subr.bf16.mxu0 0
        %1011 = vmatpush1.bf16.xpose.msra.mxu0 0
        %1012 = vmatprep.subr.bf16.mxu0 0
        %1013 = vmatpush1.bf16.xpose.msra.mxu0 0
        %1014 = vmatprep.subr.bf16.mxu0 0
        %1015 = vmatpush1.bf16.xpose.msra.mxu0 0
        %1016 = vmatprep.subr.bf16.mxu0 0
        %1017 = vmatpush1.bf16.xpose.msra.mxu0 %v1000
        %1018 = vmatprep.subr.bf16.mxu0 0
        %1019 = vmatpush2.bf16.xpose.msra.mxu0 0
        %1020 = vmatprep.subr.bf16.mxu0 0
        %1021 = vmatpush2.bf16.xpose.msra.mxu0 0
        %1022 = vmatprep.subr.bf16.mxu0 0
        %1023 = vmatpush2.bf16.xpose.msra.mxu0 0
        %1024 = vmatprep.subr.bf16.mxu0 0
        %1025 = vmatpush2.bf16.xpose.msra.mxu0 0
        %1026 = vmatprep.subr.bf16.mxu0 0
        %1027 = vmatpush2.bf16.xpose.msra.mxu0 0
        %1028 = vmatprep.subr.bf16.mxu0 0
        %1029 = vmatpush2.bf16.xpose.msra.mxu0 0
        %1030 = vmatprep.subr.bf16.mxu0 0
        %1031 = vmatpush2.bf16.xpose.msra.mxu0 0
        %1032 = vmatprep.subr.bf16.mxu0 0
        %1033 = vmatpush2.bf16.xpose.msra.mxu0 0
        %1034 = vmatprep.mubr.bf16.mxu0 0
        %1035 = vmatmul.mubr.bf16.gmra.mxu0 %v997
        %v1036 = vpop.f32.mrf.mxu0
        %v1037 = vadd.f32 0.0, %v1036
        %v1038 = vpop.f32.mrf.mxu0
        %v1039 = vpop.f32.mrf.mxu0
        %v1040 = vpop.f32.mrf.mxu0
        %1041 = vdwg.mxu0
        %v1043 = vsel %vm857, %v793, 0
        %v1046 = vsel %vm857, %v823, 0
        %1048 = vmatprep.subr.bf16.mxu0 0
        %1049 = vmatpush1.bf16.xpose.msra.mxu0 0
        %1050 = vmatprep.subr.bf16.mxu0 0
        %1051 = vmatpush1.bf16.xpose.msra.mxu0 0
        %1052 = vmatprep.subr.bf16.mxu0 0
        %1053 = vmatpush1.bf16.xpose.msra.mxu0 0
        %1054 = vmatprep.subr.bf16.mxu0 0
        %1055 = vmatpush1.bf16.xpose.msra.mxu0 0
        %1056 = vmatprep.subr.bf16.mxu0 0
        %1057 = vmatpush1.bf16.xpose.msra.mxu0 0
        %1058 = vmatprep.subr.bf16.mxu0 0
        %1059 = vmatpush1.bf16.xpose.msra.mxu0 0
        %1060 = vmatprep.subr.bf16.mxu0 0
        %1061 = vmatpush1.bf16.xpose.msra.mxu0 0
        %1062 = vmatprep.subr.bf16.mxu0 0
        %1063 = vmatpush1.bf16.xpose.msra.mxu0 %v1046
        %1064 = vmatprep.subr.bf16.mxu0 0
        %1065 = vmatpush2.bf16.xpose.msra.mxu0 0
        %1066 = vmatprep.subr.bf16.mxu0 0
        %1067 = vmatpush2.bf16.xpose.msra.mxu0 0
        %1068 = vmatprep.subr.bf16.mxu0 0
        %1069 = vmatpush2.bf16.xpose.msra.mxu0 0
        %1070 = vmatprep.subr.bf16.mxu0 0
        %1071 = vmatpush2.bf16.xpose.msra.mxu0 0
        %1072 = vmatprep.subr.bf16.mxu0 0
        %1073 = vmatpush2.bf16.xpose.msra.mxu0 0
        %1074 = vmatprep.subr.bf16.mxu0 0
        %1075 = vmatpush2.bf16.xpose.msra.mxu0 0
        %1076 = vmatprep.subr.bf16.mxu0 0
        %1077 = vmatpush2.bf16.xpose.msra.mxu0 0
        %1078 = vmatprep.subr.bf16.mxu0 0
        %1079 = vmatpush2.bf16.xpose.msra.mxu0 0
        %1080 = vmatprep.mubr.bf16.mxu0 0
        %1081 = vmatmul.mubr.bf16.gmra.mxu0 %v1043
        %v1082 = vpop.f32.mrf.mxu0
        %v1083 = vadd.f32 0.0, %v1082
        %v1084 = vpop.f32.mrf.mxu0
        %v1085 = vpop.f32.mrf.mxu0
        %v1086 = vpop.f32.mrf.mxu0
        %1087 = vdwg.mxu0
        %v1089 = vsel %vm857, %v794, 0
        %v1092 = vsel %vm857, %v824, 0
        %1094 = vmatprep.subr.bf16.mxu0 0
        %1095 = vmatpush1.bf16.xpose.msra.mxu0 0
        %1096 = vmatprep.subr.bf16.mxu0 0
        %1097 = vmatpush1.bf16.xpose.msra.mxu0 0
        %1098 = vmatprep.subr.bf16.mxu0 0
        %1099 = vmatpush1.bf16.xpose.msra.mxu0 0
        %1100 = vmatprep.subr.bf16.mxu0 0
        %1101 = vmatpush1.bf16.xpose.msra.mxu0 0
        %1102 = vmatprep.subr.bf16.mxu0 0
        %1103 = vmatpush1.bf16.xpose.msra.mxu0 0
        %1104 = vmatprep.subr.bf16.mxu0 0
        %1105 = vmatpush1.bf16.xpose.msra.mxu0 0
        %1106 = vmatprep.subr.bf16.mxu0 0
        %1107 = vmatpush1.bf16.xpose.msra.mxu0 0
        %1108 = vmatprep.subr.bf16.mxu0 0
        %1109 = vmatpush1.bf16.xpose.msra.mxu0 %v1092
        %1110 = vmatprep.subr.bf16.mxu0 0
        %1111 = vmatpush2.bf16.xpose.msra.mxu0 0
        %1112 = vmatprep.subr.bf16.mxu0 0
        %1113 = vmatpush2.bf16.xpose.msra.mxu0 0
        %1114 = vmatprep.subr.bf16.mxu0 0
        %1115 = vmatpush2.bf16.xpose.msra.mxu0 0
        %1116 = vmatprep.subr.bf16.mxu0 0
        %1117 = vmatpush2.bf16.xpose.msra.mxu0 0
        %1118 = vmatprep.subr.bf16.mxu0 0
        %1119 = vmatpush2.bf16.xpose.msra.mxu0 0
        %1120 = vmatprep.subr.bf16.mxu0 0
        %1121 = vmatpush2.bf16.xpose.msra.mxu0 0
        %1122 = vmatprep.subr.bf16.mxu0 0
        %1123 = vmatpush2.bf16.xpose.msra.mxu0 0
        %1124 = vmatprep.subr.bf16.mxu0 0
        %1125 = vmatpush2.bf16.xpose.msra.mxu0 0
        %1126 = vmatprep.mubr.bf16.mxu0 0
        %1127 = vmatmul.mubr.bf16.gmra.mxu0 %v1089
        %v1128 = vpop.f32.mrf.mxu0
        %v1129 = vadd.f32 0.0, %v1128
        %v1130 = vpop.f32.mrf.mxu0
        %v1131 = vpop.f32.mrf.mxu0
        %v1132 = vpop.f32.mrf.mxu0
        %1133 = vdwg.mxu0
        %v1135 = vsel %vm857, %v795, 0
        %v1138 = vsel %vm857, %v825, 0
        %1140 = vmatprep.subr.bf16.mxu0 0
        %1141 = vmatpush1.bf16.xpose.msra.mxu0 0
        %1142 = vmatprep.subr.bf16.mxu0 0
        %1143 = vmatpush1.bf16.xpose.msra.mxu0 0
        %1144 = vmatprep.subr.bf16.mxu0 0
        %1145 = vmatpush1.bf16.xpose.msra.mxu0 0
        %1146 = vmatprep.subr.bf16.mxu0 0
        %1147 = vmatpush1.bf16.xpose.msra.mxu0 0
        %1148 = vmatprep.subr.bf16.mxu0 0
        %1149 = vmatpush1.bf16.xpose.msra.mxu0 0
        %1150 = vmatprep.subr.bf16.mxu0 0
        %1151 = vmatpush1.bf16.xpose.msra.mxu0 0
        %1152 = vmatprep.subr.bf16.mxu0 0
        %1153 = vmatpush1.bf16.xpose.msra.mxu0 0
        %1154 = vmatprep.subr.bf16.mxu0 0
        %1155 = vmatpush1.bf16.xpose.msra.mxu0 %v1138
        %1156 = vmatprep.subr.bf16.mxu0 0
        %1157 = vmatpush2.bf16.xpose.msra.mxu0 0
        %1158 = vmatprep.subr.bf16.mxu0 0
        %1159 = vmatpush2.bf16.xpose.msra.mxu0 0
        %1160 = vmatprep.subr.bf16.mxu0 0
        %1161 = vmatpush2.bf16.xpose.msra.mxu0 0
        %1162 = vmatprep.subr.bf16.mxu0 0
        %1163 = vmatpush2.bf16.xpose.msra.mxu0 0
        %1164 = vmatprep.subr.bf16.mxu0 0
        %1165 = vmatpush2.bf16.xpose.msra.mxu0 0
        %1166 = vmatprep.subr.bf16.mxu0 0
        %1167 = vmatpush2.bf16.xpose.msra.mxu0 0
        %1168 = vmatprep.subr.bf16.mxu0 0
        %1169 = vmatpush2.bf16.xpose.msra.mxu0 0
        %1170 = vmatprep.subr.bf16.mxu0 0
        %1171 = vmatpush2.bf16.xpose.msra.mxu0 0
        %1172 = vmatprep.mubr.bf16.mxu0 0
        %1173 = vmatmul.mubr.bf16.gmra.mxu0 %v1135
        %v1174 = vpop.f32.mrf.mxu0
        %v1175 = vadd.f32 0.0, %v1174
        %v1176 = vpop.f32.mrf.mxu0
        %v1177 = vpop.f32.mrf.mxu0
        %v1178 = vpop.f32.mrf.mxu0
        %1179 = vdwg.mxu0
        %v1181 = vsel %vm857, %v796, 0
        %v1184 = vsel %vm857, %v826, 0
        %1186 = vmatprep.subr.bf16.mxu0 0
        %1187 = vmatpush1.bf16.xpose.msra.mxu0 0
        %1188 = vmatprep.subr.bf16.mxu0 0
        %1189 = vmatpush1.bf16.xpose.msra.mxu0 0
        %1190 = vmatprep.subr.bf16.mxu0 0
        %1191 = vmatpush1.bf16.xpose.msra.mxu0 0
        %1192 = vmatprep.subr.bf16.mxu0 0
        %1193 = vmatpush1.bf16.xpose.msra.mxu0 0
        %1194 = vmatprep.subr.bf16.mxu0 0
        %1195 = vmatpush1.bf16.xpose.msra.mxu0 0
        %1196 = vmatprep.subr.bf16.mxu0 0
        %1197 = vmatpush1.bf16.xpose.msra.mxu0 0
        %1198 = vmatprep.subr.bf16.mxu0 0
        %1199 = vmatpush1.bf16.xpose.msra.mxu0 0
        %1200 = vmatprep.subr.bf16.mxu0 0
        %1201 = vmatpush1.bf16.xpose.msra.mxu0 %v1184
        %1202 = vmatprep.subr.bf16.mxu0 0
        %1203 = vmatpush2.bf16.xpose.msra.mxu0 0
        %1204 = vmatprep.subr.bf16.mxu0 0
        %1205 = vmatpush2.bf16.xpose.msra.mxu0 0
        %1206 = vmatprep.subr.bf16.mxu0 0
        %1207 = vmatpush2.bf16.xpose.msra.mxu0 0
        %1208 = vmatprep.subr.bf16.mxu0 0
        %1209 = vmatpush2.bf16.xpose.msra.mxu0 0
        %1210 = vmatprep.subr.bf16.mxu0 0
        %1211 = vmatpush2.bf16.xpose.msra.mxu0 0
        %1212 = vmatprep.subr.bf16.mxu0 0
        %1213 = vmatpush2.bf16.xpose.msra.mxu0 0
        %1214 = vmatprep.subr.bf16.mxu0 0
        %1215 = vmatpush2.bf16.xpose.msra.mxu0 0
        %1216 = vmatprep.subr.bf16.mxu0 0
        %1217 = vmatpush2.bf16.xpose.msra.mxu0 0
        %1218 = vmatprep.mubr.bf16.mxu0 0
        %1219 = vmatmul.mubr.bf16.gmra.mxu0 %v1181
        %v1220 = vpop.f32.mrf.mxu0
        %v1221 = vadd.f32 0.0, %v1220
        %v1222 = vpop.f32.mrf.mxu0
        %v1223 = vpop.f32.mrf.mxu0
        %v1224 = vpop.f32.mrf.mxu0
        %1225 = vdwg.mxu0
        %vm1226 = vcmask 64512
        %v1227 = vsel %vm1226, %v899, -inf
        %1228 = vmax.xlane.f32.xlu0 %v1227
        %v1229 = vpop.xlane.xlu0 %1228
        %v1230 = vsel %vm1226, %v945, -inf
        %1231 = vmax.xlane.f32.xlu0 %v1230
        %v1232 = vpop.xlane.xlu0 %1231
        %v1233 = vsel %vm1226, %v991, -inf
        %1234 = vmax.xlane.f32.xlu0 %v1233
        %v1235 = vpop.xlane.xlu0 %1234
        %v1236 = vsel %vm1226, %v1037, -inf
        %1237 = vmax.xlane.f32.xlu0 %v1236
        %v1238 = vpop.xlane.xlu0 %1237
        %v1239 = vsel %vm1226, %v1083, -inf
        %1240 = vmax.xlane.f32.xlu0 %v1239
        %v1241 = vpop.xlane.xlu0 %1240
        %v1242 = vsel %vm1226, %v1129, -inf
        %1243 = vmax.xlane.f32.xlu0 %v1242
        %v1244 = vpop.xlane.xlu0 %1243
        %v1245 = vsel %vm1226, %v1175, -inf
        %1246 = vmax.xlane.f32.xlu0 %v1245
        %v1247 = vpop.xlane.xlu0 %1246
        %v1248 = vsel %vm1226, %v1221, -inf
        %1249 = vmax.xlane.f32.xlu0 %v1248
        %v1250 = vpop.xlane.xlu0 %1249
        %v1251 = vsub.f32 %v899, %v1229
        %v1252 = vsub.f32 %v945, %v1232
        %v1253 = vsub.f32 %v991, %v1235
        %v1254 = vsub.f32 %v1037, %v1238
        %v1255 = vsub.f32 %v1083, %v1241
        %v1256 = vsub.f32 %v1129, %v1244
        %v1257 = vsub.f32 %v1175, %v1247
        %v1258 = vsub.f32 %v1221, %v1250
        %v1259 = vmul.f32 %v1251, 1.442695
        %v1260 = vpow.pop %v1259
        %v1261 = vmul.f32 %v1252, 1.442695
        %v1262 = vpow.pop %v1261
        %v1263 = vmul.f32 %v1253, 1.442695
        %v1264 = vpow.pop %v1263
        %v1265 = vmul.f32 %v1254, 1.442695
        %v1266 = vpow.pop %v1265
        %v1267 = vmul.f32 %v1255, 1.442695
        %v1268 = vpow.pop %v1267
        %v1269 = vmul.f32 %v1256, 1.442695
        %v1270 = vpow.pop %v1269
        %v1271 = vmul.f32 %v1257, 1.442695
        %v1272 = vpow.pop %v1271
        %v1273 = vmul.f32 %v1258, 1.442695
        %v1274 = vpow.pop %v1273
        %v1275 = vsel %vm1226, %v1260, 0.0
        %1276 = vadd.xlane.f32.xlu0 %v1275
        %v1277 = vpop.xlane.xlu0 %1276
        %v1278 = vsel %vm1226, %v1262, 0.0
        %1279 = vadd.xlane.f32.xlu0 %v1278
        %v1280 = vpop.xlane.xlu0 %1279
        %v1281 = vsel %vm1226, %v1264, 0.0
        %1282 = vadd.xlane.f32.xlu0 %v1281
        %v1283 = vpop.xlane.xlu0 %1282
        %v1284 = vsel %vm1226, %v1266, 0.0
        %1285 = vadd.xlane.f32.xlu0 %v1284
        %v1286 = vpop.xlane.xlu0 %1285
        %v1287 = vsel %vm1226, %v1268, 0.0
        %1288 = vadd.xlane.f32.xlu0 %v1287
        %v1289 = vpop.xlane.xlu0 %1288
        %v1290 = vsel %vm1226, %v1270, 0.0
        %1291 = vadd.xlane.f32.xlu0 %v1290
        %v1292 = vpop.xlane.xlu0 %1291
        %v1293 = vsel %vm1226, %v1272, 0.0
        %1294 = vadd.xlane.f32.xlu0 %v1293
        %v1295 = vpop.xlane.xlu0 %1294
        %v1296 = vsel %vm1226, %v1274, 0.0
        %1297 = vadd.xlane.f32.xlu0 %v1296
        %v1298 = vpop.xlane.xlu0 %1297
        %v1299 = vrcp.pop %v1277
        %v1300 = vrcp.pop %v1280
        %v1301 = vrcp.pop %v1283
        %v1302 = vrcp.pop %v1286
        %v1303 = vrcp.pop %v1289
        %v1304 = vrcp.pop %v1292
        %v1305 = vrcp.pop %v1295
        %v1306 = vrcp.pop %v1298
        %v1307 = vmul.f32 %v1260, %v1299
        %v1308 = vmul.f32 %v1262, %v1300
        %v1309 = vmul.f32 %v1264, %v1301
        %v1310 = vmul.f32 %v1266, %v1302
        %v1311 = vmul.f32 %v1268, %v1303
        %v1312 = vmul.f32 %v1270, %v1304
        %v1313 = vmul.f32 %v1272, %v1305
        %v1314 = vmul.f32 %v1274, %v1306
        %v1315 = vpack.c.bf16 %v1307, %v1307
        %v1316 = vpack.c.bf16 %v1308, %v1308
        %v1317 = vpack.c.bf16 %v1309, %v1309
        %v1318 = vpack.c.bf16 %v1310, %v1310
        %v1319 = vpack.c.bf16 %v1311, %v1311
        %v1320 = vpack.c.bf16 %v1312, %v1312
        %v1321 = vpack.c.bf16 %v1313, %v1313
        %v1322 = vpack.c.bf16 %v1314, %v1314
        %v1324 = vsel %vm1226, %v1315, 0
        %vm1326 = vcmask 1043456
        %v1328 = vsel %vm1326, %v849, 0
        %1330 = vmatprep.subr.bf16.mxu0 0
        %1331 = vmatpush1.bf16.msra.mxu0 0
        %1332 = vmatprep.subr.bf16.mxu0 0
        %1333 = vmatpush1.bf16.msra.mxu0 0
        %1334 = vmatprep.subr.bf16.mxu0 0
        %1335 = vmatpush1.bf16.msra.mxu0 0
        %1336 = vmatprep.subr.bf16.mxu0 0
        %1337 = vmatpush1.bf16.msra.mxu0 0
        %1338 = vmatprep.subr.bf16.mxu0 0
        %1339 = vmatpush1.bf16.msra.mxu0 0
        %1340 = vmatprep.subr.bf16.mxu0 0
        %1341 = vmatpush1.bf16.msra.mxu0 0
        %1342 = vmatprep.subr.bf16.mxu0 0
        %1343 = vmatpush1.bf16.msra.mxu0 0
        %1344 = vmatprep.subr.bf16.mxu0 0
        %1345 = vmatpush1.bf16.msra.mxu0 %v1328
        %1346 = vmatprep.subr.bf16.mxu0 0
        %1347 = vmatpush2.bf16.msra.mxu0 0
        %1348 = vmatprep.subr.bf16.mxu0 0
        %1349 = vmatpush2.bf16.msra.mxu0 0
        %1350 = vmatprep.subr.bf16.mxu0 0
        %1351 = vmatpush2.bf16.msra.mxu0 0
        %1352 = vmatprep.subr.bf16.mxu0 0
        %1353 = vmatpush2.bf16.msra.mxu0 0
        %1354 = vmatprep.subr.bf16.mxu0 0
        %1355 = vmatpush2.bf16.msra.mxu0 0
        %1356 = vmatprep.subr.bf16.mxu0 0
        %1357 = vmatpush2.bf16.msra.mxu0 0
        %1358 = vmatprep.subr.bf16.mxu0 0
        %1359 = vmatpush2.bf16.msra.mxu0 0
        %1360 = vmatprep.subr.bf16.mxu0 0
        %1361 = vmatpush2.bf16.msra.mxu0 0
        %1362 = vmatprep.mubr.bf16.mxu0 0
        %1363 = vmatmul.mubr.bf16.gmra.mxu0 %v1324
        %v1364 = vpop.f32.mrf.mxu0
        %v1365 = vadd.f32 0.0, %v1364
        %v1366 = vpop.f32.mrf.mxu0
        %v1367 = vpop.f32.mrf.mxu0
        %v1368 = vpop.f32.mrf.mxu0
        %1369 = vdwg.mxu0
        %v1371 = vsel %vm1226, %v1316, 0
        %v1374 = vsel %vm1326, %v850, 0
        %1376 = vmatprep.subr.bf16.mxu0 0
        %1377 = vmatpush1.bf16.msra.mxu0 0
        %1378 = vmatprep.subr.bf16.mxu0 0
        %1379 = vmatpush1.bf16.msra.mxu0 0
        %1380 = vmatprep.subr.bf16.mxu0 0
        %1381 = vmatpush1.bf16.msra.mxu0 0
        %1382 = vmatprep.subr.bf16.mxu0 0
        %1383 = vmatpush1.bf16.msra.mxu0 0
        %1384 = vmatprep.subr.bf16.mxu0 0
        %1385 = vmatpush1.bf16.msra.mxu0 0
        %1386 = vmatprep.subr.bf16.mxu0 0
        %1387 = vmatpush1.bf16.msra.mxu0 0
        %1388 = vmatprep.subr.bf16.mxu0 0
        %1389 = vmatpush1.bf16.msra.mxu0 0
        %1390 = vmatprep.subr.bf16.mxu0 0
        %1391 = vmatpush1.bf16.msra.mxu0 %v1374
        %1392 = vmatprep.subr.bf16.mxu0 0
        %1393 = vmatpush2.bf16.msra.mxu0 0
        %1394 = vmatprep.subr.bf16.mxu0 0
        %1395 = vmatpush2.bf16.msra.mxu0 0
        %1396 = vmatprep.subr.bf16.mxu0 0
        %1397 = vmatpush2.bf16.msra.mxu0 0
        %1398 = vmatprep.subr.bf16.mxu0 0
        %1399 = vmatpush2.bf16.msra.mxu0 0
        %1400 = vmatprep.subr.bf16.mxu0 0
        %1401 = vmatpush2.bf16.msra.mxu0 0
        %1402 = vmatprep.subr.bf16.mxu0 0
        %1403 = vmatpush2.bf16.msra.mxu0 0
        %1404 = vmatprep.subr.bf16.mxu0 0
        %1405 = vmatpush2.bf16.msra.mxu0 0
        %1406 = vmatprep.subr.bf16.mxu0 0
        %1407 = vmatpush2.bf16.msra.mxu0 0
        %1408 = vmatprep.mubr.bf16.mxu0 0
        %1409 = vmatmul.mubr.bf16.gmra.mxu0 %v1371
        %v1410 = vpop.f32.mrf.mxu0
        %v1411 = vadd.f32 0.0, %v1410
        %v1412 = vpop.f32.mrf.mxu0
        %v1413 = vpop.f32.mrf.mxu0
        %v1414 = vpop.f32.mrf.mxu0
        %1415 = vdwg.mxu0
        %v1417 = vsel %vm1226, %v1317, 0
        %v1420 = vsel %vm1326, %v851, 0
        %1422 = vmatprep.subr.bf16.mxu0 0
        %1423 = vmatpush1.bf16.msra.mxu0 0
        %1424 = vmatprep.subr.bf16.mxu0 0
        %1425 = vmatpush1.bf16.msra.mxu0 0
        %1426 = vmatprep.subr.bf16.mxu0 0
        %1427 = vmatpush1.bf16.msra.mxu0 0
        %1428 = vmatprep.subr.bf16.mxu0 0
        %1429 = vmatpush1.bf16.msra.mxu0 0
        %1430 = vmatprep.subr.bf16.mxu0 0
        %1431 = vmatpush1.bf16.msra.mxu0 0
        %1432 = vmatprep.subr.bf16.mxu0 0
        %1433 = vmatpush1.bf16.msra.mxu0 0
        %1434 = vmatprep.subr.bf16.mxu0 0
        %1435 = vmatpush1.bf16.msra.mxu0 0
        %1436 = vmatprep.subr.bf16.mxu0 0
        %1437 = vmatpush1.bf16.msra.mxu0 %v1420
        %1438 = vmatprep.subr.bf16.mxu0 0
        %1439 = vmatpush2.bf16.msra.mxu0 0
        %1440 = vmatprep.subr.bf16.mxu0 0
        %1441 = vmatpush2.bf16.msra.mxu0 0
        %1442 = vmatprep.subr.bf16.mxu0 0
        %1443 = vmatpush2.bf16.msra.mxu0 0
        %1444 = vmatprep.subr.bf16.mxu0 0
        %1445 = vmatpush2.bf16.msra.mxu0 0
        %1446 = vmatprep.subr.bf16.mxu0 0
        %1447 = vmatpush2.bf16.msra.mxu0 0
        %1448 = vmatprep.subr.bf16.mxu0 0
        %1449 = vmatpush2.bf16.msra.mxu0 0
        %1450 = vmatprep.subr.bf16.mxu0 0
        %1451 = vmatpush2.bf16.msra.mxu0 0
        %1452 = vmatprep.subr.bf16.mxu0 0
        %1453 = vmatpush2.bf16.msra.mxu0 0
        %1454 = vmatprep.mubr.bf16.mxu0 0
        %1455 = vmatmul.mubr.bf16.gmra.mxu0 %v1417
        %v1456 = vpop.f32.mrf.mxu0
        %v1457 = vadd.f32 0.0, %v1456
        %v1458 = vpop.f32.mrf.mxu0
        %v1459 = vpop.f32.mrf.mxu0
        %v1460 = vpop.f32.mrf.mxu0
        %1461 = vdwg.mxu0
        %v1463 = vsel %vm1226, %v1318, 0
        %v1466 = vsel %vm1326, %v852, 0
        %1468 = vmatprep.subr.bf16.mxu0 0
        %1469 = vmatpush1.bf16.msra.mxu0 0
        %1470 = vmatprep.subr.bf16.mxu0 0
        %1471 = vmatpush1.bf16.msra.mxu0 0
        %1472 = vmatprep.subr.bf16.mxu0 0
        %1473 = vmatpush1.bf16.msra.mxu0 0
        %1474 = vmatprep.subr.bf16.mxu0 0
        %1475 = vmatpush1.bf16.msra.mxu0 0
        %1476 = vmatprep.subr.bf16.mxu0 0
        %1477 = vmatpush1.bf16.msra.mxu0 0
        %1478 = vmatprep.subr.bf16.mxu0 0
        %1479 = vmatpush1.bf16.msra.mxu0 0
        %1480 = vmatprep.subr.bf16.mxu0 0
        %1481 = vmatpush1.bf16.msra.mxu0 0
        %1482 = vmatprep.subr.bf16.mxu0 0
        %1483 = vmatpush1.bf16.msra.mxu0 %v1466
        %1484 = vmatprep.subr.bf16.mxu0 0
        %1485 = vmatpush2.bf16.msra.mxu0 0
        %1486 = vmatprep.subr.bf16.mxu0 0
        %1487 = vmatpush2.bf16.msra.mxu0 0
        %1488 = vmatprep.subr.bf16.mxu0 0
        %1489 = vmatpush2.bf16.msra.mxu0 0
        %1490 = vmatprep.subr.bf16.mxu0 0
        %1491 = vmatpush2.bf16.msra.mxu0 0
        %1492 = vmatprep.subr.bf16.mxu0 0
        %1493 = vmatpush2.bf16.msra.mxu0 0
        %1494 = vmatprep.subr.bf16.mxu0 0
        %1495 = vmatpush2.bf16.msra.mxu0 0
        %1496 = vmatprep.subr.bf16.mxu0 0
        %1497 = vmatpush2.bf16.msra.mxu0 0
        %1498 = vmatprep.subr.bf16.mxu0 0
        %1499 = vmatpush2.bf16.msra.mxu0 0
        %1500 = vmatprep.mubr.bf16.mxu0 0
        %1501 = vmatmul.mubr.bf16.gmra.mxu0 %v1463
        %v1502 = vpop.f32.mrf.mxu0
        %v1503 = vadd.f32 0.0, %v1502
        %v1504 = vpop.f32.mrf.mxu0
        %v1505 = vpop.f32.mrf.mxu0
        %v1506 = vpop.f32.mrf.mxu0
        %1507 = vdwg.mxu0
        %v1509 = vsel %vm1226, %v1319, 0
        %v1512 = vsel %vm1326, %v853, 0
        %1514 = vmatprep.subr.bf16.mxu0 0
        %1515 = vmatpush1.bf16.msra.mxu0 0
        %1516 = vmatprep.subr.bf16.mxu0 0
        %1517 = vmatpush1.bf16.msra.mxu0 0
        %1518 = vmatprep.subr.bf16.mxu0 0
        %1519 = vmatpush1.bf16.msra.mxu0 0
        %1520 = vmatprep.subr.bf16.mxu0 0
        %1521 = vmatpush1.bf16.msra.mxu0 0
        %1522 = vmatprep.subr.bf16.mxu0 0
        %1523 = vmatpush1.bf16.msra.mxu0 0
        %1524 = vmatprep.subr.bf16.mxu0 0
        %1525 = vmatpush1.bf16.msra.mxu0 0
        %1526 = vmatprep.subr.bf16.mxu0 0
        %1527 = vmatpush1.bf16.msra.mxu0 0
        %1528 = vmatprep.subr.bf16.mxu0 0
        %1529 = vmatpush1.bf16.msra.mxu0 %v1512
        %1530 = vmatprep.subr.bf16.mxu0 0
        %1531 = vmatpush2.bf16.msra.mxu0 0
        %1532 = vmatprep.subr.bf16.mxu0 0
        %1533 = vmatpush2.bf16.msra.mxu0 0
        %1534 = vmatprep.subr.bf16.mxu0 0
        %1535 = vmatpush2.bf16.msra.mxu0 0
        %1536 = vmatprep.subr.bf16.mxu0 0
        %1537 = vmatpush2.bf16.msra.mxu0 0
        %1538 = vmatprep.subr.bf16.mxu0 0
        %1539 = vmatpush2.bf16.msra.mxu0 0
        %1540 = vmatprep.subr.bf16.mxu0 0
        %1541 = vmatpush2.bf16.msra.mxu0 0
        %1542 = vmatprep.subr.bf16.mxu0 0
        %1543 = vmatpush2.bf16.msra.mxu0 0
        %1544 = vmatprep.subr.bf16.mxu0 0
        %1545 = vmatpush2.bf16.msra.mxu0 0
        %1546 = vmatprep.mubr.bf16.mxu0 0
        %1547 = vmatmul.mubr.bf16.gmra.mxu0 %v1509
        %v1548 = vpop.f32.mrf.mxu0
        %v1549 = vadd.f32 0.0, %v1548
        %v1550 = vpop.f32.mrf.mxu0
        %v1551 = vpop.f32.mrf.mxu0
        %v1552 = vpop.f32.mrf.mxu0
        %1553 = vdwg.mxu0
        %v1555 = vsel %vm1226, %v1320, 0
        %v1558 = vsel %vm1326, %v854, 0
        %1560 = vmatprep.subr.bf16.mxu0 0
        %1561 = vmatpush1.bf16.msra.mxu0 0
        %1562 = vmatprep.subr.bf16.mxu0 0
        %1563 = vmatpush1.bf16.msra.mxu0 0
        %1564 = vmatprep.subr.bf16.mxu0 0
        %1565 = vmatpush1.bf16.msra.mxu0 0
        %1566 = vmatprep.subr.bf16.mxu0 0
        %1567 = vmatpush1.bf16.msra.mxu0 0
        %1568 = vmatprep.subr.bf16.mxu0 0
        %1569 = vmatpush1.bf16.msra.mxu0 0
        %1570 = vmatprep.subr.bf16.mxu0 0
        %1571 = vmatpush1.bf16.msra.mxu0 0
        %1572 = vmatprep.subr.bf16.mxu0 0
        %1573 = vmatpush1.bf16.msra.mxu0 0
        %1574 = vmatprep.subr.bf16.mxu0 0
        %1575 = vmatpush1.bf16.msra.mxu0 %v1558
        %1576 = vmatprep.subr.bf16.mxu0 0
        %1577 = vmatpush2.bf16.msra.mxu0 0
        %1578 = vmatprep.subr.bf16.mxu0 0
        %1579 = vmatpush2.bf16.msra.mxu0 0
        %1580 = vmatprep.subr.bf16.mxu0 0
        %1581 = vmatpush2.bf16.msra.mxu0 0
        %1582 = vmatprep.subr.bf16.mxu0 0
        %1583 = vmatpush2.bf16.msra.mxu0 0
        %1584 = vmatprep.subr.bf16.mxu0 0
        %1585 = vmatpush2.bf16.msra.mxu0 0
        %1586 = vmatprep.subr.bf16.mxu0 0
        %1587 = vmatpush2.bf16.msra.mxu0 0
        %1588 = vmatprep.subr.bf16.mxu0 0
        %1589 = vmatpush2.bf16.msra.mxu0 0
        %1590 = vmatprep.subr.bf16.mxu0 0
        %1591 = vmatpush2.bf16.msra.mxu0 0
        %1592 = vmatprep.mubr.bf16.mxu0 0
        %1593 = vmatmul.mubr.bf16.gmra.mxu0 %v1555
        %v1594 = vpop.f32.mrf.mxu0
        %v1595 = vadd.f32 0.0, %v1594
        %v1596 = vpop.f32.mrf.mxu0
        %v1597 = vpop.f32.mrf.mxu0
        %v1598 = vpop.f32.mrf.mxu0
        %1599 = vdwg.mxu0
        %v1601 = vsel %vm1226, %v1321, 0
        %v1604 = vsel %vm1326, %v855, 0
        %1606 = vmatprep.subr.bf16.mxu0 0
        %1607 = vmatpush1.bf16.msra.mxu0 0
        %1608 = vmatprep.subr.bf16.mxu0 0
        %1609 = vmatpush1.bf16.msra.mxu0 0
        %1610 = vmatprep.subr.bf16.mxu0 0
        %1611 = vmatpush1.bf16.msra.mxu0 0
        %1612 = vmatprep.subr.bf16.mxu0 0
        %1613 = vmatpush1.bf16.msra.mxu0 0
        %1614 = vmatprep.subr.bf16.mxu0 0
        %1615 = vmatpush1.bf16.msra.mxu0 0
        %1616 = vmatprep.subr.bf16.mxu0 0
        %1617 = vmatpush1.bf16.msra.mxu0 0
        %1618 = vmatprep.subr.bf16.mxu0 0
        %1619 = vmatpush1.bf16.msra.mxu0 0
        %1620 = vmatprep.subr.bf16.mxu0 0
        %1621 = vmatpush1.bf16.msra.mxu0 %v1604
        %1622 = vmatprep.subr.bf16.mxu0 0
        %1623 = vmatpush2.bf16.msra.mxu0 0
        %1624 = vmatprep.subr.bf16.mxu0 0
        %1625 = vmatpush2.bf16.msra.mxu0 0
        %1626 = vmatprep.subr.bf16.mxu0 0
        %1627 = vmatpush2.bf16.msra.mxu0 0
        %1628 = vmatprep.subr.bf16.mxu0 0
        %1629 = vmatpush2.bf16.msra.mxu0 0
        %1630 = vmatprep.subr.bf16.mxu0 0
        %1631 = vmatpush2.bf16.msra.mxu0 0
        %1632 = vmatprep.subr.bf16.mxu0 0
        %1633 = vmatpush2.bf16.msra.mxu0 0
        %1634 = vmatprep.subr.bf16.mxu0 0
        %1635 = vmatpush2.bf16.msra.mxu0 0
        %1636 = vmatprep.subr.bf16.mxu0 0
        %1637 = vmatpush2.bf16.msra.mxu0 0
        %1638 = vmatprep.mubr.bf16.mxu0 0
        %1639 = vmatmul.mubr.bf16.gmra.mxu0 %v1601
        %v1640 = vpop.f32.mrf.mxu0
        %v1641 = vadd.f32 0.0, %v1640
        %v1642 = vpop.f32.mrf.mxu0
        %v1643 = vpop.f32.mrf.mxu0
        %v1644 = vpop.f32.mrf.mxu0
        %1645 = vdwg.mxu0
        %v1647 = vsel %vm1226, %v1322, 0
        %v1650 = vsel %vm1326, %v856, 0
        %1652 = vmatprep.subr.bf16.mxu0 0
        %1653 = vmatpush1.bf16.msra.mxu0 0
        %1654 = vmatprep.subr.bf16.mxu0 0
        %1655 = vmatpush1.bf16.msra.mxu0 0
        %1656 = vmatprep.subr.bf16.mxu0 0
        %1657 = vmatpush1.bf16.msra.mxu0 0
        %1658 = vmatprep.subr.bf16.mxu0 0
        %1659 = vmatpush1.bf16.msra.mxu0 0
        %1660 = vmatprep.subr.bf16.mxu0 0
        %1661 = vmatpush1.bf16.msra.mxu0 0
        %1662 = vmatprep.subr.bf16.mxu0 0
        %1663 = vmatpush1.bf16.msra.mxu0 0
        %1664 = vmatprep.subr.bf16.mxu0 0
        %1665 = vmatpush1.bf16.msra.mxu0 0
        %1666 = vmatprep.subr.bf16.mxu0 0
        %1667 = vmatpush1.bf16.msra.mxu0 %v1650
        %1668 = vmatprep.subr.bf16.mxu0 0
        %1669 = vmatpush2.bf16.msra.mxu0 0
        %1670 = vmatprep.subr.bf16.mxu0 0
        %1671 = vmatpush2.bf16.msra.mxu0 0
        %1672 = vmatprep.subr.bf16.mxu0 0
        %1673 = vmatpush2.bf16.msra.mxu0 0
        %1674 = vmatprep.subr.bf16.mxu0 0
        %1675 = vmatpush2.bf16.msra.mxu0 0
        %1676 = vmatprep.subr.bf16.mxu0 0
        %1677 = vmatpush2.bf16.msra.mxu0 0
        %1678 = vmatprep.subr.bf16.mxu0 0
        %1679 = vmatpush2.bf16.msra.mxu0 0
        %1680 = vmatprep.subr.bf16.mxu0 0
        %1681 = vmatpush2.bf16.msra.mxu0 0
        %1682 = vmatprep.subr.bf16.mxu0 0
        %1683 = vmatpush2.bf16.msra.mxu0 0
        %1684 = vmatprep.mubr.bf16.mxu0 0
        %1685 = vmatmul.mubr.bf16.gmra.mxu0 %v1647
        %v1686 = vpop.f32.mrf.mxu0
        %v1687 = vadd.f32 0.0, %v1686
        %v1688 = vpop.f32.mrf.mxu0
        %v1689 = vpop.f32.mrf.mxu0
        %v1690 = vpop.f32.mrf.mxu0
        %1691 = vdwg.mxu0
        %1693 = vrot.lane.b32.xlu0 %v1411, 4
        %v1694 = vpop.permute.xlu0 %1693
        %1697 = vrot.lane.b32.xlu0 %v1457, 8
        %v1698 = vpop.permute.xlu0 %1697
        %1701 = vrot.lane.b32.xlu0 %v1503, 12
        %v1702 = vpop.permute.xlu0 %1701
        %1705 = vrot.lane.b32.xlu0 %v1549, 16
        %v1706 = vpop.permute.xlu0 %1705
        %1709 = vrot.lane.b32.xlu0 %v1595, 20
        %v1710 = vpop.permute.xlu0 %1709
        %1713 = vrot.lane.b32.xlu0 %v1641, 24
        %v1714 = vpop.permute.xlu0 %1713
        %1717 = vrot.lane.b32.xlu0 %v1687, 28
        %v1718 = vpop.permute.xlu0 %1717
        %v1720 = vsel %vm857, %v1365, %v1694
        %v1721 = vsel %vm1226, %v1720, %v1698
        %vm1722 = vcmask 97280
        %v1723 = vsel %vm1722, %v1721, %v1702
        %vm1724 = vcmask 130048
        %v1725 = vsel %vm1724, %v1723, %v1706
        %vm1726 = vcmask 162816
        %v1727 = vsel %vm1726, %v1725, %v1710
        %vm1728 = vcmask 195584
        %v1729 = vsel %vm1728, %v1727, %v1714
        %vm1730 = vcmask 228352
        %v1731 = vsel %vm1730, %v1729, %v1718
        %v1732 = vpack.c.bf16 %v1731, %v1731
        %s1733 = scalar_lea.vmem %s547, 48
        %v1734 = vld [vmem:[%s1733] sm:$0xf]
        %v1735 = vld [vmem:[%s1733 + $0x4] sm:$0xf]
        %v1736 = vld [vmem:[%s1733 + $0x8] sm:$0xf]
        %v1737 = vld [vmem:[%s1733 + $0xc] sm:$0xf]
        %v1738 = vlaneseq
        %v1739 = vshrl.u32 %v1738, 7
        %v1740 = vsub.s32 3, %v1739
        %v1741 = vrot.slane %v576, %v1740
        %v1746 = vunpack.c.l.b16 %v1734
        %v1747 = vunpack.c.l.b16 %v1735
        %v1748 = vunpack.c.l.b16 %v1736
        %v1749 = vunpack.c.l.b16 %v1737
        %v1750 = vpack.c.b16 %v1747, %v1746
        %v1751 = vpack.c.b16 %v1749, %v1748
        %v1755 = vsel %vm601, %v1732, 0
        %1757 = vmatprep.subr.bf16.mxu0 0
        %1758 = vmatpush1.bf16.msra.mxu0 0
        %1759 = vmatprep.subr.bf16.mxu0 0
        %1760 = vmatpush1.bf16.msra.mxu0 0
        %1761 = vmatprep.subr.bf16.mxu0 0
        %1762 = vmatpush1.bf16.msra.mxu0 0
        %1763 = vmatprep.subr.bf16.mxu0 0
        %1764 = vmatpush1.bf16.msra.mxu0 0
        %1765 = vmatprep.subr.bf16.mxu0 0
        %1766 = vmatpush1.bf16.msra.mxu0 0
        %1767 = vmatprep.subr.bf16.mxu0 0
        %1768 = vmatpush1.bf16.msra.mxu0 0
        %1769 = vmatprep.subr.bf16.mxu0 0
        %1770 = vmatpush1.bf16.msra.mxu0 %v1751
        %1771 = vmatprep.subr.bf16.mxu0 0
        %1772 = vmatpush1.bf16.msra.mxu0 %v1750
        %1773 = vmatprep.subr.bf16.mxu0 0
        %1774 = vmatpush2.bf16.msra.mxu0 0
        %1775 = vmatprep.subr.bf16.mxu0 0
        %1776 = vmatpush2.bf16.msra.mxu0 0
        %1777 = vmatprep.subr.bf16.mxu0 0
        %1778 = vmatpush2.bf16.msra.mxu0 0
        %1779 = vmatprep.subr.bf16.mxu0 0
        %1780 = vmatpush2.bf16.msra.mxu0 0
        %1781 = vmatprep.subr.bf16.mxu0 0
        %1782 = vmatpush2.bf16.msra.mxu0 0
        %1783 = vmatprep.subr.bf16.mxu0 0
        %1784 = vmatpush2.bf16.msra.mxu0 0
        %1785 = vmatprep.subr.bf16.mxu0 0
        %1786 = vmatpush2.bf16.msra.mxu0 0
        %1787 = vmatprep.subr.bf16.mxu0 0
        %1788 = vmatpush2.bf16.msra.mxu0 0
        %1789 = vmatprep.mubr.bf16.mxu0 0
        %1790 = vmatmul.mubr.bf16.gmra.mxu0 %v1755
        %v1791 = vpop.f32.mrf.mxu0
        %v1792 = vadd.f32 %v1741, %v1791
        %v1793 = vpop.f32.mrf.mxu0
        %v1794 = vpop.f32.mrf.mxu0
        %v1795 = vpop.f32.mrf.mxu0
        %1796 = vdwg.mxu0
        %v1797 = vadd.f32 %v573, %v1792
        %v1798 = vsel %vm601, %v1797, 0.0
        %1799 = vadd.xlane.f32.xlu0 %v1798
        %v1800 = vpop.xlane.xlu0 %1799
        %v1801 = vrcp.pop 32.0
        %v1802 = vmul.f32 %v1800, %v1801
        %v1803 = vmul.f32 %v1797, %v1797
        %v1804 = vsel %vm601, %v1803, 0.0
        %1805 = vadd.xlane.f32.xlu0 %v1804
        %v1806 = vpop.xlane.xlu0 %1805
        %v1807 = vmul.f32 %v1806, %v1801
        %v1808 = vmul.f32 %v1802, %v1802
        %v1809 = vsub.f32 %v1807, %v1808
        %v1810 = vsub.f32 %v1797, %v1802
        %v1811 = vadd.f32 %v1809, 1e-05
        %v1812 = vrsqrt.pop %v1811
        %v1813 = vmul.f32 %v1810, %v1812
        %v1814 = vlaneseq
        %v1815 = vshrl.u32 %v1814, 7
        %v1816 = vsub.s32 0, %v1815
        %v1817 = vrot.slane %v579, %v1816
        %v1818 = vmul.f32 %v1813, %v1817
        %v1819 = vlaneseq
        %v1820 = vshrl.u32 %v1819, 7
        %v1821 = vsub.s32 1, %v1820
        %v1822 = vrot.slane %v579, %v1821
        %v1823 = vadd.f32 %v1818, %v1822
        %v1824 = vpack.c.bf16 %v1823, %v1823
        %v1825 = vld [vmem:[%s462] sm:$0xf]
        %v1826 = vld [vmem:[%s462 + $0x4] sm:$0xf]
        %v1827 = vld [vmem:[%s462 + $0x8] sm:$0xf]
        %v1828 = vld [vmem:[%s462 + $0xc] sm:$0xf]
        %v1829 = vlaneseq
        %v1830 = vshrl.u32 %v1829, 7
        %v1831 = vsub.s32 4, %v1830
        %v1832 = vrot.slane %v576, %v1831
        %v1837 = vunpack.c.l.b16 %v1825
        %v1838 = vunpack.c.l.b16 %v1826
        %v1839 = vunpack.c.l.b16 %v1827
        %v1840 = vunpack.c.l.b16 %v1828
        %v1841 = vpack.c.b16 %v1838, %v1837
        %v1842 = vpack.c.b16 %v1840, %v1839
        %v1846 = vsel %vm601, %v1824, 0
        %1848 = vmatprep.subr.bf16.mxu0 0
        %1849 = vmatpush1.bf16.msra.mxu0 0
        %1850 = vmatprep.subr.bf16.mxu0 0
        %1851 = vmatpush1.bf16.msra.mxu0 0
        %1852 = vmatprep.subr.bf16.mxu0 0
        %1853 = vmatpush1.bf16.msra.mxu0 0
        %1854 = vmatprep.subr.bf16.mxu0 0
        %1855 = vmatpush1.bf16.msra.mxu0 0
        %1856 = vmatprep.subr.bf16.mxu0 0
        %1857 = vmatpush1.bf16.msra.mxu0 0
        %1858 = vmatprep.subr.bf16.mxu0 0
        %1859 = vmatpush1.bf16.msra.mxu0 0
        %1860 = vmatprep.subr.bf16.mxu0 0
        %1861 = vmatpush1.bf16.msra.mxu0 %v1842
        %1862 = vmatprep.subr.bf16.mxu0 0
        %1863 = vmatpush1.bf16.msra.mxu0 %v1841
        %1864 = vmatprep.subr.bf16.mxu0 0
        %1865 = vmatpush2.bf16.msra.mxu0 0
        %1866 = vmatprep.subr.bf16.mxu0 0
        %1867 = vmatpush2.bf16.msra.mxu0 0
        %1868 = vmatprep.subr.bf16.mxu0 0
        %1869 = vmatpush2.bf16.msra.mxu0 0
        %1870 = vmatprep.subr.bf16.mxu0 0
        %1871 = vmatpush2.bf16.msra.mxu0 0
        %1872 = vmatprep.subr.bf16.mxu0 0
        %1873 = vmatpush2.bf16.msra.mxu0 0
        %1874 = vmatprep.subr.bf16.mxu0 0
        %1875 = vmatpush2.bf16.msra.mxu0 0
        %1876 = vmatprep.subr.bf16.mxu0 0
        %1877 = vmatpush2.bf16.msra.mxu0 0
        %1878 = vmatprep.subr.bf16.mxu0 0
        %1879 = vmatpush2.bf16.msra.mxu0 0
        %1880 = vmatprep.mubr.bf16.mxu0 0
        %1881 = vmatmul.mubr.bf16.gmra.mxu0 %v1846
        %v1882 = vpop.f32.mrf.mxu0
        %v1883 = vadd.f32 %v1832, %v1882
        %v1884 = vpop.f32.mrf.mxu0
        %v1885 = vpop.f32.mrf.mxu0
        %v1886 = vpop.f32.mrf.mxu0
        %1887 = vdwg.mxu0
        %s1888 = scalar_lea.vmem %s462, 16 [#allocation8]
        %v1889 = vld [vmem:[%s1888] sm:$0xf]
        %v1890 = vld [vmem:[%s1888 + $0x4] sm:$0xf]
        %v1891 = vld [vmem:[%s1888 + $0x8] sm:$0xf]
        %v1892 = vld [vmem:[%s1888 + $0xc] sm:$0xf]
        %v1893 = vlaneseq
        %v1894 = vshrl.u32 %v1893, 7
        %v1895 = vsub.s32 5, %v1894
        %v1896 = vrot.slane %v576, %v1895
        %v1901 = vunpack.c.l.b16 %v1889
        %v1902 = vunpack.c.l.b16 %v1890
        %v1903 = vunpack.c.l.b16 %v1891
        %v1904 = vunpack.c.l.b16 %v1892
        %v1905 = vpack.c.b16 %v1902, %v1901
        %v1906 = vpack.c.b16 %v1904, %v1903
        %v1910 = vsel %vm601, %v575, 0
        %1912 = vmatprep.subr.bf16.mxu0 0
        %1913 = vmatpush1.bf16.msra.mxu0 0
        %1914 = vmatprep.subr.bf16.mxu0 0
        %1915 = vmatpush1.bf16.msra.mxu0 0
        %1916 = vmatprep.subr.bf16.mxu0 0
        %1917 = vmatpush1.bf16.msra.mxu0 0
        %1918 = vmatprep.subr.bf16.mxu0 0
        %1919 = vmatpush1.bf16.msra.mxu0 0
        %1920 = vmatprep.subr.bf16.mxu0 0
        %1921 = vmatpush1.bf16.msra.mxu0 0
        %1922 = vmatprep.subr.bf16.mxu0 0
        %1923 = vmatpush1.bf16.msra.mxu0 0
        %1924 = vmatprep.subr.bf16.mxu0 0
        %1925 = vmatpush1.bf16.msra.mxu0 %v1906
        %1926 = vmatprep.subr.bf16.mxu0 0
        %1927 = vmatpush1.bf16.msra.mxu0 %v1905
        %1928 = vmatprep.subr.bf16.mxu0 0
        %1929 = vmatpush2.bf16.msra.mxu0 0
        %1930 = vmatprep.subr.bf16.mxu0 0
        %1931 = vmatpush2.bf16.msra.mxu0 0
        %1932 = vmatprep.subr.bf16.mxu0 0
        %1933 = vmatpush2.bf16.msra.mxu0 0
        %1934 = vmatprep.subr.bf16.mxu0 0
        %1935 = vmatpush2.bf16.msra.mxu0 0
        %1936 = vmatprep.subr.bf16.mxu0 0
        %1937 = vmatpush2.bf16.msra.mxu0 0
        %1938 = vmatprep.subr.bf16.mxu0 0
        %1939 = vmatpush2.bf16.msra.mxu0 0
        %1940 = vmatprep.subr.bf16.mxu0 0
        %1941 = vmatpush2.bf16.msra.mxu0 0
        %1942 = vmatprep.subr.bf16.mxu0 0
        %1943 = vmatpush2.bf16.msra.mxu0 0
        %1944 = vmatprep.mubr.bf16.mxu0 0
        %1945 = vmatmul.mubr.bf16.gmra.mxu0 %v1910
        %v1946 = vpop.f32.mrf.mxu0
        %v1947 = vadd.f32 %v1896, %v1946
        %v1948 = vpop.f32.mrf.mxu0
        %v1949 = vpop.f32.mrf.mxu0
        %v1950 = vpop.f32.mrf.mxu0
        %1951 = vdwg.mxu0
        %s1952 = scalar_lea.vmem %s462, 32 [#allocation8]
        %v1953 = vld [vmem:[%s1952] sm:$0xf]
        %v1954 = vld [vmem:[%s1952 + $0x4] sm:$0xf]
        %v1955 = vld [vmem:[%s1952 + $0x8] sm:$0xf]
        %v1956 = vld [vmem:[%s1952 + $0xc] sm:$0xf]
        %v1957 = vlaneseq
        %v1958 = vshrl.u32 %v1957, 7
        %v1959 = vsub.s32 6, %v1958
        %v1960 = vrot.slane %v576, %v1959
        %v1965 = vunpack.c.l.b16 %v1953
        %v1966 = vunpack.c.l.b16 %v1954
        %v1967 = vunpack.c.l.b16 %v1955
        %v1968 = vunpack.c.l.b16 %v1956
        %v1969 = vpack.c.b16 %v1966, %v1965
        %v1970 = vpack.c.b16 %v1968, %v1967
        %1973 = vmatprep.subr.bf16.mxu0 0
        %1974 = vmatpush1.bf16.msra.mxu0 0
        %1975 = vmatprep.subr.bf16.mxu0 0
        %1976 = vmatpush1.bf16.msra.mxu0 0
        %1977 = vmatprep.subr.bf16.mxu0 0
        %1978 = vmatpush1.bf16.msra.mxu0 0
        %1979 = vmatprep.subr.bf16.mxu0 0
        %1980 = vmatpush1.bf16.msra.mxu0 0
        %1981 = vmatprep.subr.bf16.mxu0 0
        %1982 = vmatpush1.bf16.msra.mxu0 0
        %1983 = vmatprep.subr.bf16.mxu0 0
        %1984 = vmatpush1.bf16.msra.mxu0 0
        %1985 = vmatprep.subr.bf16.mxu0 0
        %1986 = vmatpush1.bf16.msra.mxu0 %v1970
        %1987 = vmatprep.subr.bf16.mxu0 0
        %1988 = vmatpush1.bf16.msra.mxu0 %v1969
        %1989 = vmatprep.subr.bf16.mxu0 0
        %1990 = vmatpush2.bf16.msra.mxu0 0
        %1991 = vmatprep.subr.bf16.mxu0 0
        %1992 = vmatpush2.bf16.msra.mxu0 0
        %1993 = vmatprep.subr.bf16.mxu0 0
        %1994 = vmatpush2.bf16.msra.mxu0 0
        %1995 = vmatprep.subr.bf16.mxu0 0
        %1996 = vmatpush2.bf16.msra.mxu0 0
        %1997 = vmatprep.subr.bf16.mxu0 0
        %1998 = vmatpush2.bf16.msra.mxu0 0
        %1999 = vmatprep.subr.bf16.mxu0 0
        %2000 = vmatpush2.bf16.msra.mxu0 0
        %2001 = vmatprep.subr.bf16.mxu0 0
        %2002 = vmatpush2.bf16.msra.mxu0 0
        %2003 = vmatprep.subr.bf16.mxu0 0
        %2004 = vmatpush2.bf16.msra.mxu0 0
        %2005 = vmatprep.mubr.bf16.mxu0 0
        %2006 = vmatmul.mubr.bf16.gmra.mxu0 %v1910
        %v2007 = vpop.f32.mrf.mxu0
        %v2008 = vadd.f32 %v1960, %v2007
        %v2009 = vpop.f32.mrf.mxu0
        %v2010 = vpop.f32.mrf.mxu0
        %v2011 = vpop.f32.mrf.mxu0
        %2012 = vdwg.mxu0
        %2014 = vrot.lane.b32.xlu0 %v1883, 124
        %v2015 = vpop.permute.xlu0 %2014
        %2017 = vrot.lane.b32.xlu0 %v1883, 120
        %v2018 = vpop.permute.xlu0 %2017
        %2020 = vrot.lane.b32.xlu0 %v1883, 116
        %v2021 = vpop.permute.xlu0 %2020
        %2023 = vrot.lane.b32.xlu0 %v1883, 112
        %v2024 = vpop.permute.xlu0 %2023
        %2026 = vrot.lane.b32.xlu0 %v1883, 108
        %v2027 = vpop.permute.xlu0 %2026
        %2029 = vrot.lane.b32.xlu0 %v1883, 104
        %v2030 = vpop.permute.xlu0 %2029
        %2032 = vrot.lane.b32.xlu0 %v1883, 100
        %v2033 = vpop.permute.xlu0 %2032
        %v2035 = vpack.c.bf16 %v1883, %v1883
        %v2036 = vpack.c.bf16 %v2015, %v2015
        %v2037 = vpack.c.bf16 %v2018, %v2018
        %v2038 = vpack.c.bf16 %v2021, %v2021
        %v2039 = vpack.c.bf16 %v2024, %v2024
        %v2040 = vpack.c.bf16 %v2027, %v2027
        %v2041 = vpack.c.bf16 %v2030, %v2030
        %v2042 = vpack.c.bf16 %v2033, %v2033
        %2044 = vrot.lane.b32.xlu0 %v1947, 124
        %v2045 = vpop.permute.xlu0 %2044
        %2047 = vrot.lane.b32.xlu0 %v1947, 120
        %v2048 = vpop.permute.xlu0 %2047
        %2050 = vrot.lane.b32.xlu0 %v1947, 116
        %v2051 = vpop.permute.xlu0 %2050
        %2053 = vrot.lane.b32.xlu0 %v1947, 112
        %v2054 = vpop.permute.xlu0 %2053
        %2056 = vrot.lane.b32.xlu0 %v1947, 108
        %v2057 = vpop.permute.xlu0 %2056
        %2059 = vrot.lane.b32.xlu0 %v1947, 104
        %v2060 = vpop.permute.xlu0 %2059
        %2062 = vrot.lane.b32.xlu0 %v1947, 100
        %v2063 = vpop.permute.xlu0 %2062
        %v2065 = vpack.c.bf16 %v1947, %v1947
        %v2066 = vpack.c.bf16 %v2045, %v2045
        %v2067 = vpack.c.bf16 %v2048, %v2048
        %v2068 = vpack.c.bf16 %v2051, %v2051
        %v2069 = vpack.c.bf16 %v2054, %v2054
        %v2070 = vpack.c.bf16 %v2057, %v2057
        %v2071 = vpack.c.bf16 %v2060, %v2060
        %v2072 = vpack.c.bf16 %v2063, %v2063
        %2074 = vrot.lane.b32.xlu0 %v2008, 124
        %v2075 = vpop.permute.xlu0 %2074
        %2077 = vrot.lane.b32.xlu0 %v2008, 120
        %v2078 = vpop.permute.xlu0 %2077
        %2080 = vrot.lane.b32.xlu0 %v2008, 116
        %v2081 = vpop.permute.xlu0 %2080
        %2083 = vrot.lane.b32.xlu0 %v2008, 112
        %v2084 = vpop.permute.xlu0 %2083
        %2086 = vrot.lane.b32.xlu0 %v2008, 108
        %v2087 = vpop.permute.xlu0 %2086
        %2089 = vrot.lane.b32.xlu0 %v2008, 104
        %v2090 = vpop.permute.xlu0 %2089
        %2092 = vrot.lane.b32.xlu0 %v2008, 100
        %v2093 = vpop.permute.xlu0 %2092
        %v2095 = vpack.c.bf16 %v2008, %v2008
        %v2096 = vpack.c.bf16 %v2075, %v2075
        %v2097 = vpack.c.bf16 %v2078, %v2078
        %v2098 = vpack.c.bf16 %v2081, %v2081
        %v2099 = vpack.c.bf16 %v2084, %v2084
        %v2100 = vpack.c.bf16 %v2087, %v2087
        %v2101 = vpack.c.bf16 %v2090, %v2090
        %v2102 = vpack.c.bf16 %v2093, %v2093
        %v2104 = vsel %vm857, %v2035, 0
        %v2107 = vsel %vm857, %v2065, 0
        %2109 = vmatprep.subr.bf16.mxu0 0
        %2110 = vmatpush1.bf16.xpose.msra.mxu0 0
        %2111 = vmatprep.subr.bf16.mxu0 0
        %2112 = vmatpush1.bf16.xpose.msra.mxu0 0
        %2113 = vmatprep.subr.bf16.mxu0 0
        %2114 = vmatpush1.bf16.xpose.msra.mxu0 0
        %2115 = vmatprep.subr.bf16.mxu0 0
        %2116 = vmatpush1.bf16.xpose.msra.mxu0 0
        %2117 = vmatprep.subr.bf16.mxu0 0
        %2118 = vmatpush1.bf16.xpose.msra.mxu0 0
        %2119 = vmatprep.subr.bf16.mxu0 0
        %2120 = vmatpush1.bf16.xpose.msra.mxu0 0
        %2121 = vmatprep.subr.bf16.mxu0 0
        %2122 = vmatpush1.bf16.xpose.msra.mxu0 0
        %2123 = vmatprep.subr.bf16.mxu0 0
        %2124 = vmatpush1.bf16.xpose.msra.mxu0 %v2107
        %2125 = vmatprep.subr.bf16.mxu0 0
        %2126 = vmatpush2.bf16.xpose.msra.mxu0 0
        %2127 = vmatprep.subr.bf16.mxu0 0
        %2128 = vmatpush2.bf16.xpose.msra.mxu0 0
        %2129 = vmatprep.subr.bf16.mxu0 0
        %2130 = vmatpush2.bf16.xpose.msra.mxu0 0
        %2131 = vmatprep.subr.bf16.mxu0 0
        %2132 = vmatpush2.bf16.xpose.msra.mxu0 0
        %2133 = vmatprep.subr.bf16.mxu0 0
        %2134 = vmatpush2.bf16.xpose.msra.mxu0 0
        %2135 = vmatprep.subr.bf16.mxu0 0
        %2136 = vmatpush2.bf16.xpose.msra.mxu0 0
        %2137 = vmatprep.subr.bf16.mxu0 0
        %2138 = vmatpush2.bf16.xpose.msra.mxu0 0
        %2139 = vmatprep.subr.bf16.mxu0 0
        %2140 = vmatpush2.bf16.xpose.msra.mxu0 0
        %2141 = vmatprep.mubr.bf16.mxu0 0
        %2142 = vmatmul.mubr.bf16.gmra.mxu0 %v2104
        %v2143 = vpop.f32.mrf.mxu0
        %v2144 = vadd.f32 0.0, %v2143
        %v2145 = vpop.f32.mrf.mxu0
        %v2146 = vpop.f32.mrf.mxu0
        %v2147 = vpop.f32.mrf.mxu0
        %2148 = vdwg.mxu0
        %v2150 = vsel %vm857, %v2036, 0
        %v2153 = vsel %vm857, %v2066, 0
        %2155 = vmatprep.subr.bf16.mxu0 0
        %2156 = vmatpush1.bf16.xpose.msra.mxu0 0
        %2157 = vmatprep.subr.bf16.mxu0 0
        %2158 = vmatpush1.bf16.xpose.msra.mxu0 0
        %2159 = vmatprep.subr.bf16.mxu0 0
        %2160 = vmatpush1.bf16.xpose.msra.mxu0 0
        %2161 = vmatprep.subr.bf16.mxu0 0
        %2162 = vmatpush1.bf16.xpose.msra.mxu0 0
        %2163 = vmatprep.subr.bf16.mxu0 0
        %2164 = vmatpush1.bf16.xpose.msra.mxu0 0
        %2165 = vmatprep.subr.bf16.mxu0 0
        %2166 = vmatpush1.bf16.xpose.msra.mxu0 0
        %2167 = vmatprep.subr.bf16.mxu0 0
        %2168 = vmatpush1.bf16.xpose.msra.mxu0 0
        %2169 = vmatprep.subr.bf16.mxu0 0
        %2170 = vmatpush1.bf16.xpose.msra.mxu0 %v2153
        %2171 = vmatprep.subr.bf16.mxu0 0
        %2172 = vmatpush2.bf16.xpose.msra.mxu0 0
        %2173 = vmatprep.subr.bf16.mxu0 0
        %2174 = vmatpush2.bf16.xpose.msra.mxu0 0
        %2175 = vmatprep.subr.bf16.mxu0 0
        %2176 = vmatpush2.bf16.xpose.msra.mxu0 0
        %2177 = vmatprep.subr.bf16.mxu0 0
        %2178 = vmatpush2.bf16.xpose.msra.mxu0 0
        %2179 = vmatprep.subr.bf16.mxu0 0
        %2180 = vmatpush2.bf16.xpose.msra.mxu0 0
        %2181 = vmatprep.subr.bf16.mxu0 0
        %2182 = vmatpush2.bf16.xpose.msra.mxu0 0
        %2183 = vmatprep.subr.bf16.mxu0 0
        %2184 = vmatpush2.bf16.xpose.msra.mxu0 0
        %2185 = vmatprep.subr.bf16.mxu0 0
        %2186 = vmatpush2.bf16.xpose.msra.mxu0 0
        %2187 = vmatprep.mubr.bf16.mxu0 0
        %2188 = vmatmul.mubr.bf16.gmra.mxu0 %v2150
        %v2189 = vpop.f32.mrf.mxu0
        %v2190 = vadd.f32 0.0, %v2189
        %v2191 = vpop.f32.mrf.mxu0
        %v2192 = vpop.f32.mrf.mxu0
        %v2193 = vpop.f32.mrf.mxu0
        %2194 = vdwg.mxu0
        %v2196 = vsel %vm857, %v2037, 0
        %v2199 = vsel %vm857, %v2067, 0
        %2201 = vmatprep.subr.bf16.mxu0 0
        %2202 = vmatpush1.bf16.xpose.msra.mxu0 0
        %2203 = vmatprep.subr.bf16.mxu0 0
        %2204 = vmatpush1.bf16.xpose.msra.mxu0 0
        %2205 = vmatprep.subr.bf16.mxu0 0
        %2206 = vmatpush1.bf16.xpose.msra.mxu0 0
        %2207 = vmatprep.subr.bf16.mxu0 0
        %2208 = vmatpush1.bf16.xpose.msra.mxu0 0
        %2209 = vmatprep.subr.bf16.mxu0 0
        %2210 = vmatpush1.bf16.xpose.msra.mxu0 0
        %2211 = vmatprep.subr.bf16.mxu0 0
        %2212 = vmatpush1.bf16.xpose.msra.mxu0 0
        %2213 = vmatprep.subr.bf16.mxu0 0
        %2214 = vmatpush1.bf16.xpose.msra.mxu0 0
        %2215 = vmatprep.subr.bf16.mxu0 0
        %2216 = vmatpush1.bf16.xpose.msra.mxu0 %v2199
        %2217 = vmatprep.subr.bf16.mxu0 0
        %2218 = vmatpush2.bf16.xpose.msra.mxu0 0
        %2219 = vmatprep.subr.bf16.mxu0 0
        %2220 = vmatpush2.bf16.xpose.msra.mxu0 0
        %2221 = vmatprep.subr.bf16.mxu0 0
        %2222 = vmatpush2.bf16.xpose.msra.mxu0 0
        %2223 = vmatprep.subr.bf16.mxu0 0
        %2224 = vmatpush2.bf16.xpose.msra.mxu0 0
        %2225 = vmatprep.subr.bf16.mxu0 0
        %2226 = vmatpush2.bf16.xpose.msra.mxu0 0
        %2227 = vmatprep.subr.bf16.mxu0 0
        %2228 = vmatpush2.bf16.xpose.msra.mxu0 0
        %2229 = vmatprep.subr.bf16.mxu0 0
        %2230 = vmatpush2.bf16.xpose.msra.mxu0 0
        %2231 = vmatprep.subr.bf16.mxu0 0
        %2232 = vmatpush2.bf16.xpose.msra.mxu0 0
        %2233 = vmatprep.mubr.bf16.mxu0 0
        %2234 = vmatmul.mubr.bf16.gmra.mxu0 %v2196
        %v2235 = vpop.f32.mrf.mxu0
        %v2236 = vadd.f32 0.0, %v2235
        %v2237 = vpop.f32.mrf.mxu0
        %v2238 = vpop.f32.mrf.mxu0
        %v2239 = vpop.f32.mrf.mxu0
        %2240 = vdwg.mxu0
        %v2242 = vsel %vm857, %v2038, 0
        %v2245 = vsel %vm857, %v2068, 0
        %2247 = vmatprep.subr.bf16.mxu0 0
        %2248 = vmatpush1.bf16.xpose.msra.mxu0 0
        %2249 = vmatprep.subr.bf16.mxu0 0
        %2250 = vmatpush1.bf16.xpose.msra.mxu0 0
        %2251 = vmatprep.subr.bf16.mxu0 0
        %2252 = vmatpush1.bf16.xpose.msra.mxu0 0
        %2253 = vmatprep.subr.bf16.mxu0 0
        %2254 = vmatpush1.bf16.xpose.msra.mxu0 0
        %2255 = vmatprep.subr.bf16.mxu0 0
        %2256 = vmatpush1.bf16.xpose.msra.mxu0 0
        %2257 = vmatprep.subr.bf16.mxu0 0
        %2258 = vmatpush1.bf16.xpose.msra.mxu0 0
        %2259 = vmatprep.subr.bf16.mxu0 0
        %2260 = vmatpush1.bf16.xpose.msra.mxu0 0
        %2261 = vmatprep.subr.bf16.mxu0 0
        %2262 = vmatpush1.bf16.xpose.msra.mxu0 %v2245
        %2263 = vmatprep.subr.bf16.mxu0 0
        %2264 = vmatpush2.bf16.xpose.msra.mxu0 0
        %2265 = vmatprep.subr.bf16.mxu0 0
        %2266 = vmatpush2.bf16.xpose.msra.mxu0 0
        %2267 = vmatprep.subr.bf16.mxu0 0
        %2268 = vmatpush2.bf16.xpose.msra.mxu0 0
        %2269 = vmatprep.subr.bf16.mxu0 0
        %2270 = vmatpush2.bf16.xpose.msra.mxu0 0
        %2271 = vmatprep.subr.bf16.mxu0 0
        %2272 = vmatpush2.bf16.xpose.msra.mxu0 0
        %2273 = vmatprep.subr.bf16.mxu0 0
        %2274 = vmatpush2.bf16.xpose.msra.mxu0 0
        %2275 = vmatprep.subr.bf16.mxu0 0
        %2276 = vmatpush2.bf16.xpose.msra.mxu0 0
        %2277 = vmatprep.subr.bf16.mxu0 0
        %2278 = vmatpush2.bf16.xpose.msra.mxu0 0
        %2279 = vmatprep.mubr.bf16.mxu0 0
        %2280 = vmatmul.mubr.bf16.gmra.mxu0 %v2242
        %v2281 = vpop.f32.mrf.mxu0
        %v2282 = vadd.f32 0.0, %v2281
        %v2283 = vpop.f32.mrf.mxu0
        %v2284 = vpop.f32.mrf.mxu0
        %v2285 = vpop.f32.mrf.mxu0
        %2286 = vdwg.mxu0
        %v2288 = vsel %vm857, %v2039, 0
        %v2291 = vsel %vm857, %v2069, 0
        %2293 = vmatprep.subr.bf16.mxu0 0
        %2294 = vmatpush1.bf16.xpose.msra.mxu0 0
        %2295 = vmatprep.subr.bf16.mxu0 0
        %2296 = vmatpush1.bf16.xpose.msra.mxu0 0
        %2297 = vmatprep.subr.bf16.mxu0 0
        %2298 = vmatpush1.bf16.xpose.msra.mxu0 0
        %2299 = vmatprep.subr.bf16.mxu0 0
        %2300 = vmatpush1.bf16.xpose.msra.mxu0 0
        %2301 = vmatprep.subr.bf16.mxu0 0
        %2302 = vmatpush1.bf16.xpose.msra.mxu0 0
        %2303 = vmatprep.subr.bf16.mxu0 0
        %2304 = vmatpush1.bf16.xpose.msra.mxu0 0
        %2305 = vmatprep.subr.bf16.mxu0 0
        %2306 = vmatpush1.bf16.xpose.msra.mxu0 0
        %2307 = vmatprep.subr.bf16.mxu0 0
        %2308 = vmatpush1.bf16.xpose.msra.mxu0 %v2291
        %2309 = vmatprep.subr.bf16.mxu0 0
        %2310 = vmatpush2.bf16.xpose.msra.mxu0 0
        %2311 = vmatprep.subr.bf16.mxu0 0
        %2312 = vmatpush2.bf16.xpose.msra.mxu0 0
        %2313 = vmatprep.subr.bf16.mxu0 0
        %2314 = vmatpush2.bf16.xpose.msra.mxu0 0
        %2315 = vmatprep.subr.bf16.mxu0 0
        %2316 = vmatpush2.bf16.xpose.msra.mxu0 0
        %2317 = vmatprep.subr.bf16.mxu0 0
        %2318 = vmatpush2.bf16.xpose.msra.mxu0 0
        %2319 = vmatprep.subr.bf16.mxu0 0
        %2320 = vmatpush2.bf16.xpose.msra.mxu0 0
        %2321 = vmatprep.subr.bf16.mxu0 0
        %2322 = vmatpush2.bf16.xpose.msra.mxu0 0
        %2323 = vmatprep.subr.bf16.mxu0 0
        %2324 = vmatpush2.bf16.xpose.msra.mxu0 0
        %2325 = vmatprep.mubr.bf16.mxu0 0
        %2326 = vmatmul.mubr.bf16.gmra.mxu0 %v2288
        %v2327 = vpop.f32.mrf.mxu0
        %v2328 = vadd.f32 0.0, %v2327
        %v2329 = vpop.f32.mrf.mxu0
        %v2330 = vpop.f32.mrf.mxu0
        %v2331 = vpop.f32.mrf.mxu0
        %2332 = vdwg.mxu0
        %v2334 = vsel %vm857, %v2040, 0
        %v2337 = vsel %vm857, %v2070, 0
        %2339 = vmatprep.subr.bf16.mxu0 0
        %2340 = vmatpush1.bf16.xpose.msra.mxu0 0
        %2341 = vmatprep.subr.bf16.mxu0 0
        %2342 = vmatpush1.bf16.xpose.msra.mxu0 0
        %2343 = vmatprep.subr.bf16.mxu0 0
        %2344 = vmatpush1.bf16.xpose.msra.mxu0 0
        %2345 = vmatprep.subr.bf16.mxu0 0
        %2346 = vmatpush1.bf16.xpose.msra.mxu0 0
        %2347 = vmatprep.subr.bf16.mxu0 0
        %2348 = vmatpush1.bf16.xpose.msra.mxu0 0
        %2349 = vmatprep.subr.bf16.mxu0 0
        %2350 = vmatpush1.bf16.xpose.msra.mxu0 0
        %2351 = vmatprep.subr.bf16.mxu0 0
        %2352 = vmatpush1.bf16.xpose.msra.mxu0 0
        %2353 = vmatprep.subr.bf16.mxu0 0
        %2354 = vmatpush1.bf16.xpose.msra.mxu0 %v2337
        %2355 = vmatprep.subr.bf16.mxu0 0
        %2356 = vmatpush2.bf16.xpose.msra.mxu0 0
        %2357 = vmatprep.subr.bf16.mxu0 0
        %2358 = vmatpush2.bf16.xpose.msra.mxu0 0
        %2359 = vmatprep.subr.bf16.mxu0 0
        %2360 = vmatpush2.bf16.xpose.msra.mxu0 0
        %2361 = vmatprep.subr.bf16.mxu0 0
        %2362 = vmatpush2.bf16.xpose.msra.mxu0 0
        %2363 = vmatprep.subr.bf16.mxu0 0
        %2364 = vmatpush2.bf16.xpose.msra.mxu0 0
        %2365 = vmatprep.subr.bf16.mxu0 0
        %2366 = vmatpush2.bf16.xpose.msra.mxu0 0
        %2367 = vmatprep.subr.bf16.mxu0 0
        %2368 = vmatpush2.bf16.xpose.msra.mxu0 0
        %2369 = vmatprep.subr.bf16.mxu0 0
        %2370 = vmatpush2.bf16.xpose.msra.mxu0 0
        %2371 = vmatprep.mubr.bf16.mxu0 0
        %2372 = vmatmul.mubr.bf16.gmra.mxu0 %v2334
        %v2373 = vpop.f32.mrf.mxu0
        %v2374 = vadd.f32 0.0, %v2373
        %v2375 = vpop.f32.mrf.mxu0
        %v2376 = vpop.f32.mrf.mxu0
        %v2377 = vpop.f32.mrf.mxu0
        %2378 = vdwg.mxu0
        %v2380 = vsel %vm857, %v2041, 0
        %v2383 = vsel %vm857, %v2071, 0
        %2385 = vmatprep.subr.bf16.mxu0 0
        %2386 = vmatpush1.bf16.xpose.msra.mxu0 0
        %2387 = vmatprep.subr.bf16.mxu0 0
        %2388 = vmatpush1.bf16.xpose.msra.mxu0 0
        %2389 = vmatprep.subr.bf16.mxu0 0
        %2390 = vmatpush1.bf16.xpose.msra.mxu0 0
        %2391 = vmatprep.subr.bf16.mxu0 0
        %2392 = vmatpush1.bf16.xpose.msra.mxu0 0
        %2393 = vmatprep.subr.bf16.mxu0 0
        %2394 = vmatpush1.bf16.xpose.msra.mxu0 0
        %2395 = vmatprep.subr.bf16.mxu0 0
        %2396 = vmatpush1.bf16.xpose.msra.mxu0 0
        %2397 = vmatprep.subr.bf16.mxu0 0
        %2398 = vmatpush1.bf16.xpose.msra.mxu0 0
        %2399 = vmatprep.subr.bf16.mxu0 0
        %2400 = vmatpush1.bf16.xpose.msra.mxu0 %v2383
        %2401 = vmatprep.subr.bf16.mxu0 0
        %2402 = vmatpush2.bf16.xpose.msra.mxu0 0
        %2403 = vmatprep.subr.bf16.mxu0 0
        %2404 = vmatpush2.bf16.xpose.msra.mxu0 0
        %2405 = vmatprep.subr.bf16.mxu0 0
        %2406 = vmatpush2.bf16.xpose.msra.mxu0 0
        %2407 = vmatprep.subr.bf16.mxu0 0
        %2408 = vmatpush2.bf16.xpose.msra.mxu0 0
        %2409 = vmatprep.subr.bf16.mxu0 0
        %2410 = vmatpush2.bf16.xpose.msra.mxu0 0
        %2411 = vmatprep.subr.bf16.mxu0 0
        %2412 = vmatpush2.bf16.xpose.msra.mxu0 0
        %2413 = vmatprep.subr.bf16.mxu0 0
        %2414 = vmatpush2.bf16.xpose.msra.mxu0 0
        %2415 = vmatprep.subr.bf16.mxu0 0
        %2416 = vmatpush2.bf16.xpose.msra.mxu0 0
        %2417 = vmatprep.mubr.bf16.mxu0 0
        %2418 = vmatmul.mubr.bf16.gmra.mxu0 %v2380
        %v2419 = vpop.f32.mrf.mxu0
        %v2420 = vadd.f32 0.0, %v2419
        %v2421 = vpop.f32.mrf.mxu0
        %v2422 = vpop.f32.mrf.mxu0
        %v2423 = vpop.f32.mrf.mxu0
        %2424 = vdwg.mxu0
        %v2426 = vsel %vm857, %v2042, 0
        %v2429 = vsel %vm857, %v2072, 0
        %2431 = vmatprep.subr.bf16.mxu0 0
        %2432 = vmatpush1.bf16.xpose.msra.mxu0 0
        %2433 = vmatprep.subr.bf16.mxu0 0
        %2434 = vmatpush1.bf16.xpose.msra.mxu0 0
        %2435 = vmatprep.subr.bf16.mxu0 0
        %2436 = vmatpush1.bf16.xpose.msra.mxu0 0
        %2437 = vmatprep.subr.bf16.mxu0 0
        %2438 = vmatpush1.bf16.xpose.msra.mxu0 0
        %2439 = vmatprep.subr.bf16.mxu0 0
        %2440 = vmatpush1.bf16.xpose.msra.mxu0 0
        %2441 = vmatprep.subr.bf16.mxu0 0
        %2442 = vmatpush1.bf16.xpose.msra.mxu0 0
        %2443 = vmatprep.subr.bf16.mxu0 0
        %2444 = vmatpush1.bf16.xpose.msra.mxu0 0
        %2445 = vmatprep.subr.bf16.mxu0 0
        %2446 = vmatpush1.bf16.xpose.msra.mxu0 %v2429
        %2447 = vmatprep.subr.bf16.mxu0 0
        %2448 = vmatpush2.bf16.xpose.msra.mxu0 0
        %2449 = vmatprep.subr.bf16.mxu0 0
        %2450 = vmatpush2.bf16.xpose.msra.mxu0 0
        %2451 = vmatprep.subr.bf16.mxu0 0
        %2452 = vmatpush2.bf16.xpose.msra.mxu0 0
        %2453 = vmatprep.subr.bf16.mxu0 0
        %2454 = vmatpush2.bf16.xpose.msra.mxu0 0
        %2455 = vmatprep.subr.bf16.mxu0 0
        %2456 = vmatpush2.bf16.xpose.msra.mxu0 0
        %2457 = vmatprep.subr.bf16.mxu0 0
        %2458 = vmatpush2.bf16.xpose.msra.mxu0 0
        %2459 = vmatprep.subr.bf16.mxu0 0
        %2460 = vmatpush2.bf16.xpose.msra.mxu0 0
        %2461 = vmatprep.subr.bf16.mxu0 0
        %2462 = vmatpush2.bf16.xpose.msra.mxu0 0
        %2463 = vmatprep.mubr.bf16.mxu0 0
        %2464 = vmatmul.mubr.bf16.gmra.mxu0 %v2426
        %v2465 = vpop.f32.mrf.mxu0
        %v2466 = vadd.f32 0.0, %v2465
        %v2467 = vpop.f32.mrf.mxu0
        %v2468 = vpop.f32.mrf.mxu0
        %v2469 = vpop.f32.mrf.mxu0
        %2470 = vdwg.mxu0
        %v2471 = vsel %vm857, %v2144, -inf
        %2472 = vmax.xlane.f32.xlu0 %v2471
        %v2473 = vpop.xlane.xlu0 %2472
        %v2474 = vsel %vm857, %v2190, -inf
        %2475 = vmax.xlane.f32.xlu0 %v2474
        %v2476 = vpop.xlane.xlu0 %2475
        %v2477 = vsel %vm857, %v2236, -inf
        %2478 = vmax.xlane.f32.xlu0 %v2477
        %v2479 = vpop.xlane.xlu0 %2478
        %v2480 = vsel %vm857, %v2282, -inf
        %2481 = vmax.xlane.f32.xlu0 %v2480
        %v2482 = vpop.xlane.xlu0 %2481
        %v2483 = vsel %vm857, %v2328, -inf
        %2484 = vmax.xlane.f32.xlu0 %v2483
        %v2485 = vpop.xlane.xlu0 %2484
        %v2486 = vsel %vm857, %v2374, -inf
        %2487 = vmax.xlane.f32.xlu0 %v2486
        %v2488 = vpop.xlane.xlu0 %2487
        %v2489 = vsel %vm857, %v2420, -inf
        %2490 = vmax.xlane.f32.xlu0 %v2489
        %v2491 = vpop.xlane.xlu0 %2490
        %v2492 = vsel %vm857, %v2466, -inf
        %2493 = vmax.xlane.f32.xlu0 %v2492
        %v2494 = vpop.xlane.xlu0 %2493
        %v2495 = vsub.f32 %v2144, %v2473
        %v2496 = vsub.f32 %v2190, %v2476
        %v2497 = vsub.f32 %v2236, %v2479
        %v2498 = vsub.f32 %v2282, %v2482
        %v2499 = vsub.f32 %v2328, %v2485
        %v2500 = vsub.f32 %v2374, %v2488
        %v2501 = vsub.f32 %v2420, %v2491
        %v2502 = vsub.f32 %v2466, %v2494
        %v2503 = vmul.f32 %v2495, 1.442695
        %v2504 = vpow.pop %v2503
        %v2505 = vmul.f32 %v2496, 1.442695
        %v2506 = vpow.pop %v2505
        %v2507 = vmul.f32 %v2497, 1.442695
        %v2508 = vpow.pop %v2507
        %v2509 = vmul.f32 %v2498, 1.442695
        %v2510 = vpow.pop %v2509
        %v2511 = vmul.f32 %v2499, 1.442695
        %v2512 = vpow.pop %v2511
        %v2513 = vmul.f32 %v2500, 1.442695
        %v2514 = vpow.pop %v2513
        %v2515 = vmul.f32 %v2501, 1.442695
        %v2516 = vpow.pop %v2515
        %v2517 = vmul.f32 %v2502, 1.442695
        %v2518 = vpow.pop %v2517
        %v2519 = vsel %vm857, %v2504, 0.0
        %2520 = vadd.xlane.f32.xlu0 %v2519
        %v2521 = vpop.xlane.xlu0 %2520
        %v2522 = vsel %vm857, %v2506, 0.0
        %2523 = vadd.xlane.f32.xlu0 %v2522
        %v2524 = vpop.xlane.xlu0 %2523
        %v2525 = vsel %vm857, %v2508, 0.0
        %2526 = vadd.xlane.f32.xlu0 %v2525
        %v2527 = vpop.xlane.xlu0 %2526
        %v2528 = vsel %vm857, %v2510, 0.0
        %2529 = vadd.xlane.f32.xlu0 %v2528
        %v2530 = vpop.xlane.xlu0 %2529
        %v2531 = vsel %vm857, %v2512, 0.0
        %2532 = vadd.xlane.f32.xlu0 %v2531
        %v2533 = vpop.xlane.xlu0 %2532
        %v2534 = vsel %vm857, %v2514, 0.0
        %2535 = vadd.xlane.f32.xlu0 %v2534
        %v2536 = vpop.xlane.xlu0 %2535
        %v2537 = vsel %vm857, %v2516, 0.0
        %2538 = vadd.xlane.f32.xlu0 %v2537
        %v2539 = vpop.xlane.xlu0 %2538
        %v2540 = vsel %vm857, %v2518, 0.0
        %2541 = vadd.xlane.f32.xlu0 %v2540
        %v2542 = vpop.xlane.xlu0 %2541
        %v2543 = vrcp.pop %v2521
        %v2544 = vrcp.pop %v2524
        %v2545 = vrcp.pop %v2527
        %v2546 = vrcp.pop %v2530
        %v2547 = vrcp.pop %v2533
        %v2548 = vrcp.pop %v2536
        %v2549 = vrcp.pop %v2539
        %v2550 = vrcp.pop %v2542
        %v2551 = vmul.f32 %v2504, %v2543
        %v2552 = vmul.f32 %v2506, %v2544
        %v2553 = vmul.f32 %v2508, %v2545
        %v2554 = vmul.f32 %v2510, %v2546
        %v2555 = vmul.f32 %v2512, %v2547
        %v2556 = vmul.f32 %v2514, %v2548
        %v2557 = vmul.f32 %v2516, %v2549
        %v2558 = vmul.f32 %v2518, %v2550
        %v2559 = vpack.c.bf16 %v2551, %v2551
        %v2560 = vpack.c.bf16 %v2552, %v2552
        %v2561 = vpack.c.bf16 %v2553, %v2553
        %v2562 = vpack.c.bf16 %v2554, %v2554
        %v2563 = vpack.c.bf16 %v2555, %v2555
        %v2564 = vpack.c.bf16 %v2556, %v2556
        %v2565 = vpack.c.bf16 %v2557, %v2557
        %v2566 = vpack.c.bf16 %v2558, %v2558
        %v2568 = vsel %vm857, %v2559, 0
        %vm2570 = vcmask 1041408
        %v2572 = vsel %vm2570, %v2095, 0
        %2574 = vmatprep.subr.bf16.mxu0 0
        %2575 = vmatpush1.bf16.msra.mxu0 0
        %2576 = vmatprep.subr.bf16.mxu0 0
        %2577 = vmatpush1.bf16.msra.mxu0 0
        %2578 = vmatprep.subr.bf16.mxu0 0
        %2579 = vmatpush1.bf16.msra.mxu0 0
        %2580 = vmatprep.subr.bf16.mxu0 0
        %2581 = vmatpush1.bf16.msra.mxu0 0
        %2582 = vmatprep.subr.bf16.mxu0 0
        %2583 = vmatpush1.bf16.msra.mxu0 0
        %2584 = vmatprep.subr.bf16.mxu0 0
        %2585 = vmatpush1.bf16.msra.mxu0 0
        %2586 = vmatprep.subr.bf16.mxu0 0
        %2587 = vmatpush1.bf16.msra.mxu0 0
        %2588 = vmatprep.subr.bf16.mxu0 0
        %2589 = vmatpush1.bf16.msra.mxu0 %v2572
        %2590 = vmatprep.subr.bf16.mxu0 0
        %2591 = vmatpush2.bf16.msra.mxu0 0
        %2592 = vmatprep.subr.bf16.mxu0 0
        %2593 = vmatpush2.bf16.msra.mxu0 0
        %2594 = vmatprep.subr.bf16.mxu0 0
        %2595 = vmatpush2.bf16.msra.mxu0 0
        %2596 = vmatprep.subr.bf16.mxu0 0
        %2597 = vmatpush2.bf16.msra.mxu0 0
        %2598 = vmatprep.subr.bf16.mxu0 0
        %2599 = vmatpush2.bf16.msra.mxu0 0
        %2600 = vmatprep.subr.bf16.mxu0 0
        %2601 = vmatpush2.bf16.msra.mxu0 0
        %2602 = vmatprep.subr.bf16.mxu0 0
        %2603 = vmatpush2.bf16.msra.mxu0 0
        %2604 = vmatprep.subr.bf16.mxu0 0
        %2605 = vmatpush2.bf16.msra.mxu0 0
        %2606 = vmatprep.mubr.bf16.mxu0 0
        %2607 = vmatmul.mubr.bf16.gmra.mxu0 %v2568
        %v2608 = vpop.f32.mrf.mxu0
        %v2609 = vadd.f32 0.0, %v2608
        %v2610 = vpop.f32.mrf.mxu0
        %v2611 = vpop.f32.mrf.mxu0
        %v2612 = vpop.f32.mrf.mxu0
        %2613 = vdwg.mxu0
        %v2615 = vsel %vm857, %v2560, 0
        %v2618 = vsel %vm2570, %v2096, 0
        %2620 = vmatprep.subr.bf16.mxu0 0
        %2621 = vmatpush1.bf16.msra.mxu0 0
        %2622 = vmatprep.subr.bf16.mxu0 0
        %2623 = vmatpush1.bf16.msra.mxu0 0
        %2624 = vmatprep.subr.bf16.mxu0 0
        %2625 = vmatpush1.bf16.msra.mxu0 0
        %2626 = vmatprep.subr.bf16.mxu0 0
        %2627 = vmatpush1.bf16.msra.mxu0 0
        %2628 = vmatprep.subr.bf16.mxu0 0
        %2629 = vmatpush1.bf16.msra.mxu0 0
        %2630 = vmatprep.subr.bf16.mxu0 0
        %2631 = vmatpush1.bf16.msra.mxu0 0
        %2632 = vmatprep.subr.bf16.mxu0 0
        %2633 = vmatpush1.bf16.msra.mxu0 0
        %2634 = vmatprep.subr.bf16.mxu0 0
        %2635 = vmatpush1.bf16.msra.mxu0 %v2618
        %2636 = vmatprep.subr.bf16.mxu0 0
        %2637 = vmatpush2.bf16.msra.mxu0 0
        %2638 = vmatprep.subr.bf16.mxu0 0
        %2639 = vmatpush2.bf16.msra.mxu0 0
        %2640 = vmatprep.subr.bf16.mxu0 0
        %2641 = vmatpush2.bf16.msra.mxu0 0
        %2642 = vmatprep.subr.bf16.mxu0 0
        %2643 = vmatpush2.bf16.msra.mxu0 0
        %2644 = vmatprep.subr.bf16.mxu0 0
        %2645 = vmatpush2.bf16.msra.mxu0 0
        %2646 = vmatprep.subr.bf16.mxu0 0
        %2647 = vmatpush2.bf16.msra.mxu0 0
        %2648 = vmatprep.subr.bf16.mxu0 0
        %2649 = vmatpush2.bf16.msra.mxu0 0
        %2650 = vmatprep.subr.bf16.mxu0 0
        %2651 = vmatpush2.bf16.msra.mxu0 0
        %2652 = vmatprep.mubr.bf16.mxu0 0
        %2653 = vmatmul.mubr.bf16.gmra.mxu0 %v2615
        %v2654 = vpop.f32.mrf.mxu0
        %v2655 = vadd.f32 0.0, %v2654
        %v2656 = vpop.f32.mrf.mxu0
        %v2657 = vpop.f32.mrf.mxu0
        %v2658 = vpop.f32.mrf.mxu0
        %2659 = vdwg.mxu0
        %v2661 = vsel %vm857, %v2561, 0
        %v2664 = vsel %vm2570, %v2097, 0
        %2666 = vmatprep.subr.bf16.mxu0 0
        %2667 = vmatpush1.bf16.msra.mxu0 0
        %2668 = vmatprep.subr.bf16.mxu0 0
        %2669 = vmatpush1.bf16.msra.mxu0 0
        %2670 = vmatprep.subr.bf16.mxu0 0
        %2671 = vmatpush1.bf16.msra.mxu0 0
        %2672 = vmatprep.subr.bf16.mxu0 0
        %2673 = vmatpush1.bf16.msra.mxu0 0
        %2674 = vmatprep.subr.bf16.mxu0 0
        %2675 = vmatpush1.bf16.msra.mxu0 0
        %2676 = vmatprep.subr.bf16.mxu0 0
        %2677 = vmatpush1.bf16.msra.mxu0 0
        %2678 = vmatprep.subr.bf16.mxu0 0
        %2679 = vmatpush1.bf16.msra.mxu0 0
        %2680 = vmatprep.subr.bf16.mxu0 0
        %2681 = vmatpush1.bf16.msra.mxu0 %v2664
        %2682 = vmatprep.subr.bf16.mxu0 0
        %2683 = vmatpush2.bf16.msra.mxu0 0
        %2684 = vmatprep.subr.bf16.mxu0 0
        %2685 = vmatpush2.bf16.msra.mxu0 0
        %2686 = vmatprep.subr.bf16.mxu0 0
        %2687 = vmatpush2.bf16.msra.mxu0 0
        %2688 = vmatprep.subr.bf16.mxu0 0
        %2689 = vmatpush2.bf16.msra.mxu0 0
        %2690 = vmatprep.subr.bf16.mxu0 0
        %2691 = vmatpush2.bf16.msra.mxu0 0
        %2692 = vmatprep.subr.bf16.mxu0 0
        %2693 = vmatpush2.bf16.msra.mxu0 0
        %2694 = vmatprep.subr.bf16.mxu0 0
        %2695 = vmatpush2.bf16.msra.mxu0 0
        %2696 = vmatprep.subr.bf16.mxu0 0
        %2697 = vmatpush2.bf16.msra.mxu0 0
        %2698 = vmatprep.mubr.bf16.mxu0 0
        %2699 = vmatmul.mubr.bf16.gmra.mxu0 %v2661
        %v2700 = vpop.f32.mrf.mxu0
        %v2701 = vadd.f32 0.0, %v2700
        %v2702 = vpop.f32.mrf.mxu0
        %v2703 = vpop.f32.mrf.mxu0
        %v2704 = vpop.f32.mrf.mxu0
        %2705 = vdwg.mxu0
        %v2707 = vsel %vm857, %v2562, 0
        %v2710 = vsel %vm2570, %v2098, 0
        %2712 = vmatprep.subr.bf16.mxu0 0
        %2713 = vmatpush1.bf16.msra.mxu0 0
        %2714 = vmatprep.subr.bf16.mxu0 0
        %2715 = vmatpush1.bf16.msra.mxu0 0
        %2716 = vmatprep.subr.bf16.mxu0 0
        %2717 = vmatpush1.bf16.msra.mxu0 0
        %2718 = vmatprep.subr.bf16.mxu0 0
        %2719 = vmatpush1.bf16.msra.mxu0 0
        %2720 = vmatprep.subr.bf16.mxu0 0
        %2721 = vmatpush1.bf16.msra.mxu0 0
        %2722 = vmatprep.subr.bf16.mxu0 0
        %2723 = vmatpush1.bf16.msra.mxu0 0
        %2724 = vmatprep.subr.bf16.mxu0 0
        %2725 = vmatpush1.bf16.msra.mxu0 0
        %2726 = vmatprep.subr.bf16.mxu0 0
        %2727 = vmatpush1.bf16.msra.mxu0 %v2710
        %2728 = vmatprep.subr.bf16.mxu0 0
        %2729 = vmatpush2.bf16.msra.mxu0 0
        %2730 = vmatprep.subr.bf16.mxu0 0
        %2731 = vmatpush2.bf16.msra.mxu0 0
        %2732 = vmatprep.subr.bf16.mxu0 0
        %2733 = vmatpush2.bf16.msra.mxu0 0
        %2734 = vmatprep.subr.bf16.mxu0 0
        %2735 = vmatpush2.bf16.msra.mxu0 0
        %2736 = vmatprep.subr.bf16.mxu0 0
        %2737 = vmatpush2.bf16.msra.mxu0 0
        %2738 = vmatprep.subr.bf16.mxu0 0
        %2739 = vmatpush2.bf16.msra.mxu0 0
        %2740 = vmatprep.subr.bf16.mxu0 0
        %2741 = vmatpush2.bf16.msra.mxu0 0
        %2742 = vmatprep.subr.bf16.mxu0 0
        %2743 = vmatpush2.bf16.msra.mxu0 0
        %2744 = vmatprep.mubr.bf16.mxu0 0
        %2745 = vmatmul.mubr.bf16.gmra.mxu0 %v2707
        %v2746 = vpop.f32.mrf.mxu0
        %v2747 = vadd.f32 0.0, %v2746
        %v2748 = vpop.f32.mrf.mxu0
        %v2749 = vpop.f32.mrf.mxu0
        %v2750 = vpop.f32.mrf.mxu0
        %2751 = vdwg.mxu0
        %v2753 = vsel %vm857, %v2563, 0
        %v2756 = vsel %vm2570, %v2099, 0
        %2758 = vmatprep.subr.bf16.mxu0 0
        %2759 = vmatpush1.bf16.msra.mxu0 0
        %2760 = vmatprep.subr.bf16.mxu0 0
        %2761 = vmatpush1.bf16.msra.mxu0 0
        %2762 = vmatprep.subr.bf16.mxu0 0
        %2763 = vmatpush1.bf16.msra.mxu0 0
        %2764 = vmatprep.subr.bf16.mxu0 0
        %2765 = vmatpush1.bf16.msra.mxu0 0
        %2766 = vmatprep.subr.bf16.mxu0 0
        %2767 = vmatpush1.bf16.msra.mxu0 0
        %2768 = vmatprep.subr.bf16.mxu0 0
        %2769 = vmatpush1.bf16.msra.mxu0 0
        %2770 = vmatprep.subr.bf16.mxu0 0
        %2771 = vmatpush1.bf16.msra.mxu0 0
        %2772 = vmatprep.subr.bf16.mxu0 0
        %2773 = vmatpush1.bf16.msra.mxu0 %v2756
        %2774 = vmatprep.subr.bf16.mxu0 0
        %2775 = vmatpush2.bf16.msra.mxu0 0
        %2776 = vmatprep.subr.bf16.mxu0 0
        %2777 = vmatpush2.bf16.msra.mxu0 0
        %2778 = vmatprep.subr.bf16.mxu0 0
        %2779 = vmatpush2.bf16.msra.mxu0 0
        %2780 = vmatprep.subr.bf16.mxu0 0
        %2781 = vmatpush2.bf16.msra.mxu0 0
        %2782 = vmatprep.subr.bf16.mxu0 0
        %2783 = vmatpush2.bf16.msra.mxu0 0
        %2784 = vmatprep.subr.bf16.mxu0 0
        %2785 = vmatpush2.bf16.msra.mxu0 0
        %2786 = vmatprep.subr.bf16.mxu0 0
        %2787 = vmatpush2.bf16.msra.mxu0 0
        %2788 = vmatprep.subr.bf16.mxu0 0
        %2789 = vmatpush2.bf16.msra.mxu0 0
        %2790 = vmatprep.mubr.bf16.mxu0 0
        %2791 = vmatmul.mubr.bf16.gmra.mxu0 %v2753
        %v2792 = vpop.f32.mrf.mxu0
        %v2793 = vadd.f32 0.0, %v2792
        %v2794 = vpop.f32.mrf.mxu0
        %v2795 = vpop.f32.mrf.mxu0
        %v2796 = vpop.f32.mrf.mxu0
        %2797 = vdwg.mxu0
        %v2799 = vsel %vm857, %v2564, 0
        %v2802 = vsel %vm2570, %v2100, 0
        %2804 = vmatprep.subr.bf16.mxu0 0
        %2805 = vmatpush1.bf16.msra.mxu0 0
        %2806 = vmatprep.subr.bf16.mxu0 0
        %2807 = vmatpush1.bf16.msra.mxu0 0
        %2808 = vmatprep.subr.bf16.mxu0 0
        %2809 = vmatpush1.bf16.msra.mxu0 0
        %2810 = vmatprep.subr.bf16.mxu0 0
        %2811 = vmatpush1.bf16.msra.mxu0 0
        %2812 = vmatprep.subr.bf16.mxu0 0
        %2813 = vmatpush1.bf16.msra.mxu0 0
        %2814 = vmatprep.subr.bf16.mxu0 0
        %2815 = vmatpush1.bf16.msra.mxu0 0
        %2816 = vmatprep.subr.bf16.mxu0 0
        %2817 = vmatpush1.bf16.msra.mxu0 0
        %2818 = vmatprep.subr.bf16.mxu0 0
        %2819 = vmatpush1.bf16.msra.mxu0 %v2802
        %2820 = vmatprep.subr.bf16.mxu0 0
        %2821 = vmatpush2.bf16.msra.mxu0 0
        %2822 = vmatprep.subr.bf16.mxu0 0
        %2823 = vmatpush2.bf16.msra.mxu0 0
        %2824 = vmatprep.subr.bf16.mxu0 0
        %2825 = vmatpush2.bf16.msra.mxu0 0
        %2826 = vmatprep.subr.bf16.mxu0 0
        %2827 = vmatpush2.bf16.msra.mxu0 0
        %2828 = vmatprep.subr.bf16.mxu0 0
        %2829 = vmatpush2.bf16.msra.mxu0 0
        %2830 = vmatprep.subr.bf16.mxu0 0
        %2831 = vmatpush2.bf16.msra.mxu0 0
        %2832 = vmatprep.subr.bf16.mxu0 0
        %2833 = vmatpush2.bf16.msra.mxu0 0
        %2834 = vmatprep.subr.bf16.mxu0 0
        %2835 = vmatpush2.bf16.msra.mxu0 0
        %2836 = vmatprep.mubr.bf16.mxu0 0
        %2837 = vmatmul.mubr.bf16.gmra.mxu0 %v2799
        %v2838 = vpop.f32.mrf.mxu0
        %v2839 = vadd.f32 0.0, %v2838
        %v2840 = vpop.f32.mrf.mxu0
        %v2841 = vpop.f32.mrf.mxu0
        %v2842 = vpop.f32.mrf.mxu0
        %2843 = vdwg.mxu0
        %v2845 = vsel %vm857, %v2565, 0
        %v2848 = vsel %vm2570, %v2101, 0
        %2850 = vmatprep.subr.bf16.mxu0 0
        %2851 = vmatpush1.bf16.msra.mxu0 0
        %2852 = vmatprep.subr.bf16.mxu0 0
        %2853 = vmatpush1.bf16.msra.mxu0 0
        %2854 = vmatprep.subr.bf16.mxu0 0
        %2855 = vmatpush1.bf16.msra.mxu0 0
        %2856 = vmatprep.subr.bf16.mxu0 0
        %2857 = vmatpush1.bf16.msra.mxu0 0
        %2858 = vmatprep.subr.bf16.mxu0 0
        %2859 = vmatpush1.bf16.msra.mxu0 0
        %2860 = vmatprep.subr.bf16.mxu0 0
        %2861 = vmatpush1.bf16.msra.mxu0 0
        %2862 = vmatprep.subr.bf16.mxu0 0
        %2863 = vmatpush1.bf16.msra.mxu0 0
        %2864 = vmatprep.subr.bf16.mxu0 0
        %2865 = vmatpush1.bf16.msra.mxu0 %v2848
        %2866 = vmatprep.subr.bf16.mxu0 0
        %2867 = vmatpush2.bf16.msra.mxu0 0
        %2868 = vmatprep.subr.bf16.mxu0 0
        %2869 = vmatpush2.bf16.msra.mxu0 0
        %2870 = vmatprep.subr.bf16.mxu0 0
        %2871 = vmatpush2.bf16.msra.mxu0 0
        %2872 = vmatprep.subr.bf16.mxu0 0
        %2873 = vmatpush2.bf16.msra.mxu0 0
        %2874 = vmatprep.subr.bf16.mxu0 0
        %2875 = vmatpush2.bf16.msra.mxu0 0
        %2876 = vmatprep.subr.bf16.mxu0 0
        %2877 = vmatpush2.bf16.msra.mxu0 0
        %2878 = vmatprep.subr.bf16.mxu0 0
        %2879 = vmatpush2.bf16.msra.mxu0 0
        %2880 = vmatprep.subr.bf16.mxu0 0
        %2881 = vmatpush2.bf16.msra.mxu0 0
        %2882 = vmatprep.mubr.bf16.mxu0 0
        %2883 = vmatmul.mubr.bf16.gmra.mxu0 %v2845
        %v2884 = vpop.f32.mrf.mxu0
        %v2885 = vadd.f32 0.0, %v2884
        %v2886 = vpop.f32.mrf.mxu0
        %v2887 = vpop.f32.mrf.mxu0
        %v2888 = vpop.f32.mrf.mxu0
        %2889 = vdwg.mxu0
        %v2891 = vsel %vm857, %v2566, 0
        %v2894 = vsel %vm2570, %v2102, 0
        %2896 = vmatprep.subr.bf16.mxu0 0
        %2897 = vmatpush1.bf16.msra.mxu0 0
        %2898 = vmatprep.subr.bf16.mxu0 0
        %2899 = vmatpush1.bf16.msra.mxu0 0
        %2900 = vmatprep.subr.bf16.mxu0 0
        %2901 = vmatpush1.bf16.msra.mxu0 0
        %2902 = vmatprep.subr.bf16.mxu0 0
        %2903 = vmatpush1.bf16.msra.mxu0 0
        %2904 = vmatprep.subr.bf16.mxu0 0
        %2905 = vmatpush1.bf16.msra.mxu0 0
        %2906 = vmatprep.subr.bf16.mxu0 0
        %2907 = vmatpush1.bf16.msra.mxu0 0
        %2908 = vmatprep.subr.bf16.mxu0 0
        %2909 = vmatpush1.bf16.msra.mxu0 0
        %2910 = vmatprep.subr.bf16.mxu0 0
        %2911 = vmatpush1.bf16.msra.mxu0 %v2894
        %2912 = vmatprep.subr.bf16.mxu0 0
        %2913 = vmatpush2.bf16.msra.mxu0 0
        %2914 = vmatprep.subr.bf16.mxu0 0
        %2915 = vmatpush2.bf16.msra.mxu0 0
        %2916 = vmatprep.subr.bf16.mxu0 0
        %2917 = vmatpush2.bf16.msra.mxu0 0
        %2918 = vmatprep.subr.bf16.mxu0 0
        %2919 = vmatpush2.bf16.msra.mxu0 0
        %2920 = vmatprep.subr.bf16.mxu0 0
        %2921 = vmatpush2.bf16.msra.mxu0 0
        %2922 = vmatprep.subr.bf16.mxu0 0
        %2923 = vmatpush2.bf16.msra.mxu0 0
        %2924 = vmatprep.subr.bf16.mxu0 0
        %2925 = vmatpush2.bf16.msra.mxu0 0
        %2926 = vmatprep.subr.bf16.mxu0 0
        %2927 = vmatpush2.bf16.msra.mxu0 0
        %2928 = vmatprep.mubr.bf16.mxu0 0
        %2929 = vmatmul.mubr.bf16.gmra.mxu0 %v2891
        %v2930 = vpop.f32.mrf.mxu0
        %v2931 = vadd.f32 0.0, %v2930
        %v2932 = vpop.f32.mrf.mxu0
        %v2933 = vpop.f32.mrf.mxu0
        %v2934 = vpop.f32.mrf.mxu0
        %2935 = vdwg.mxu0
        %2937 = vrot.lane.b32.xlu0 %v2655, 4
        %v2938 = vpop.permute.xlu0 %2937
        %2941 = vrot.lane.b32.xlu0 %v2701, 8
        %v2942 = vpop.permute.xlu0 %2941
        %2945 = vrot.lane.b32.xlu0 %v2747, 12
        %v2946 = vpop.permute.xlu0 %2945
        %2949 = vrot.lane.b32.xlu0 %v2793, 16
        %v2950 = vpop.permute.xlu0 %2949
        %2953 = vrot.lane.b32.xlu0 %v2839, 20
        %v2954 = vpop.permute.xlu0 %2953
        %2957 = vrot.lane.b32.xlu0 %v2885, 24
        %v2958 = vpop.permute.xlu0 %2957
        %2961 = vrot.lane.b32.xlu0 %v2931, 28
        %v2962 = vpop.permute.xlu0 %2961
        %v2964 = vsel %vm857, %v2609, %v2938
        %v2965 = vsel %vm1226, %v2964, %v2942
        %v2966 = vsel %vm1722, %v2965, %v2946
        %v2967 = vsel %vm1724, %v2966, %v2950
        %v2968 = vsel %vm1726, %v2967, %v2954
        %v2969 = vsel %vm1728, %v2968, %v2958
        %v2970 = vsel %vm1730, %v2969, %v2962
        %v2971 = vpack.c.bf16 %v2970, %v2970
        %s2972 = scalar_lea.vmem %s462, 48 [#allocation8]
        %v2973 = vld [vmem:[%s2972] sm:$0xf]
        %v2974 = vld [vmem:[%s2972 + $0x4] sm:$0xf]
        %v2975 = vld [vmem:[%s2972 + $0x8] sm:$0xf]
        %v2976 = vld [vmem:[%s2972 + $0xc] sm:$0xf]
        %v2977 = vlaneseq
        %v2978 = vshrl.u32 %v2977, 7
        %v2979 = vsub.s32 7, %v2978
        %v2980 = vrot.slane %v576, %v2979
        %v2985 = vunpack.c.l.b16 %v2973
        %v2986 = vunpack.c.l.b16 %v2974
        %v2987 = vunpack.c.l.b16 %v2975
        %v2988 = vunpack.c.l.b16 %v2976
        %v2989 = vpack.c.b16 %v2986, %v2985
        %v2990 = vpack.c.b16 %v2988, %v2987
        %v2994 = vsel %vm601, %v2971, 0
        %2996 = vmatprep.subr.bf16.mxu0 0
        %2997 = vmatpush1.bf16.msra.mxu0 0
        %2998 = vmatprep.subr.bf16.mxu0 0
        %2999 = vmatpush1.bf16.msra.mxu0 0
        %3000 = vmatprep.subr.bf16.mxu0 0
        %3001 = vmatpush1.bf16.msra.mxu0 0
        %3002 = vmatprep.subr.bf16.mxu0 0
        %3003 = vmatpush1.bf16.msra.mxu0 0
        %3004 = vmatprep.subr.bf16.mxu0 0
        %3005 = vmatpush1.bf16.msra.mxu0 0
        %3006 = vmatprep.subr.bf16.mxu0 0
        %3007 = vmatpush1.bf16.msra.mxu0 0
        %3008 = vmatprep.subr.bf16.mxu0 0
        %3009 = vmatpush1.bf16.msra.mxu0 %v2990
        %3010 = vmatprep.subr.bf16.mxu0 0
        %3011 = vmatpush1.bf16.msra.mxu0 %v2989
        %3012 = vmatprep.subr.bf16.mxu0 0
        %3013 = vmatpush2.bf16.msra.mxu0 0
        %3014 = vmatprep.subr.bf16.mxu0 0
        %3015 = vmatpush2.bf16.msra.mxu0 0
        %3016 = vmatprep.subr.bf16.mxu0 0
        %3017 = vmatpush2.bf16.msra.mxu0 0
        %3018 = vmatprep.subr.bf16.mxu0 0
        %3019 = vmatpush2.bf16.msra.mxu0 0
        %3020 = vmatprep.subr.bf16.mxu0 0
        %3021 = vmatpush2.bf16.msra.mxu0 0
        %3022 = vmatprep.subr.bf16.mxu0 0
        %3023 = vmatpush2.bf16.msra.mxu0 0
        %3024 = vmatprep.subr.bf16.mxu0 0
        %3025 = vmatpush2.bf16.msra.mxu0 0
        %3026 = vmatprep.subr.bf16.mxu0 0
        %3027 = vmatpush2.bf16.msra.mxu0 0
        %3028 = vmatprep.mubr.bf16.mxu0 0
        %3029 = vmatmul.mubr.bf16.gmra.mxu0 %v2994
        %v3030 = vpop.f32.mrf.mxu0
        %v3031 = vadd.f32 %v2980, %v3030
        %v3032 = vpop.f32.mrf.mxu0
        %v3033 = vpop.f32.mrf.mxu0
        %v3034 = vpop.f32.mrf.mxu0
        %3035 = vdwg.mxu0
        %v3036 = vadd.f32 %v1823, %v3031
        %v3037 = vsel %vm601, %v3036, 0.0
        %3038 = vadd.xlane.f32.xlu0 %v3037
        %v3039 = vpop.xlane.xlu0 %3038
        %v3040 = vmul.f32 %v3039, %v1801
        %v3041 = vmul.f32 %v3036, %v3036
        %v3042 = vsel %vm601, %v3041, 0.0
        %3043 = vadd.xlane.f32.xlu0 %v3042
        %v3044 = vpop.xlane.xlu0 %3043
        %v3045 = vmul.f32 %v3044, %v1801
        %v3046 = vmul.f32 %v3040, %v3040
        %v3047 = vsub.f32 %v3045, %v3046
        %v3048 = vsub.f32 %v3036, %v3040
        %v3049 = vadd.f32 %v3047, 1e-05
        %v3050 = vrsqrt.pop %v3049
        %v3051 = vmul.f32 %v3048, %v3050
        %v3052 = vlaneseq
        %v3053 = vshrl.u32 %v3052, 7
        %v3054 = vsub.s32 2, %v3053
        %v3055 = vrot.slane %v579, %v3054
        %v3056 = vmul.f32 %v3051, %v3055
        %v3057 = vlaneseq
        %v3058 = vshrl.u32 %v3057, 7
        %v3059 = vsub.s32 3, %v3058
        %v3060 = vrot.slane %v579, %v3059
        %v3061 = vadd.f32 %v3056, %v3060
        %v3062 = vpack.c.bf16 %v3061, %v3061
        %v3063 = vld [vmem:[%s471] sm:$0xf]
        %v3064 = vld [vmem:[%s471 + $0x4] sm:$0xf]
        %v3065 = vld [vmem:[%s471 + $0x8] sm:$0xf]
        %v3066 = vld [vmem:[%s471 + $0xc] sm:$0xf]
        %v3068 = vlaneseq
        %v3069 = vshrl.u32 %v3068, 7
        %v3070 = vsub.s32 0, %v3069
        %v3071 = vrot.slane %v578, %v3070
        %v3077 = vunpack.c.l.b16 %v3063
        %v3078 = vunpack.c.l.b16 %v3064
        %v3079 = vunpack.c.l.b16 %v3065
        %v3080 = vunpack.c.l.b16 %v3066
        %v3081 = vpack.c.b16 %v3078, %v3077
        %v3082 = vpack.c.b16 %v3080, %v3079
        %v3086 = vsel %vm601, %v3062, 0
        %3088 = vmatprep.subr.bf16.mxu0 0
        %3089 = vmatpush1.bf16.msra.mxu0 0
        %3090 = vmatprep.subr.bf16.mxu0 0
        %3091 = vmatpush1.bf16.msra.mxu0 0
        %3092 = vmatprep.subr.bf16.mxu0 0
        %3093 = vmatpush1.bf16.msra.mxu0 0
        %3094 = vmatprep.subr.bf16.mxu0 0
        %3095 = vmatpush1.bf16.msra.mxu0 0
        %3096 = vmatprep.subr.bf16.mxu0 0
        %3097 = vmatpush1.bf16.msra.mxu0 0
        %3098 = vmatprep.subr.bf16.mxu0 0
        %3099 = vmatpush1.bf16.msra.mxu0 0
        %3100 = vmatprep.subr.bf16.mxu0 0
        %3101 = vmatpush1.bf16.msra.mxu0 %v3082
        %3102 = vmatprep.subr.bf16.mxu0 0
        %3103 = vmatpush1.bf16.msra.mxu0 %v3081
        %3104 = vmatprep.subr.bf16.mxu0 0
        %3105 = vmatpush2.bf16.msra.mxu0 0
        %3106 = vmatprep.subr.bf16.mxu0 0
        %3107 = vmatpush2.bf16.msra.mxu0 0
        %3108 = vmatprep.subr.bf16.mxu0 0
        %3109 = vmatpush2.bf16.msra.mxu0 0
        %3110 = vmatprep.subr.bf16.mxu0 0
        %3111 = vmatpush2.bf16.msra.mxu0 0
        %3112 = vmatprep.subr.bf16.mxu0 0
        %3113 = vmatpush2.bf16.msra.mxu0 0
        %3114 = vmatprep.subr.bf16.mxu0 0
        %3115 = vmatpush2.bf16.msra.mxu0 0
        %3116 = vmatprep.subr.bf16.mxu0 0
        %3117 = vmatpush2.bf16.msra.mxu0 0
        %3118 = vmatprep.subr.bf16.mxu0 0
        %3119 = vmatpush2.bf16.msra.mxu0 0
        %3120 = vmatprep.mubr.bf16.mxu0 0
        %3121 = vmatmul.mubr.bf16.gmra.mxu0 %v3086
        %v3122 = vpop.f32.mrf.mxu0
        %v3123 = vadd.f32 %v3071, %v3122
        %v3124 = vpop.f32.mrf.mxu0
        %v3125 = vpop.f32.mrf.mxu0
        %v3126 = vpop.f32.mrf.mxu0
        %3127 = vdwg.mxu0
        %v3128 = vmax.f32 %v3123, 0.0
        %v3129 = vpack.c.bf16 %v3128, %v3128
        %v3130 = vld [vmem:[%s552] sm:$0xf]
        %v3131 = vld [vmem:[%s552 + $0x4] sm:$0xf]
        %v3132 = vld [vmem:[%s552 + $0x8] sm:$0xf]
        %v3133 = vld [vmem:[%s552 + $0xc] sm:$0xf]
        %v3134 = vld [vmem:[%s552 + $0x10] sm:$0xf]
        %v3135 = vld [vmem:[%s552 + $0x14] sm:$0xf]
        %v3136 = vld [vmem:[%s552 + $0x18] sm:$0xf]
        %v3137 = vld [vmem:[%s552 + $0x1c] sm:$0xf]
        %v3138 = vlaneseq
        %v3139 = vshrl.u32 %v3138, 7
        %v3140 = vsub.s32 0, %v3139
        %v3141 = vrot.slane %v577, %v3140
        %v3150 = vunpack.c.l.b16 %v3130
        %v3151 = vunpack.c.l.b16 %v3131
        %v3152 = vunpack.c.l.b16 %v3132
        %v3153 = vunpack.c.l.b16 %v3133
        %v3154 = vunpack.c.l.b16 %v3134
        %v3155 = vunpack.c.l.b16 %v3135
        %v3156 = vunpack.c.l.b16 %v3136
        %v3157 = vunpack.c.l.b16 %v3137
        %v3158 = vpack.c.b16 %v3151, %v3150
        %v3159 = vpack.c.b16 %v3153, %v3152
        %v3160 = vpack.c.b16 %v3155, %v3154
        %v3161 = vpack.c.b16 %v3157, %v3156
        %vm3166 = vcmask 523264
        %v3168 = vsel %vm3166, %v3129, 0
        %3170 = vmatprep.subr.bf16.mxu0 0
        %3171 = vmatpush1.bf16.msra.mxu0 0
        %3172 = vmatprep.subr.bf16.mxu0 0
        %3173 = vmatpush1.bf16.msra.mxu0 0
        %3174 = vmatprep.subr.bf16.mxu0 0
        %3175 = vmatpush1.bf16.msra.mxu0 0
        %3176 = vmatprep.subr.bf16.mxu0 0
        %3177 = vmatpush1.bf16.msra.mxu0 0
        %3178 = vmatprep.subr.bf16.mxu0 0
        %3179 = vmatpush1.bf16.msra.mxu0 %v3161
        %3180 = vmatprep.subr.bf16.mxu0 0
        %3181 = vmatpush1.bf16.msra.mxu0 %v3160
        %3182 = vmatprep.subr.bf16.mxu0 0
        %3183 = vmatpush1.bf16.msra.mxu0 %v3159
        %3184 = vmatprep.subr.bf16.mxu0 0
        %3185 = vmatpush1.bf16.msra.mxu0 %v3158
        %3186 = vmatprep.subr.bf16.mxu0 0
        %3187 = vmatpush2.bf16.msra.mxu0 0
        %3188 = vmatprep.subr.bf16.mxu0 0
        %3189 = vmatpush2.bf16.msra.mxu0 0
        %3190 = vmatprep.subr.bf16.mxu0 0
        %3191 = vmatpush2.bf16.msra.mxu0 0
        %3192 = vmatprep.subr.bf16.mxu0 0
        %3193 = vmatpush2.bf16.msra.mxu0 0
        %3194 = vmatprep.subr.bf16.mxu0 0
        %3195 = vmatpush2.bf16.msra.mxu0 0
        %3196 = vmatprep.subr.bf16.mxu0 0
        %3197 = vmatpush2.bf16.msra.mxu0 0
        %3198 = vmatprep.subr.bf16.mxu0 0
        %3199 = vmatpush2.bf16.msra.mxu0 0
        %3200 = vmatprep.subr.bf16.mxu0 0
        %3201 = vmatpush2.bf16.msra.mxu0 0
        %3202 = vmatprep.mubr.bf16.mxu0 0
        %3203 = vmatmul.mubr.bf16.gmra.mxu0 %v3168
        %v3204 = vpop.f32.mrf.mxu0
        %v3205 = vadd.f32 %v3141, %v3204
        %v3206 = vpop.f32.mrf.mxu0
        %v3207 = vpop.f32.mrf.mxu0
        %v3208 = vpop.f32.mrf.mxu0
        %3209 = vdwg.mxu0
        %v3210 = vadd.f32 %v3061, %v3205
        %v3211 = vsel %vm601, %v3210, 0.0
        %3212 = vadd.xlane.f32.xlu0 %v3211
        %v3213 = vpop.xlane.xlu0 %3212
        %v3214 = vmul.f32 %v3213, %v1801
        %v3215 = vmul.f32 %v3210, %v3210
        %v3216 = vsel %vm601, %v3215, 0.0
        %3217 = vadd.xlane.f32.xlu0 %v3216
        %v3218 = vpop.xlane.xlu0 %3217
        %v3219 = vmul.f32 %v3218, %v1801
        %v3220 = vmul.f32 %v3214, %v3214
        %v3221 = vsub.f32 %v3219, %v3220
        %v3222 = vsub.f32 %v3210, %v3214
        %v3223 = vadd.f32 %v3221, 1e-05
        %v3224 = vrsqrt.pop %v3223
        %v3225 = vmul.f32 %v3222, %v3224
        %v3226 = vlaneseq
        %v3227 = vshrl.u32 %v3226, 7
        %v3228 = vsub.s32 4, %v3227
        %v3229 = vrot.slane %v579, %v3228
        %v3230 = vmul.f32 %v3225, %v3229
        %v3231 = vlaneseq
        %v3232 = vshrl.u32 %v3231, 7
        %v3233 = vsub.s32 5, %v3232
        %v3234 = vrot.slane %v579, %v3233
        %v3235 = vadd.f32 %v3230, %v3234
        %3236 = vst.msk [vmem:[#allocation2] sm:$0xff] %vm601, %v3235
        %p3237 = scmp.eq.s32.totalorder %s37, 1
        // Predicated region
        $region77: #{tpu_custom_call.1} parent=55 // pred_check
          %p3238 = pneg %p3237
        $region78: #{tpu_custom_call.1} parent=55 // pred_check_branch
          %3240 = sbr.rel (%p3238) target = $region80
        $region79: #{tpu_custom_call.1} parent=55 // pred_region
          %3241 = vst.msk [vmem:[%s542] sm:$0xff] %vm601, %v3235
        $region80: #{tpu_custom_call.1} parent=55 // pred_fallthru
          _
        %s3242 = sand.u32 %s286, 1
        %s3243 = scalar_lea.sflag [#allocation5], %s3242
        %s3244 = sand.u32 %s286, 1
        %s3245 = smul.addr %s3244, 8
        %s3246 = scalar_lea.vmem [#allocation11], %s3245
        // Predicated region
        $region81: #{tpu_custom_call.1} parent=55 // pred_check
          %p3247 = pneg %p296
        $region82: #{tpu_custom_call.1} parent=55 // pred_check_branch
          %3249 = sbr.rel (%p3247) target = $region84
        $region83: #{tpu_custom_call.1} parent=55 // pred_region
          %s3251 = ssub.s32 128, 128
          %3252 = vsyncadd %s3243, %s3251
          %s3253 = smul.addr %s36, 128
          %s3254 = scalar_lea.hbm %s9, %s3253
          %s3256 = sshll.u32 %s3246, 4
          %s3257 = int_to_ptr.vmem [resolvable:$true] %s3256
          %3259 = dma.vmem_to_hbm [thread:$0]  %s3257, 128, %s3254, %s3243
        $region84: #{tpu_custom_call.1} parent=55 // pred_fallthru
          _
      $region56: #{tpu_custom_call.1} parent=5 // pred_fallthru
        _
      %p3260 = scmp.le.s32.totalorder 2, %s27
      // Predicated region
      $region85: #{tpu_custom_call.1} parent=5 // pred_check
        %p3261 = pneg %p3260
      $region86: #{tpu_custom_call.1} parent=5 // pred_check_branch
        %3263 = sbr.rel (%p3261) target = $region88
      $region87: #{tpu_custom_call.1} parent=5 // pred_region
        %s3264 = ssub.s32 %s27, 2
        // Predicated region
        $region89: #{tpu_custom_call.1} parent=87 // pred_check
          %p3265 = pneg %p302
        $region90: #{tpu_custom_call.1} parent=87 // pred_check_branch
          %3267 = sbr.rel (%p3265) target = $region92
        $region91: #{tpu_custom_call.1} parent=87 // pred_region
          %s3268 = sand.u32 %s287, 1
          %s3269 = scalar_lea.sflag [#allocation5], %s3268
          %s3270 = sand.u32 %s287, 1
          %s3271 = smul.addr %s3270, 8
          %s3272 = scalar_lea.vmem [#allocation11], %s3271
          %3273 = dma.done %s3269, 128
        $region92: #{tpu_custom_call.1} parent=87 // pred_fallthru
          _
      $region88: #{tpu_custom_call.1} parent=5 // pred_fallthru
        _
    $region6: #{tpu_custom_call.1} parent=1 // loop_footer
      %s31 = sadd.s32 1, %s27
    $region7: #{tpu_custom_call.1} parent=1 // loop_footer_branch
      %26 = sbr.rel target = $region3
    $region8: #{tpu_custom_call.1} parent=1 // loop_exit
      _
    %3274 = vsyncpa [#allocation4], 1
    %s3275 = scalar_lea.sflag [#allocation4], 1
    %3276 = vsyncpa %s3275, 1
    %3277 = vsyncpa [#allocation7], 1
    %s3278 = scalar_lea.sflag [#allocation7], 1
    %3279 = vsyncpa %s3278, 1
    %3280 = vsyncpa [#allocation10], 1
    %s3281 = scalar_lea.sflag [#allocation10], 1
    %3282 = vsyncpa %s3281, 1
    %3283 = vsyncpa [#allocation5], 1
    %s3284 = scalar_lea.sflag [#allocation5], 1
    %3285 = vsyncpa %s3284, 1

</llo_original>
